<compile_context>
chip_gen: v7x
topology: tpu7x:2x2x1
jax: 0.10.0
libtpu: 0.0.40
codegen_flags: <defaults>
</compile_context>

<pallas_src>
import math

import jax
import jax.numpy as jnp
from jax import lax
from jax.experimental import pallas as pl
from jax.experimental.pallas import tpu as pltpu


# ----------------------------------------------------------------------------
# In-kernel math helpers (elementwise; safe Mosaic lowerings: exp/log/rsqrt only)
# ----------------------------------------------------------------------------
def _erf(x):
    # Abramowitz & Stegun 7.1.26, |err| < 1.5e-7 (matches erf-based torch GELU to f32 noise)
    a1, a2, a3, a4, a5 = 0.254829592, -0.284496736, 1.421413741, -1.453152027, 1.061405429
    p = 0.3275911
    s = jnp.where(x >= 0.0, 1.0, -1.0)
    ax = jnp.abs(x)
    t = 1.0 / (1.0 + p * ax)
    y = 1.0 - (((((a5 * t + a4) * t) + a3) * t + a2) * t + a1) * t * jnp.exp(-ax * ax)
    return s * y


def _gelu(x):
    # exact (erf) GELU as in torch.nn.functional.gelu(approximate='none')
    return 0.5 * x * (1.0 + _erf(x * 0.7071067811865476))


def _softplus(x):
    # torch Softplus(beta=1, threshold=20)
    return jnp.where(x > 20.0, x, jnp.log(1.0 + jnp.exp(jnp.minimum(x, 20.0))))


def _layernorm(x, g, b, eps=1e-5):
    mu = jnp.mean(x, axis=-1, keepdims=True)
    var = jnp.mean((x - mu) ** 2, axis=-1, keepdims=True)
    return (x - mu) * lax.rsqrt(var + eps) * g + b


_VSPEC = pl.BlockSpec(memory_space=pltpu.MemorySpace.VMEM)


# ----------------------------------------------------------------------------
# Kernel 1: fused S5Block (one branch of the A/B stacks per grid step)
# ----------------------------------------------------------------------------
def s5block_kernel(x_ref, g1_ref, b1_ref, lbr_ref, lbi_ref, lre_ref, lim_ref,
                   btr_ref, bti_ref, ctr_ref, cti_ref, d_ref,
                   g2_ref, b2_ref, wv_ref, wg_ref, wd_ref,
                   o_ref, sr_ref, si_ref, nr_scr, ni_scr):
    """attn_norm -> diagonal S5 scan -> GELU+res -> ff_norm -> GEGLU FF + res.

    Time-major rows: row n = t*B + b.  Grid axis = branch (A-stack / B-stack layer).
      x:(N,H)  lbr/lbi:(N,P)  lre/lim:(1,P)  Bt*:(H,P)  Ct*:(P,H)  d:(1,H)
      wv/wg/wd:(H,H)   outputs o:(N,H)  sr/si:(B,P)   scratch nr/ni:(N,P)
    """
    N = x_ref.shape[0]
    Bsz = sr_ref.shape[0]
    L = N // Bsz

    # attn_norm; fx doubles as the residual and as the S5 input u.
    fx = _layernorm(x_ref[...], g1_ref[...], b1_ref[...])

    # Hoisted B-projection: all timesteps in two matmuls (instead of 2*L tiny ones).
    bur = jnp.dot(fx, btr_ref[...], preferred_element_type=jnp.float32)   # (N,P)
    bui = jnp.dot(fx, bti_ref[...], preferred_element_type=jnp.float32)

    # ZOH input coefficient (Lambda_bar - 1)/Lambda computed in-kernel.
    lbr = lbr_ref[...]
    lbi = lbi_ref[...]
    lre = lre_ref[...]
    lim = lim_ref[...]
    inv_den = 1.0 / (lre * lre + lim * lim)
    fcr = ((lbr - 1.0) * lre + lbi * lim) * inv_den
    fci = (lbi * lre - (lbr - 1.0) * lim) * inv_den

    # Sequential diagonal recurrence: fully unrolled, pure VPU (no matmuls inside).
    pr = jnp.zeros((Bsz, bur.shape[1]), jnp.float32)
    pi = jnp.zeros((Bsz, bur.shape[1]), jnp.float32)
    for t in range(L):
        s = slice(t * Bsz, (t + 1) * Bsz)
        gr = fcr[s] * bur[s] - fci[s] * bui[s]
        gi = fcr[s] * bui[s] + fci[s] * bur[s]
        nr = lbr[s] * pr - lbi[s] * pi + gr
        ni = lbr[s] * pi + lbi[s] * pr + gi
        nr_scr[s, :] = nr
        ni_scr[s, :] = ni
        pr, pi = nr, ni
    sr_ref[...] = pr            # final recurrent state written straight to outputs
    si_ref[...] = pi

    # Deferred C-projection over all timesteps at once + D skip term.
    y = 2.0 * (jnp.dot(nr_scr[...], ctr_ref[...], preferred_element_type=jnp.float32)
               - jnp.dot(ni_scr[...], cti_ref[...], preferred_element_type=jnp.float32))
    y = y + fx * d_ref[...]

    # GELU + residual, ff_norm, GEGLU feed-forward (+ residual).
    x2 = _gelu(y) + fx
    fx2 = _layernorm(x2, g2_ref[...], b2_ref[...])
    hv = jnp.dot(fx2, wv_ref[...], preferred_element_type=jnp.float32)
    hg = jnp.dot(fx2, wg_ref[...], preferred_element_type=jnp.float32)
    o_ref[...] = jnp.dot(hv * _gelu(hg), wd_ref[...],
                         preferred_element_type=jnp.float32) + fx2


# ----------------------------------------------------------------------------
# Kernel 2: fused ssm_to_A / ssm_to_B MLPs + physics + bilinear + state update
# ----------------------------------------------------------------------------
def mlp_physics_kernel(feat_ref, w1a_ref, b1a_ref, w2a_ref, b2a_ref,
                       w1b_ref, b1b_ref, w2b_ref, b2b_ref,
                       z_ref, u_ref, dt_ref, out_ref):
    """Masked pendulum dynamics + Tustin discretization (unrolled 4x4 Gauss-Jordan)
    + next-state update, fused with both MLP heads.  Time-major (N, feature) rows;
    every per-sample scalar below is an (N,1) column vector.
    """
    fa = feat_ref[0]                                 # (N,H) A-branch features
    fb = feat_ref[1]                                 # (N,H) B-branch features

    ha = _softplus(jnp.dot(fa, w1a_ref[...], preferred_element_type=jnp.float32) + b1a_ref[...])
    unkA = jnp.dot(ha, w2a_ref[...], preferred_element_type=jnp.float32) + b2a_ref[...]   # (N,16)
    hb = _softplus(jnp.dot(fb, w1b_ref[...], preferred_element_type=jnp.float32) + b1b_ref[...])
    unkB = jnp.dot(hb, w2b_ref[...], preferred_element_type=jnp.float32) + b2b_ref[...]   # (N,4)

    dt = dt_ref[...]                                 # (N,1)
    h = 0.5 * dt
    z = z_ref[...]                                   # (N,4)
    u0 = u_ref[...]                                  # (N,1)  (dim_control == 1)
    z1 = z[:, 1:2]
    ones = jnp.ones_like(dt)
    zeros = jnp.zeros_like(dt)

    # A = A_known_const + A_known_dynamic + Mask_A * Unk_A
    A = [[zeros for _ in range(4)] for _ in range(4)]
    A[0][1] = ones
    for j in range(4):
        A[1][j] = unkA[:, 4 + j:5 + j]
    A[2][3] = z1
    A[3][2] = -z1
    b1c = unkB[:, 1:2]                               # Mask_B keeps only row 1 of Unk_B

    # M = I - dt/2 * A ;  R = [I + dt/2 * A | dt * B]
    M = [[(ones if i == j else zeros) - h * A[i][j] for j in range(4)] for i in range(4)]
    R = [[(ones if i == j else zeros) + h * A[i][j] for j in range(4)] for i in range(4)]
    Bc = [zeros, dt * b1c, zeros, zeros]
    for i in range(4):
        R[i].append(Bc[i])

    # Unrolled Gauss-Jordan (no pivoting; M = I - (dt/2)A is diagonally dominant here).
    # TODO(synk): torch.linalg.solve uses pivoted LU; results match to f32 tolerance.
    for k in range(4):
        inv = 1.0 / M[k][k]
        for j in range(k + 1, 4):
            M[k][j] = M[k][j] * inv
        for j in range(5):
            R[k][j] = R[k][j] * inv
        for i in range(4):
            if i == k:
                continue
            f = M[i][k]
            for j in range(k + 1, 4):
                M[i][j] = M[i][j] - f * M[k][j]
            for j in range(5):
                R[i][j] = R[i][j] - f * R[k][j]

    # X_next = dA @ X + dB @ U   (columns assembled via iota/select -> one dense store)
    col_idx = lax.broadcasted_iota(jnp.int32, (z.shape[0], 4), 1)
    out = jnp.zeros_like(z)
    for i in range(4):
        acc = R[i][4] * u0
        for j in range(4):
            acc = acc + R[i][j] * z[:, j:j + 1]
        out = jnp.where(col_idx == i, acc, out)
    out_ref[...] = out


# ----------------------------------------------------------------------------
# Wrappers (plain-JAX glue around the kernels)
# ----------------------------------------------------------------------------
def _branch_spec(arr):
    """BlockSpec selecting one branch (leading axis) per grid step; trailing dims whole."""
    trailing = tuple(arr.shape[1:])
    n = len(trailing)
    return pl.BlockSpec((None,) + trailing, lambda b, _n=n: (b,) + (0,) * _n)


def s5block_pair_forward(x_pair, lbr, lbi, blk, batch):
    """Run layer i of the A-stack (branch 0) and B-stack (branch 1) in one launch."""
    _, N, H = x_pair.shape
    P = lbr.shape[-1]
    inputs = (x_pair, blk["ln1_g"], blk["ln1_b"], lbr, lbi,
              blk["lam_re"], blk["lam_im"],
              blk["Bt_re"], blk["Bt_im"], blk["Ct_re"], blk["Ct_im"], blk["D"],
              blk["ln2_g"], blk["ln2_b"], blk["W_v"], blk["W_g"], blk["W_dec"])
    out, sr, si = pl.pallas_call(
        s5block_kernel,
        out_shape=(jax.ShapeDtypeStruct((2, N, H), jnp.float32),
                   jax.ShapeDtypeStruct((2, batch, P), jnp.float32),
                   jax.ShapeDtypeStruct((2, batch, P), jnp.float32)),
        grid=(2,),
        in_specs=[_branch_spec(a) for a in inputs],
        out_specs=(pl.BlockSpec((None, N, H), lambda b: (b, 0, 0)),
                   pl.BlockSpec((None, batch, P), lambda b: (b, 0, 0)),
                   pl.BlockSpec((None, batch, P), lambda b: (b, 0, 0))),
        scratch_shapes=[pltpu.VMEM((N, P), jnp.float32),
                        pltpu.VMEM((N, P), jnp.float32)],
        compiler_params=pltpu.CompilerParams(
            dimension_semantics=("parallel",)),      # v7x: A/B branches on the 2 TCs
    )(*inputs)
    return out, sr, si


def zoh_coeffs(interval_tm, blk):
    """Lambda_bar = exp(Lambda * step) per (branch, row, state) -- tiny XLA glue.
    interval_tm: (N,);  blk log_step / lam_* : (2,1,P)."""
    step = interval_tm[None, :, None] * jnp.exp(blk["log_step"])          # (2,N,P)
    ar = blk["lam_re"] * step
    ai = blk["lam_im"] * step
    e = jnp.exp(ar)
    return e * jnp.cos(ai), e * jnp.sin(ai)


def mlp_physics_step(feat_pair, mlpA, mlpB, z_tm, u_tm, dt_tm):
    N = z_tm.shape[0]
    return pl.pallas_call(
        mlp_physics_kernel,
        out_shape=jax.ShapeDtypeStruct((N, 4), jnp.float32),
        in_specs=[_VSPEC] * 12,
        out_specs=_VSPEC,
    )(feat_pair, mlpA["w1"], mlpA["b1"], mlpA["w2"], mlpA["b2"],
      mlpB["w1"], mlpB["b1"], mlpB["w2"], mlpB["b2"], z_tm, u_tm, dt_tm)


def physics_constraint_ssm_forward(params, interval, input_x, input_ux, control_data):
    """Mirrors Physics_constraint_SSM.forward (branch 0 = ssm_A stack, 1 = ssm_B stack)."""
    B, L, n_phys = input_x.shape
    interval = interval[:, :L]
    N = B * L
    H = input_ux.shape[-1]

    # Everything runs time-major: row n = t*B + b (one tiny transpose per input, total).
    ux_tm = jnp.transpose(input_ux, (1, 0, 2)).reshape(N, H)
    it_tm = jnp.transpose(interval, (1, 0)).reshape(N)
    z_tm = jnp.transpose(input_x, (1, 0, 2)).reshape(N, n_phys)
    u_tm = jnp.transpose(control_data, (1, 0, 2)).reshape(N, -1)
    dt_tm = it_tm.reshape(N, 1)

    x_pair = jnp.broadcast_to(ux_tm[None], (2, N, H))   # both stacks see the same input
    states_z, states_u = [], []
    for blk in params["blocks"]:
        lbr, lbi = zoh_coeffs(it_tm, blk)
        x_pair, sr, si = s5block_pair_forward(x_pair, lbr, lbi, blk, B)
        states_z.append((sr[0], si[0]))
        states_u.append((sr[1], si[1]))

    next_tm = mlp_physics_step(x_pair, params["ssm_to_A"], params["ssm_to_B"],
                               z_tm, u_tm, dt_tm)
    next_pred = jnp.transpose(next_tm.reshape(L, B, n_phys), (1, 0, 2))
    return next_pred, states_z, states_u


# ----------------------------------------------------------------------------
# Deterministic parameter init (shapes per the module's __init__)
# ----------------------------------------------------------------------------
def _normal(key, shape, scale):
    return (scale * jax.random.normal(key, shape)).astype(jnp.float32)


def _init_s5block(key, H, P):
    ks = jax.random.split(key, 8)
    return dict(
        ln1_g=jnp.ones((1, H), jnp.float32), ln1_b=jnp.zeros((1, H), jnp.float32),
        ln2_g=jnp.ones((1, H), jnp.float32), ln2_b=jnp.zeros((1, H), jnp.float32),
        lam_re=-0.5 * jnp.ones((1, P), jnp.float32),
        lam_im=(math.pi * jnp.arange(P, dtype=jnp.float32)).reshape(1, P),
        log_step=jnp.linspace(math.log(1e-3), math.log(1e-1), P).astype(jnp.float32).reshape(1, P),
        Bt_re=_normal(ks[0], (H, P), 1.0 / math.sqrt(H)),
        Bt_im=_normal(ks[1], (H, P), 1.0 / math.sqrt(H)),
        Ct_re=_normal(ks[2], (P, H), 1.0 / math.sqrt(P)),
        Ct_im=_normal(ks[3], (P, H), 1.0 / math.sqrt(P)),
        D=_normal(ks[4], (1, H), 1.0),
        W_v=_normal(ks[5], (H, H), 1.0 / math.sqrt(H)),     # ff_enc value half (glu=True)
        W_g=_normal(ks[6], (H, H), 1.0 / math.sqrt(H)),     # ff_enc gate half
        W_dec=_normal(ks[7], (H, H), 1.0 / math.sqrt(H)),   # ff_dec
    )


def _init_block_pair(key, H, P):
    kA, kB = jax.random.split(key)
    a = _init_s5block(kA, H, P)
    b = _init_s5block(kB, H, P)
    return {k: jnp.stack([a[k], b[k]], axis=0) for k in a}   # leading branch axis = 2


def _init_mlp(key, H, hidden, out_dim):
    k1, k2, k3, k4 = jax.random.split(key, 4)
    return dict(w1=_normal(k1, (H, hidden), 1.0 / math.sqrt(H)),
                b1=_normal(k2, (1, hidden), 0.02),
                w2=_normal(k3, (hidden, out_dim), 1.0 / math.sqrt(hidden)),
                b2=_normal(k4, (1, out_dim), 0.02))


def init_params(key, dim_state=16, state_hidden=128, n_ssmlayers=2):
    # NOTE: assumes n_ssmlayer_A == n_ssmlayer_B (true for the module defaults), so
    # layer i of both stacks can be stacked along the kernel's branch axis.
    keys = jax.random.split(key, n_ssmlayers + 2)
    blocks = [_init_block_pair(keys[i], dim_state, state_hidden) for i in range(n_ssmlayers)]
    return dict(blocks=blocks,
                ssm_to_A=_init_mlp(keys[-2], dim_state, state_hidden, 16),
                ssm_to_B=_init_mlp(keys[-1], dim_state, state_hidden, 4))


# ----------------------------------------------------------------------------
if __name__ == "__main__":
    B, L = 2, 8          # batch, sequence
    H = 16               # latent (u,x) feature width == module's dim_state arg
    P = 128              # S5 state_hidden
    N_PHYS = 4           # pendulum physical state (theta, dtheta, cos, sin)
    M_CTRL = 1           # dim_control

    key = jax.random.PRNGKey(0)
    params = init_params(key, dim_state=H, state_hidden=P, n_ssmlayers=2)

    k1, k2, k3, k4 = jax.random.split(jax.random.PRNGKey(0), 4)
    interval = 0.01 + 0.09 * jax.random.uniform(k1, (B, L), dtype=jnp.float32)
    input_x = jax.random.normal(k2, (B, L, N_PHYS), dtype=jnp.float32)
    input_ux = jax.random.normal(k3, (B, L, H), dtype=jnp.float32)
    control = jax.random.normal(k4, (B, L, M_CTRL), dtype=jnp.float32)

    fwd = jax.jit(physics_constraint_ssm_forward)
    next_pred, next_state_z, next_state_u = fwd(params, interval, input_x, input_ux, control)

    jax.block_until_ready(next_pred)
    assert next_pred.shape == (B, L, N_PHYS)
    print("KERNEL_OK")
</pallas_src>

<mosaic_0001>
module attributes {stable_mosaic.version = 11 : i64} {
  func.func @mlp_physics_kernel(%arg0: memref<2x16x16xf32, #tpu.memory_space<vmem>>, %arg1: memref<16x128xf32, #tpu.memory_space<vmem>>, %arg2: memref<1x128xf32, #tpu.memory_space<vmem>>, %arg3: memref<128x16xf32, #tpu.memory_space<vmem>>, %arg4: memref<1x16xf32, #tpu.memory_space<vmem>>, %arg5: memref<16x128xf32, #tpu.memory_space<vmem>>, %arg6: memref<1x128xf32, #tpu.memory_space<vmem>>, %arg7: memref<128x4xf32, #tpu.memory_space<vmem>>, %arg8: memref<1x4xf32, #tpu.memory_space<vmem>>, %arg9: memref<16x4xf32, #tpu.memory_space<vmem>>, %arg10: memref<16x1xf32, #tpu.memory_space<vmem>>, %arg11: memref<16x1xf32, #tpu.memory_space<vmem>>, %arg12: memref<16x4xf32, #tpu.memory_space<vmem>>) attributes {dimension_semantics = [], scalar_prefetch = 0 : i64, scratch_operands = 0 : i64, tpu.core_type = #tpu.core_type<tc>} {
    %c0 = arith.constant 0 : index
    %c0_0 = arith.constant 0 : index
    %c0_1 = arith.constant 0 : index
    %0 = vector.load %arg0[%c0, %c0_0, %c0_1] : memref<2x16x16xf32, #tpu.memory_space<vmem>>, vector<1x16x16xf32>
    %1 = vector.shape_cast %0 : vector<1x16x16xf32> to vector<16x16xf32>
    %c1 = arith.constant 1 : index
    %c0_2 = arith.constant 0 : index
    %c0_3 = arith.constant 0 : index
    %2 = vector.load %arg0[%c1, %c0_2, %c0_3] : memref<2x16x16xf32, #tpu.memory_space<vmem>>, vector<1x16x16xf32>
    %3 = vector.shape_cast %2 : vector<1x16x16xf32> to vector<16x16xf32>
    %c0_4 = arith.constant 0 : index
    %c0_5 = arith.constant 0 : index
    %4 = vector.load %arg1[%c0_4, %c0_5] : memref<16x128xf32, #tpu.memory_space<vmem>>, vector<16x128xf32>
    %cst = arith.constant dense<0.000000e+00> : vector<16x128xf32>
    %5 = tpu.matmul %1, %4, %cst {dimension_numbers = #tpu.dot_dimension_numbers<[1], [0], [0], [1], [0, 0, 1, 1], [], []>} : vector<16x16xf32>, vector<16x128xf32>, vector<16x128xf32> -> vector<16x128xf32>
    %c0_6 = arith.constant 0 : index
    %c0_7 = arith.constant 0 : index
    %6 = vector.load %arg2[%c0_6, %c0_7] : memref<1x128xf32, #tpu.memory_space<vmem>>, vector<1x128xf32>
    %7 = vector.broadcast %6 : vector<1x128xf32> to vector<16x128xf32>
    %8 = arith.addf %5, %7 : vector<16x128xf32>
    %cst_8 = arith.constant 2.000000e+01 : f32
    %9 = vector.broadcast %cst_8 : f32 to vector<16x128xf32>
    %10 = arith.cmpf ogt, %8, %9 : vector<16x128xf32>
    %cst_9 = arith.constant 2.000000e+01 : f32
    %11 = vector.broadcast %cst_9 : f32 to vector<16x128xf32>
    %12 = arith.minimumf %8, %11 : vector<16x128xf32>
    %13 = math.exp %12 : vector<16x128xf32>
    %cst_10 = arith.constant 1.000000e+00 : f32
    %14 = vector.broadcast %cst_10 : f32 to vector<16x128xf32>
    %15 = arith.addf %14, %13 : vector<16x128xf32>
    %16 = math.log %15 : vector<16x128xf32>
    %17 = arith.select %10, %8, %16 : vector<16x128xi1>, vector<16x128xf32>
    %c0_11 = arith.constant 0 : index
    %c0_12 = arith.constant 0 : index
    %18 = vector.load %arg3[%c0_11, %c0_12] : memref<128x16xf32, #tpu.memory_space<vmem>>, vector<128x16xf32>
    %cst_13 = arith.constant dense<0.000000e+00> : vector<16x16xf32>
    %19 = tpu.matmul %17, %18, %cst_13 {dimension_numbers = #tpu.dot_dimension_numbers<[1], [0], [0], [1], [0, 0, 1, 1], [], []>} : vector<16x128xf32>, vector<128x16xf32>, vector<16x16xf32> -> vector<16x16xf32>
    %c0_14 = arith.constant 0 : index
    %c0_15 = arith.constant 0 : index
    %20 = vector.load %arg4[%c0_14, %c0_15] : memref<1x16xf32, #tpu.memory_space<vmem>>, vector<1x16xf32>
    %21 = vector.broadcast %20 : vector<1x16xf32> to vector<16x16xf32>
    %22 = arith.addf %19, %21 : vector<16x16xf32>
    %c0_16 = arith.constant 0 : index
    %c0_17 = arith.constant 0 : index
    %23 = vector.load %arg5[%c0_16, %c0_17] : memref<16x128xf32, #tpu.memory_space<vmem>>, vector<16x128xf32>
    %cst_18 = arith.constant dense<0.000000e+00> : vector<16x128xf32>
    %24 = tpu.matmul %3, %23, %cst_18 {dimension_numbers = #tpu.dot_dimension_numbers<[1], [0], [0], [1], [0, 0, 1, 1], [], []>} : vector<16x16xf32>, vector<16x128xf32>, vector<16x128xf32> -> vector<16x128xf32>
    %c0_19 = arith.constant 0 : index
    %c0_20 = arith.constant 0 : index
    %25 = vector.load %arg6[%c0_19, %c0_20] : memref<1x128xf32, #tpu.memory_space<vmem>>, vector<1x128xf32>
    %26 = vector.broadcast %25 : vector<1x128xf32> to vector<16x128xf32>
    %27 = arith.addf %24, %26 : vector<16x128xf32>
    %cst_21 = arith.constant 2.000000e+01 : f32
    %28 = vector.broadcast %cst_21 : f32 to vector<16x128xf32>
    %29 = arith.cmpf ogt, %27, %28 : vector<16x128xf32>
    %cst_22 = arith.constant 2.000000e+01 : f32
    %30 = vector.broadcast %cst_22 : f32 to vector<16x128xf32>
    %31 = arith.minimumf %27, %30 : vector<16x128xf32>
    %32 = math.exp %31 : vector<16x128xf32>
    %cst_23 = arith.constant 1.000000e+00 : f32
    %33 = vector.broadcast %cst_23 : f32 to vector<16x128xf32>
    %34 = arith.addf %33, %32 : vector<16x128xf32>
    %35 = math.log %34 : vector<16x128xf32>
    %36 = arith.select %29, %27, %35 : vector<16x128xi1>, vector<16x128xf32>
    %c0_24 = arith.constant 0 : index
    %c0_25 = arith.constant 0 : index
    %37 = vector.load %arg7[%c0_24, %c0_25] : memref<128x4xf32, #tpu.memory_space<vmem>>, vector<128x4xf32>
    %cst_26 = arith.constant dense<0.000000e+00> : vector<16x4xf32>
    %38 = tpu.matmul %36, %37, %cst_26 {dimension_numbers = #tpu.dot_dimension_numbers<[1], [0], [0], [1], [0, 0, 1, 1], [], []>} : vector<16x128xf32>, vector<128x4xf32>, vector<16x4xf32> -> vector<16x4xf32>
    %c0_27 = arith.constant 0 : index
    %c0_28 = arith.constant 0 : index
    %39 = vector.load %arg8[%c0_27, %c0_28] : memref<1x4xf32, #tpu.memory_space<vmem>>, vector<1x4xf32>
    %40 = vector.broadcast %39 : vector<1x4xf32> to vector<16x4xf32>
    %41 = arith.addf %38, %40 : vector<16x4xf32>
    %c0_29 = arith.constant 0 : index
    %c0_30 = arith.constant 0 : index
    %42 = vector.load %arg11[%c0_29, %c0_30] : memref<16x1xf32, #tpu.memory_space<vmem>>, vector<16x1xf32>
    %cst_31 = arith.constant 5.000000e-01 : f32
    %43 = vector.broadcast %cst_31 : f32 to vector<16x1xf32>
    %44 = arith.mulf %43, %42 : vector<16x1xf32>
    %c0_32 = arith.constant 0 : index
    %c0_33 = arith.constant 0 : index
    %45 = vector.load %arg9[%c0_32, %c0_33] : memref<16x4xf32, #tpu.memory_space<vmem>>, vector<16x4xf32>
    %c0_34 = arith.constant 0 : index
    %c0_35 = arith.constant 0 : index
    %46 = vector.load %arg10[%c0_34, %c0_35] : memref<16x1xf32, #tpu.memory_space<vmem>>, vector<16x1xf32>
    %47 = vector.extract_strided_slice %45 {offsets = [0, 1], sizes = [16, 1], strides = [1, 1]} : vector<16x4xf32> to vector<16x1xf32>
    %cst_36 = arith.constant 1.000000e+00 : f32
    %48 = vector.broadcast %cst_36 : f32 to vector<16x1xf32>
    %cst_37 = arith.constant 0.000000e+00 : f32
    %49 = vector.broadcast %cst_37 : f32 to vector<16x1xf32>
    %50 = vector.extract_strided_slice %22 {offsets = [0, 4], sizes = [16, 1], strides = [1, 1]} : vector<16x16xf32> to vector<16x1xf32>
    %51 = vector.extract_strided_slice %22 {offsets = [0, 5], sizes = [16, 1], strides = [1, 1]} : vector<16x16xf32> to vector<16x1xf32>
    %52 = vector.extract_strided_slice %22 {offsets = [0, 6], sizes = [16, 1], strides = [1, 1]} : vector<16x16xf32> to vector<16x1xf32>
    %53 = vector.extract_strided_slice %22 {offsets = [0, 7], sizes = [16, 1], strides = [1, 1]} : vector<16x16xf32> to vector<16x1xf32>
    %cst_38 = arith.constant 0.000000e+00 : f32
    %54 = vector.broadcast %cst_38 : f32 to vector<16x1xf32>
    %55 = arith.subf %54, %47 : vector<16x1xf32>
    %56 = vector.extract_strided_slice %41 {offsets = [0, 1], sizes = [16, 1], strides = [1, 1]} : vector<16x4xf32> to vector<16x1xf32>
    %57 = arith.mulf %44, %49 : vector<16x1xf32>
    %58 = arith.subf %48, %57 : vector<16x1xf32>
    %59 = arith.mulf %44, %48 : vector<16x1xf32>
    %60 = arith.subf %49, %59 : vector<16x1xf32>
    %61 = arith.mulf %44, %49 : vector<16x1xf32>
    %62 = arith.subf %49, %61 : vector<16x1xf32>
    %63 = arith.mulf %44, %49 : vector<16x1xf32>
    %64 = arith.subf %49, %63 : vector<16x1xf32>
    %65 = arith.mulf %44, %50 : vector<16x1xf32>
    %66 = arith.subf %49, %65 : vector<16x1xf32>
    %67 = arith.mulf %44, %51 : vector<16x1xf32>
    %68 = arith.subf %48, %67 : vector<16x1xf32>
    %69 = arith.mulf %44, %52 : vector<16x1xf32>
    %70 = arith.subf %49, %69 : vector<16x1xf32>
    %71 = arith.mulf %44, %53 : vector<16x1xf32>
    %72 = arith.subf %49, %71 : vector<16x1xf32>
    %73 = arith.mulf %44, %49 : vector<16x1xf32>
    %74 = arith.subf %49, %73 : vector<16x1xf32>
    %75 = arith.mulf %44, %49 : vector<16x1xf32>
    %76 = arith.subf %49, %75 : vector<16x1xf32>
    %77 = arith.mulf %44, %49 : vector<16x1xf32>
    %78 = arith.subf %48, %77 : vector<16x1xf32>
    %79 = arith.mulf %44, %47 : vector<16x1xf32>
    %80 = arith.subf %49, %79 : vector<16x1xf32>
    %81 = arith.mulf %44, %49 : vector<16x1xf32>
    %82 = arith.subf %49, %81 : vector<16x1xf32>
    %83 = arith.mulf %44, %49 : vector<16x1xf32>
    %84 = arith.subf %49, %83 : vector<16x1xf32>
    %85 = arith.mulf %44, %55 : vector<16x1xf32>
    %86 = arith.subf %49, %85 : vector<16x1xf32>
    %87 = arith.mulf %44, %49 : vector<16x1xf32>
    %88 = arith.subf %48, %87 : vector<16x1xf32>
    %89 = arith.mulf %44, %49 : vector<16x1xf32>
    %90 = arith.addf %48, %89 : vector<16x1xf32>
    %91 = arith.mulf %44, %48 : vector<16x1xf32>
    %92 = arith.addf %49, %91 : vector<16x1xf32>
    %93 = arith.mulf %44, %49 : vector<16x1xf32>
    %94 = arith.addf %49, %93 : vector<16x1xf32>
    %95 = arith.mulf %44, %49 : vector<16x1xf32>
    %96 = arith.addf %49, %95 : vector<16x1xf32>
    %97 = arith.mulf %44, %50 : vector<16x1xf32>
    %98 = arith.addf %49, %97 : vector<16x1xf32>
    %99 = arith.mulf %44, %51 : vector<16x1xf32>
    %100 = arith.addf %48, %99 : vector<16x1xf32>
    %101 = arith.mulf %44, %52 : vector<16x1xf32>
    %102 = arith.addf %49, %101 : vector<16x1xf32>
    %103 = arith.mulf %44, %53 : vector<16x1xf32>
    %104 = arith.addf %49, %103 : vector<16x1xf32>
    %105 = arith.mulf %44, %49 : vector<16x1xf32>
    %106 = arith.addf %49, %105 : vector<16x1xf32>
    %107 = arith.mulf %44, %49 : vector<16x1xf32>
    %108 = arith.addf %49, %107 : vector<16x1xf32>
    %109 = arith.mulf %44, %49 : vector<16x1xf32>
    %110 = arith.addf %48, %109 : vector<16x1xf32>
    %111 = arith.mulf %44, %47 : vector<16x1xf32>
    %112 = arith.addf %49, %111 : vector<16x1xf32>
    %113 = arith.mulf %44, %49 : vector<16x1xf32>
    %114 = arith.addf %49, %113 : vector<16x1xf32>
    %115 = arith.mulf %44, %49 : vector<16x1xf32>
    %116 = arith.addf %49, %115 : vector<16x1xf32>
    %117 = arith.mulf %44, %55 : vector<16x1xf32>
    %118 = arith.addf %49, %117 : vector<16x1xf32>
    %119 = arith.mulf %44, %49 : vector<16x1xf32>
    %120 = arith.addf %48, %119 : vector<16x1xf32>
    %121 = arith.mulf %42, %56 : vector<16x1xf32>
    %cst_39 = arith.constant 1.000000e+00 : f32
    %122 = vector.broadcast %cst_39 : f32 to vector<16x1xf32>
    %123 = arith.divf %122, %58 : vector<16x1xf32>
    %124 = arith.mulf %60, %123 : vector<16x1xf32>
    %125 = arith.mulf %62, %123 : vector<16x1xf32>
    %126 = arith.mulf %64, %123 : vector<16x1xf32>
    %127 = arith.mulf %90, %123 : vector<16x1xf32>
    %128 = arith.mulf %92, %123 : vector<16x1xf32>
    %129 = arith.mulf %94, %123 : vector<16x1xf32>
    %130 = arith.mulf %96, %123 : vector<16x1xf32>
    %131 = arith.mulf %49, %123 : vector<16x1xf32>
    %132 = arith.mulf %66, %124 : vector<16x1xf32>
    %133 = arith.subf %68, %132 : vector<16x1xf32>
    %134 = arith.mulf %66, %125 : vector<16x1xf32>
    %135 = arith.subf %70, %134 : vector<16x1xf32>
    %136 = arith.mulf %66, %126 : vector<16x1xf32>
    %137 = arith.subf %72, %136 : vector<16x1xf32>
    %138 = arith.mulf %66, %127 : vector<16x1xf32>
    %139 = arith.subf %98, %138 : vector<16x1xf32>
    %140 = arith.mulf %66, %128 : vector<16x1xf32>
    %141 = arith.subf %100, %140 : vector<16x1xf32>
    %142 = arith.mulf %66, %129 : vector<16x1xf32>
    %143 = arith.subf %102, %142 : vector<16x1xf32>
    %144 = arith.mulf %66, %130 : vector<16x1xf32>
    %145 = arith.subf %104, %144 : vector<16x1xf32>
    %146 = arith.mulf %66, %131 : vector<16x1xf32>
    %147 = arith.subf %121, %146 : vector<16x1xf32>
    %148 = arith.mulf %74, %124 : vector<16x1xf32>
    %149 = arith.subf %76, %148 : vector<16x1xf32>
    %150 = arith.mulf %74, %125 : vector<16x1xf32>
    %151 = arith.subf %78, %150 : vector<16x1xf32>
    %152 = arith.mulf %74, %126 : vector<16x1xf32>
    %153 = arith.subf %80, %152 : vector<16x1xf32>
    %154 = arith.mulf %74, %127 : vector<16x1xf32>
    %155 = arith.subf %106, %154 : vector<16x1xf32>
    %156 = arith.mulf %74, %128 : vector<16x1xf32>
    %157 = arith.subf %108, %156 : vector<16x1xf32>
    %158 = arith.mulf %74, %129 : vector<16x1xf32>
    %159 = arith.subf %110, %158 : vector<16x1xf32>
    %160 = arith.mulf %74, %130 : vector<16x1xf32>
    %161 = arith.subf %112, %160 : vector<16x1xf32>
    %162 = arith.mulf %74, %131 : vector<16x1xf32>
    %163 = arith.subf %49, %162 : vector<16x1xf32>
    %164 = arith.mulf %82, %124 : vector<16x1xf32>
    %165 = arith.subf %84, %164 : vector<16x1xf32>
    %166 = arith.mulf %82, %125 : vector<16x1xf32>
    %167 = arith.subf %86, %166 : vector<16x1xf32>
    %168 = arith.mulf %82, %126 : vector<16x1xf32>
    %169 = arith.subf %88, %168 : vector<16x1xf32>
    %170 = arith.mulf %82, %127 : vector<16x1xf32>
    %171 = arith.subf %114, %170 : vector<16x1xf32>
    %172 = arith.mulf %82, %128 : vector<16x1xf32>
    %173 = arith.subf %116, %172 : vector<16x1xf32>
    %174 = arith.mulf %82, %129 : vector<16x1xf32>
    %175 = arith.subf %118, %174 : vector<16x1xf32>
    %176 = arith.mulf %82, %130 : vector<16x1xf32>
    %177 = arith.subf %120, %176 : vector<16x1xf32>
    %178 = arith.mulf %82, %131 : vector<16x1xf32>
    %179 = arith.subf %49, %178 : vector<16x1xf32>
    %cst_40 = arith.constant 1.000000e+00 : f32
    %180 = vector.broadcast %cst_40 : f32 to vector<16x1xf32>
    %181 = arith.divf %180, %133 : vector<16x1xf32>
    %182 = arith.mulf %135, %181 : vector<16x1xf32>
    %183 = arith.mulf %137, %181 : vector<16x1xf32>
    %184 = arith.mulf %139, %181 : vector<16x1xf32>
    %185 = arith.mulf %141, %181 : vector<16x1xf32>
    %186 = arith.mulf %143, %181 : vector<16x1xf32>
    %187 = arith.mulf %145, %181 : vector<16x1xf32>
    %188 = arith.mulf %147, %181 : vector<16x1xf32>
    %189 = arith.mulf %124, %182 : vector<16x1xf32>
    %190 = arith.subf %125, %189 : vector<16x1xf32>
    %191 = arith.mulf %124, %183 : vector<16x1xf32>
    %192 = arith.subf %126, %191 : vector<16x1xf32>
    %193 = arith.mulf %124, %184 : vector<16x1xf32>
    %194 = arith.subf %127, %193 : vector<16x1xf32>
    %195 = arith.mulf %124, %185 : vector<16x1xf32>
    %196 = arith.subf %128, %195 : vector<16x1xf32>
    %197 = arith.mulf %124, %186 : vector<16x1xf32>
    %198 = arith.subf %129, %197 : vector<16x1xf32>
    %199 = arith.mulf %124, %187 : vector<16x1xf32>
    %200 = arith.subf %130, %199 : vector<16x1xf32>
    %201 = arith.mulf %124, %188 : vector<16x1xf32>
    %202 = arith.subf %131, %201 : vector<16x1xf32>
    %203 = arith.mulf %149, %182 : vector<16x1xf32>
    %204 = arith.subf %151, %203 : vector<16x1xf32>
    %205 = arith.mulf %149, %183 : vector<16x1xf32>
    %206 = arith.subf %153, %205 : vector<16x1xf32>
    %207 = arith.mulf %149, %184 : vector<16x1xf32>
    %208 = arith.subf %155, %207 : vector<16x1xf32>
    %209 = arith.mulf %149, %185 : vector<16x1xf32>
    %210 = arith.subf %157, %209 : vector<16x1xf32>
    %211 = arith.mulf %149, %186 : vector<16x1xf32>
    %212 = arith.subf %159, %211 : vector<16x1xf32>
    %213 = arith.mulf %149, %187 : vector<16x1xf32>
    %214 = arith.subf %161, %213 : vector<16x1xf32>
    %215 = arith.mulf %149, %188 : vector<16x1xf32>
    %216 = arith.subf %163, %215 : vector<16x1xf32>
    %217 = arith.mulf %165, %182 : vector<16x1xf32>
    %218 = arith.subf %167, %217 : vector<16x1xf32>
    %219 = arith.mulf %165, %183 : vector<16x1xf32>
    %220 = arith.subf %169, %219 : vector<16x1xf32>
    %221 = arith.mulf %165, %184 : vector<16x1xf32>
    %222 = arith.subf %171, %221 : vector<16x1xf32>
    %223 = arith.mulf %165, %185 : vector<16x1xf32>
    %224 = arith.subf %173, %223 : vector<16x1xf32>
    %225 = arith.mulf %165, %186 : vector<16x1xf32>
    %226 = arith.subf %175, %225 : vector<16x1xf32>
    %227 = arith.mulf %165, %187 : vector<16x1xf32>
    %228 = arith.subf %177, %227 : vector<16x1xf32>
    %229 = arith.mulf %165, %188 : vector<16x1xf32>
    %230 = arith.subf %179, %229 : vector<16x1xf32>
    %cst_41 = arith.constant 1.000000e+00 : f32
    %231 = vector.broadcast %cst_41 : f32 to vector<16x1xf32>
    %232 = arith.divf %231, %204 : vector<16x1xf32>
    %233 = arith.mulf %206, %232 : vector<16x1xf32>
    %234 = arith.mulf %208, %232 : vector<16x1xf32>
    %235 = arith.mulf %210, %232 : vector<16x1xf32>
    %236 = arith.mulf %212, %232 : vector<16x1xf32>
    %237 = arith.mulf %214, %232 : vector<16x1xf32>
    %238 = arith.mulf %216, %232 : vector<16x1xf32>
    %239 = arith.mulf %190, %233 : vector<16x1xf32>
    %240 = arith.subf %192, %239 : vector<16x1xf32>
    %241 = arith.mulf %190, %234 : vector<16x1xf32>
    %242 = arith.subf %194, %241 : vector<16x1xf32>
    %243 = arith.mulf %190, %235 : vector<16x1xf32>
    %244 = arith.subf %196, %243 : vector<16x1xf32>
    %245 = arith.mulf %190, %236 : vector<16x1xf32>
    %246 = arith.subf %198, %245 : vector<16x1xf32>
    %247 = arith.mulf %190, %237 : vector<16x1xf32>
    %248 = arith.subf %200, %247 : vector<16x1xf32>
    %249 = arith.mulf %190, %238 : vector<16x1xf32>
    %250 = arith.subf %202, %249 : vector<16x1xf32>
    %251 = arith.mulf %182, %233 : vector<16x1xf32>
    %252 = arith.subf %183, %251 : vector<16x1xf32>
    %253 = arith.mulf %182, %234 : vector<16x1xf32>
    %254 = arith.subf %184, %253 : vector<16x1xf32>
    %255 = arith.mulf %182, %235 : vector<16x1xf32>
    %256 = arith.subf %185, %255 : vector<16x1xf32>
    %257 = arith.mulf %182, %236 : vector<16x1xf32>
    %258 = arith.subf %186, %257 : vector<16x1xf32>
    %259 = arith.mulf %182, %237 : vector<16x1xf32>
    %260 = arith.subf %187, %259 : vector<16x1xf32>
    %261 = arith.mulf %182, %238 : vector<16x1xf32>
    %262 = arith.subf %188, %261 : vector<16x1xf32>
    %263 = arith.mulf %218, %233 : vector<16x1xf32>
    %264 = arith.subf %220, %263 : vector<16x1xf32>
    %265 = arith.mulf %218, %234 : vector<16x1xf32>
    %266 = arith.subf %222, %265 : vector<16x1xf32>
    %267 = arith.mulf %218, %235 : vector<16x1xf32>
    %268 = arith.subf %224, %267 : vector<16x1xf32>
    %269 = arith.mulf %218, %236 : vector<16x1xf32>
    %270 = arith.subf %226, %269 : vector<16x1xf32>
    %271 = arith.mulf %218, %237 : vector<16x1xf32>
    %272 = arith.subf %228, %271 : vector<16x1xf32>
    %273 = arith.mulf %218, %238 : vector<16x1xf32>
    %274 = arith.subf %230, %273 : vector<16x1xf32>
    %cst_42 = arith.constant 1.000000e+00 : f32
    %275 = vector.broadcast %cst_42 : f32 to vector<16x1xf32>
    %276 = arith.divf %275, %264 : vector<16x1xf32>
    %277 = arith.mulf %266, %276 : vector<16x1xf32>
    %278 = arith.mulf %268, %276 : vector<16x1xf32>
    %279 = arith.mulf %270, %276 : vector<16x1xf32>
    %280 = arith.mulf %272, %276 : vector<16x1xf32>
    %281 = arith.mulf %274, %276 : vector<16x1xf32>
    %282 = arith.mulf %240, %277 : vector<16x1xf32>
    %283 = arith.subf %242, %282 : vector<16x1xf32>
    %284 = arith.mulf %240, %278 : vector<16x1xf32>
    %285 = arith.subf %244, %284 : vector<16x1xf32>
    %286 = arith.mulf %240, %279 : vector<16x1xf32>
    %287 = arith.subf %246, %286 : vector<16x1xf32>
    %288 = arith.mulf %240, %280 : vector<16x1xf32>
    %289 = arith.subf %248, %288 : vector<16x1xf32>
    %290 = arith.mulf %240, %281 : vector<16x1xf32>
    %291 = arith.subf %250, %290 : vector<16x1xf32>
    %292 = arith.mulf %252, %277 : vector<16x1xf32>
    %293 = arith.subf %254, %292 : vector<16x1xf32>
    %294 = arith.mulf %252, %278 : vector<16x1xf32>
    %295 = arith.subf %256, %294 : vector<16x1xf32>
    %296 = arith.mulf %252, %279 : vector<16x1xf32>
    %297 = arith.subf %258, %296 : vector<16x1xf32>
    %298 = arith.mulf %252, %280 : vector<16x1xf32>
    %299 = arith.subf %260, %298 : vector<16x1xf32>
    %300 = arith.mulf %252, %281 : vector<16x1xf32>
    %301 = arith.subf %262, %300 : vector<16x1xf32>
    %302 = arith.mulf %233, %277 : vector<16x1xf32>
    %303 = arith.subf %234, %302 : vector<16x1xf32>
    %304 = arith.mulf %233, %278 : vector<16x1xf32>
    %305 = arith.subf %235, %304 : vector<16x1xf32>
    %306 = arith.mulf %233, %279 : vector<16x1xf32>
    %307 = arith.subf %236, %306 : vector<16x1xf32>
    %308 = arith.mulf %233, %280 : vector<16x1xf32>
    %309 = arith.subf %237, %308 : vector<16x1xf32>
    %310 = arith.mulf %233, %281 : vector<16x1xf32>
    %311 = arith.subf %238, %310 : vector<16x1xf32>
    %312 = tpu.iota {dimensions = array<i32: 1>} : vector<16x4xi32>
    %cst_43 = arith.constant 0.000000e+00 : f32
    %313 = vector.broadcast %cst_43 : f32 to vector<16x4xf32>
    %314 = arith.mulf %291, %46 : vector<16x1xf32>
    %315 = vector.extract_strided_slice %45 {offsets = [0, 0], sizes = [16, 1], strides = [1, 1]} : vector<16x4xf32> to vector<16x1xf32>
    %316 = arith.mulf %283, %315 : vector<16x1xf32>
    %317 = arith.addf %314, %316 : vector<16x1xf32>
    %318 = vector.extract_strided_slice %45 {offsets = [0, 1], sizes = [16, 1], strides = [1, 1]} : vector<16x4xf32> to vector<16x1xf32>
    %319 = arith.mulf %285, %318 : vector<16x1xf32>
    %320 = arith.addf %317, %319 : vector<16x1xf32>
    %321 = vector.extract_strided_slice %45 {offsets = [0, 2], sizes = [16, 1], strides = [1, 1]} : vector<16x4xf32> to vector<16x1xf32>
    %322 = arith.mulf %287, %321 : vector<16x1xf32>
    %323 = arith.addf %320, %322 : vector<16x1xf32>
    %324 = vector.extract_strided_slice %45 {offsets = [0, 3], sizes = [16, 1], strides = [1, 1]} : vector<16x4xf32> to vector<16x1xf32>
    %325 = arith.mulf %289, %324 : vector<16x1xf32>
    %326 = arith.addf %323, %325 : vector<16x1xf32>
    %c0_i32 = arith.constant 0 : i32
    %327 = vector.broadcast %c0_i32 : i32 to vector<16x4xi32>
    %328 = arith.cmpi eq, %312, %327 : vector<16x4xi32>
    %329 = vector.shape_cast %326 : vector<16x1xf32> to vector<16x1xf32>
    %330 = vector.broadcast %329 : vector<16x1xf32> to vector<16x4xf32>
    %331 = arith.select %328, %330, %313 : vector<16x4xi1>, vector<16x4xf32>
    %332 = arith.mulf %301, %46 : vector<16x1xf32>
    %333 = vector.extract_strided_slice %45 {offsets = [0, 0], sizes = [16, 1], strides = [1, 1]} : vector<16x4xf32> to vector<16x1xf32>
    %334 = arith.mulf %293, %333 : vector<16x1xf32>
    %335 = arith.addf %332, %334 : vector<16x1xf32>
    %336 = vector.extract_strided_slice %45 {offsets = [0, 1], sizes = [16, 1], strides = [1, 1]} : vector<16x4xf32> to vector<16x1xf32>
    %337 = arith.mulf %295, %336 : vector<16x1xf32>
    %338 = arith.addf %335, %337 : vector<16x1xf32>
    %339 = vector.extract_strided_slice %45 {offsets = [0, 2], sizes = [16, 1], strides = [1, 1]} : vector<16x4xf32> to vector<16x1xf32>
    %340 = arith.mulf %297, %339 : vector<16x1xf32>
    %341 = arith.addf %338, %340 : vector<16x1xf32>
    %342 = vector.extract_strided_slice %45 {offsets = [0, 3], sizes = [16, 1], strides = [1, 1]} : vector<16x4xf32> to vector<16x1xf32>
    %343 = arith.mulf %299, %342 : vector<16x1xf32>
    %344 = arith.addf %341, %343 : vector<16x1xf32>
    %c1_i32 = arith.constant 1 : i32
    %345 = vector.broadcast %c1_i32 : i32 to vector<16x4xi32>
    %346 = arith.cmpi eq, %312, %345 : vector<16x4xi32>
    %347 = vector.shape_cast %344 : vector<16x1xf32> to vector<16x1xf32>
    %348 = vector.broadcast %347 : vector<16x1xf32> to vector<16x4xf32>
    %349 = arith.select %346, %348, %331 : vector<16x4xi1>, vector<16x4xf32>
    %350 = arith.mulf %311, %46 : vector<16x1xf32>
    %351 = vector.extract_strided_slice %45 {offsets = [0, 0], sizes = [16, 1], strides = [1, 1]} : vector<16x4xf32> to vector<16x1xf32>
    %352 = arith.mulf %303, %351 : vector<16x1xf32>
    %353 = arith.addf %350, %352 : vector<16x1xf32>
    %354 = vector.extract_strided_slice %45 {offsets = [0, 1], sizes = [16, 1], strides = [1, 1]} : vector<16x4xf32> to vector<16x1xf32>
    %355 = arith.mulf %305, %354 : vector<16x1xf32>
    %356 = arith.addf %353, %355 : vector<16x1xf32>
    %357 = vector.extract_strided_slice %45 {offsets = [0, 2], sizes = [16, 1], strides = [1, 1]} : vector<16x4xf32> to vector<16x1xf32>
    %358 = arith.mulf %307, %357 : vector<16x1xf32>
    %359 = arith.addf %356, %358 : vector<16x1xf32>
    %360 = vector.extract_strided_slice %45 {offsets = [0, 3], sizes = [16, 1], strides = [1, 1]} : vector<16x4xf32> to vector<16x1xf32>
    %361 = arith.mulf %309, %360 : vector<16x1xf32>
    %362 = arith.addf %359, %361 : vector<16x1xf32>
    %c2_i32 = arith.constant 2 : i32
    %363 = vector.broadcast %c2_i32 : i32 to vector<16x4xi32>
    %364 = arith.cmpi eq, %312, %363 : vector<16x4xi32>
    %365 = vector.shape_cast %362 : vector<16x1xf32> to vector<16x1xf32>
    %366 = vector.broadcast %365 : vector<16x1xf32> to vector<16x4xf32>
    %367 = arith.select %364, %366, %349 : vector<16x4xi1>, vector<16x4xf32>
    %368 = arith.mulf %281, %46 : vector<16x1xf32>
    %369 = vector.extract_strided_slice %45 {offsets = [0, 0], sizes = [16, 1], strides = [1, 1]} : vector<16x4xf32> to vector<16x1xf32>
    %370 = arith.mulf %277, %369 : vector<16x1xf32>
    %371 = arith.addf %368, %370 : vector<16x1xf32>
    %372 = vector.extract_strided_slice %45 {offsets = [0, 1], sizes = [16, 1], strides = [1, 1]} : vector<16x4xf32> to vector<16x1xf32>
    %373 = arith.mulf %278, %372 : vector<16x1xf32>
    %374 = arith.addf %371, %373 : vector<16x1xf32>
    %375 = vector.extract_strided_slice %45 {offsets = [0, 2], sizes = [16, 1], strides = [1, 1]} : vector<16x4xf32> to vector<16x1xf32>
    %376 = arith.mulf %279, %375 : vector<16x1xf32>
    %377 = arith.addf %374, %376 : vector<16x1xf32>
    %378 = vector.extract_strided_slice %45 {offsets = [0, 3], sizes = [16, 1], strides = [1, 1]} : vector<16x4xf32> to vector<16x1xf32>
    %379 = arith.mulf %280, %378 : vector<16x1xf32>
    %380 = arith.addf %377, %379 : vector<16x1xf32>
    %c3_i32 = arith.constant 3 : i32
    %381 = vector.broadcast %c3_i32 : i32 to vector<16x4xi32>
    %382 = arith.cmpi eq, %312, %381 : vector<16x4xi32>
    %383 = vector.shape_cast %380 : vector<16x1xf32> to vector<16x1xf32>
    %384 = vector.broadcast %383 : vector<16x1xf32> to vector<16x4xf32>
    %385 = arith.select %382, %384, %367 : vector<16x4xi1>, vector<16x4xf32>
    %c0_44 = arith.constant 0 : index
    %c0_45 = arith.constant 0 : index
    %386 = vector.load %arg12[%c0_44, %c0_45] : memref<16x4xf32, #tpu.memory_space<vmem>>, vector<16x4xf32>
    tpu.vector_store %arg12[%c0_44, %c0_45], %385 {strides = array<i32>} : memref<16x4xf32, #tpu.memory_space<vmem>>, vector<16x4xf32>,
    return
  }
}

module attributes {stable_mosaic.version = 11 : i64} {
  func.func @s5block_kernel(%arg0: i32, %arg1: memref<1x16x16xf32, #tpu.memory_space<vmem>>, %arg2: memref<1x1x16xf32, #tpu.memory_space<vmem>>, %arg3: memref<1x1x16xf32, #tpu.memory_space<vmem>>, %arg4: memref<1x16x128xf32, #tpu.memory_space<vmem>>, %arg5: memref<1x16x128xf32, #tpu.memory_space<vmem>>, %arg6: memref<1x1x128xf32, #tpu.memory_space<vmem>>, %arg7: memref<1x1x128xf32, #tpu.memory_space<vmem>>, %arg8: memref<1x16x128xf32, #tpu.memory_space<vmem>>, %arg9: memref<1x16x128xf32, #tpu.memory_space<vmem>>, %arg10: memref<1x128x16xf32, #tpu.memory_space<vmem>>, %arg11: memref<1x128x16xf32, #tpu.memory_space<vmem>>, %arg12: memref<1x1x16xf32, #tpu.memory_space<vmem>>, %arg13: memref<1x1x16xf32, #tpu.memory_space<vmem>>, %arg14: memref<1x1x16xf32, #tpu.memory_space<vmem>>, %arg15: memref<1x16x16xf32, #tpu.memory_space<vmem>>, %arg16: memref<1x16x16xf32, #tpu.memory_space<vmem>>, %arg17: memref<1x16x16xf32, #tpu.memory_space<vmem>>, %arg18: memref<1x16x16xf32, #tpu.memory_space<vmem>>, %arg19: memref<1x2x128xf32, #tpu.memory_space<vmem>>, %arg20: memref<1x2x128xf32, #tpu.memory_space<vmem>>, %arg21: memref<16x128xf32, #tpu.memory_space<vmem>>, %arg22: memref<16x128xf32, #tpu.memory_space<vmem>>) attributes {dimension_semantics = [#tpu.dimension_semantics<parallel>], iteration_bounds = array<i64: 2>, scalar_prefetch = 0 : i64, scratch_operands = 2 : i64, tpu.core_type = #tpu.core_type<tc>, window_params = [{transform_indices = @transform_0, window_bounds = array<i64: 1, 16, 16>}, {transform_indices = @transform_1, window_bounds = array<i64: 1, 1, 16>}, {transform_indices = @transform_2, window_bounds = array<i64: 1, 1, 16>}, {transform_indices = @transform_3, window_bounds = array<i64: 1, 16, 128>}, {transform_indices = @transform_4, window_bounds = array<i64: 1, 16, 128>}, {transform_indices = @transform_5, window_bounds = array<i64: 1, 1, 128>}, {transform_indices = @transform_6, window_bounds = array<i64: 1, 1, 128>}, {transform_indices = @transform_7, window_bounds = array<i64: 1, 16, 128>}, {transform_indices = @transform_8, window_bounds = array<i64: 1, 16, 128>}, {transform_indices = @transform_9, window_bounds = array<i64: 1, 128, 16>}, {transform_indices = @transform_10, window_bounds = array<i64: 1, 128, 16>}, {transform_indices = @transform_11, window_bounds = array<i64: 1, 1, 16>}, {transform_indices = @transform_12, window_bounds = array<i64: 1, 1, 16>}, {transform_indices = @transform_13, window_bounds = array<i64: 1, 1, 16>}, {transform_indices = @transform_14, window_bounds = array<i64: 1, 16, 16>}, {transform_indices = @transform_15, window_bounds = array<i64: 1, 16, 16>}, {transform_indices = @transform_16, window_bounds = array<i64: 1, 16, 16>}, {transform_indices = @transform_17, window_bounds = array<i64: 1, 16, 16>}, {transform_indices = @transform_18, window_bounds = array<i64: 1, 2, 128>}, {transform_indices = @transform_19, window_bounds = array<i64: 1, 2, 128>}]} {
    %c0 = arith.constant 0 : index
    %c0_0 = arith.constant 0 : index
    %c0_1 = arith.constant 0 : index
    %0 = vector.load %arg1[%c0, %c0_0, %c0_1] : memref<1x16x16xf32, #tpu.memory_space<vmem>>, vector<1x16x16xf32>
    %1 = vector.shape_cast %0 : vector<1x16x16xf32> to vector<16x16xf32>
    %c0_2 = arith.constant 0 : index
    %c0_3 = arith.constant 0 : index
    %c0_4 = arith.constant 0 : index
    %2 = vector.load %arg2[%c0_2, %c0_3, %c0_4] : memref<1x1x16xf32, #tpu.memory_space<vmem>>, vector<1x1x16xf32>
    %3 = vector.shape_cast %2 : vector<1x1x16xf32> to vector<1x16xf32>
    %c0_5 = arith.constant 0 : index
    %c0_6 = arith.constant 0 : index
    %c0_7 = arith.constant 0 : index
    %4 = vector.load %arg3[%c0_5, %c0_6, %c0_7] : memref<1x1x16xf32, #tpu.memory_space<vmem>>, vector<1x1x16xf32>
    %5 = vector.shape_cast %4 : vector<1x1x16xf32> to vector<1x16xf32>
    %cst = arith.constant dense<0.000000e+00> : vector<16xf32>
    %6 = vector.multi_reduction <add>, %1, %cst [1] : vector<16x16xf32> to vector<16xf32>
    %7 = vector.shape_cast %6 : vector<16xf32> to vector<16x1xf32>
    %cst_8 = arith.constant 1.600000e+01 : f32
    %8 = vector.broadcast %cst_8 : f32 to vector<16x1xf32>
    %9 = arith.divf %7, %8 : vector<16x1xf32>
    %10 = vector.broadcast %9 : vector<16x1xf32> to vector<16x16xf32>
    %11 = arith.subf %1, %10 : vector<16x16xf32>
    %12 = arith.mulf %11, %11 : vector<16x16xf32>
    %cst_9 = arith.constant dense<0.000000e+00> : vector<16xf32>
    %13 = vector.multi_reduction <add>, %12, %cst_9 [1] : vector<16x16xf32> to vector<16xf32>
    %14 = vector.shape_cast %13 : vector<16xf32> to vector<16x1xf32>
    %cst_10 = arith.constant 1.600000e+01 : f32
    %15 = vector.broadcast %cst_10 : f32 to vector<16x1xf32>
    %16 = arith.divf %14, %15 : vector<16x1xf32>
    %17 = vector.broadcast %9 : vector<16x1xf32> to vector<16x16xf32>
    %18 = arith.subf %1, %17 : vector<16x16xf32>
    %cst_11 = arith.constant 9.99999974E-6 : f32
    %19 = vector.broadcast %cst_11 : f32 to vector<16x1xf32>
    %20 = arith.addf %16, %19 : vector<16x1xf32>
    %21 = math.rsqrt %20 : vector<16x1xf32>
    %22 = vector.broadcast %21 : vector<16x1xf32> to vector<16x16xf32>
    %23 = arith.mulf %18, %22 : vector<16x16xf32>
    %24 = vector.broadcast %3 : vector<1x16xf32> to vector<16x16xf32>
    %25 = arith.mulf %23, %24 : vector<16x16xf32>
    %26 = vector.broadcast %5 : vector<1x16xf32> to vector<16x16xf32>
    %27 = arith.addf %25, %26 : vector<16x16xf32>
    %c0_12 = arith.constant 0 : index
    %c0_13 = arith.constant 0 : index
    %c0_14 = arith.constant 0 : index
    %28 = vector.load %arg8[%c0_12, %c0_13, %c0_14] : memref<1x16x128xf32, #tpu.memory_space<vmem>>, vector<1x16x128xf32>
    %29 = vector.shape_cast %28 : vector<1x16x128xf32> to vector<16x128xf32>
    %cst_15 = arith.constant dense<0.000000e+00> : vector<16x128xf32>
    %30 = tpu.matmul %27, %29, %cst_15 {dimension_numbers = #tpu.dot_dimension_numbers<[1], [0], [0], [1], [0, 0, 1, 1], [], []>} : vector<16x16xf32>, vector<16x128xf32>, vector<16x128xf32> -> vector<16x128xf32>
    %c0_16 = arith.constant 0 : index
    %c0_17 = arith.constant 0 : index
    %c0_18 = arith.constant 0 : index
    %31 = vector.load %arg9[%c0_16, %c0_17, %c0_18] : memref<1x16x128xf32, #tpu.memory_space<vmem>>, vector<1x16x128xf32>
    %32 = vector.shape_cast %31 : vector<1x16x128xf32> to vector<16x128xf32>
    %cst_19 = arith.constant dense<0.000000e+00> : vector<16x128xf32>
    %33 = tpu.matmul %27, %32, %cst_19 {dimension_numbers = #tpu.dot_dimension_numbers<[1], [0], [0], [1], [0, 0, 1, 1], [], []>} : vector<16x16xf32>, vector<16x128xf32>, vector<16x128xf32> -> vector<16x128xf32>
    %c0_20 = arith.constant 0 : index
    %c0_21 = arith.constant 0 : index
    %c0_22 = arith.constant 0 : index
    %34 = vector.load %arg4[%c0_20, %c0_21, %c0_22] : memref<1x16x128xf32, #tpu.memory_space<vmem>>, vector<1x16x128xf32>
    %35 = vector.shape_cast %34 : vector<1x16x128xf32> to vector<16x128xf32>
    %c0_23 = arith.constant 0 : index
    %c0_24 = arith.constant 0 : index
    %c0_25 = arith.constant 0 : index
    %36 = vector.load %arg5[%c0_23, %c0_24, %c0_25] : memref<1x16x128xf32, #tpu.memory_space<vmem>>, vector<1x16x128xf32>
    %37 = vector.shape_cast %36 : vector<1x16x128xf32> to vector<16x128xf32>
    %c0_26 = arith.constant 0 : index
    %c0_27 = arith.constant 0 : index
    %c0_28 = arith.constant 0 : index
    %38 = vector.load %arg6[%c0_26, %c0_27, %c0_28] : memref<1x1x128xf32, #tpu.memory_space<vmem>>, vector<1x1x128xf32>
    %39 = vector.shape_cast %38 : vector<1x1x128xf32> to vector<1x128xf32>
    %c0_29 = arith.constant 0 : index
    %c0_30 = arith.constant 0 : index
    %c0_31 = arith.constant 0 : index
    %40 = vector.load %arg7[%c0_29, %c0_30, %c0_31] : memref<1x1x128xf32, #tpu.memory_space<vmem>>, vector<1x1x128xf32>
    %41 = vector.shape_cast %40 : vector<1x1x128xf32> to vector<1x128xf32>
    %42 = arith.mulf %39, %39 : vector<1x128xf32>
    %43 = arith.mulf %41, %41 : vector<1x128xf32>
    %44 = arith.addf %42, %43 : vector<1x128xf32>
    %cst_32 = arith.constant 1.000000e+00 : f32
    %45 = vector.broadcast %cst_32 : f32 to vector<1x128xf32>
    %46 = arith.divf %45, %44 : vector<1x128xf32>
    %cst_33 = arith.constant 1.000000e+00 : f32
    %47 = vector.broadcast %cst_33 : f32 to vector<16x128xf32>
    %48 = arith.subf %35, %47 : vector<16x128xf32>
    %49 = vector.broadcast %39 : vector<1x128xf32> to vector<16x128xf32>
    %50 = arith.mulf %48, %49 : vector<16x128xf32>
    %51 = vector.broadcast %41 : vector<1x128xf32> to vector<16x128xf32>
    %52 = arith.mulf %37, %51 : vector<16x128xf32>
    %53 = arith.addf %50, %52 : vector<16x128xf32>
    %54 = vector.broadcast %46 : vector<1x128xf32> to vector<16x128xf32>
    %55 = arith.mulf %53, %54 : vector<16x128xf32>
    %56 = vector.broadcast %39 : vector<1x128xf32> to vector<16x128xf32>
    %57 = arith.mulf %37, %56 : vector<16x128xf32>
    %cst_34 = arith.constant 1.000000e+00 : f32
    %58 = vector.broadcast %cst_34 : f32 to vector<16x128xf32>
    %59 = arith.subf %35, %58 : vector<16x128xf32>
    %60 = vector.broadcast %41 : vector<1x128xf32> to vector<16x128xf32>
    %61 = arith.mulf %59, %60 : vector<16x128xf32>
    %62 = arith.subf %57, %61 : vector<16x128xf32>
    %63 = vector.broadcast %46 : vector<1x128xf32> to vector<16x128xf32>
    %64 = arith.mulf %62, %63 : vector<16x128xf32>
    %cst_35 = arith.constant 0.000000e+00 : f32
    %65 = vector.broadcast %cst_35 : f32 to vector<2x128xf32>
    %cst_36 = arith.constant 0.000000e+00 : f32
    %66 = vector.broadcast %cst_36 : f32 to vector<2x128xf32>
    %67 = vector.extract_strided_slice %55 {offsets = [0, 0], sizes = [2, 128], strides = [1, 1]} : vector<16x128xf32> to vector<2x128xf32>
    %68 = vector.extract_strided_slice %30 {offsets = [0, 0], sizes = [2, 128], strides = [1, 1]} : vector<16x128xf32> to vector<2x128xf32>
    %69 = arith.mulf %67, %68 : vector<2x128xf32>
    %70 = vector.extract_strided_slice %64 {offsets = [0, 0], sizes = [2, 128], strides = [1, 1]} : vector<16x128xf32> to vector<2x128xf32>
    %71 = vector.extract_strided_slice %33 {offsets = [0, 0], sizes = [2, 128], strides = [1, 1]} : vector<16x128xf32> to vector<2x128xf32>
    %72 = arith.mulf %70, %71 : vector<2x128xf32>
    %73 = arith.subf %69, %72 : vector<2x128xf32>
    %74 = vector.extract_strided_slice %55 {offsets = [0, 0], sizes = [2, 128], strides = [1, 1]} : vector<16x128xf32> to vector<2x128xf32>
    %75 = vector.extract_strided_slice %33 {offsets = [0, 0], sizes = [2, 128], strides = [1, 1]} : vector<16x128xf32> to vector<2x128xf32>
    %76 = arith.mulf %74, %75 : vector<2x128xf32>
    %77 = vector.extract_strided_slice %64 {offsets = [0, 0], sizes = [2, 128], strides = [1, 1]} : vector<16x128xf32> to vector<2x128xf32>
    %78 = vector.extract_strided_slice %30 {offsets = [0, 0], sizes = [2, 128], strides = [1, 1]} : vector<16x128xf32> to vector<2x128xf32>
    %79 = arith.mulf %77, %78 : vector<2x128xf32>
    %80 = arith.addf %76, %79 : vector<2x128xf32>
    %81 = vector.extract_strided_slice %35 {offsets = [0, 0], sizes = [2, 128], strides = [1, 1]} : vector<16x128xf32> to vector<2x128xf32>
    %82 = arith.mulf %81, %65 : vector<2x128xf32>
    %83 = vector.extract_strided_slice %37 {offsets = [0, 0], sizes = [2, 128], strides = [1, 1]} : vector<16x128xf32> to vector<2x128xf32>
    %84 = arith.mulf %83, %66 : vector<2x128xf32>
    %85 = arith.subf %82, %84 : vector<2x128xf32>
    %86 = arith.addf %85, %73 : vector<2x128xf32>
    %87 = vector.extract_strided_slice %35 {offsets = [0, 0], sizes = [2, 128], strides = [1, 1]} : vector<16x128xf32> to vector<2x128xf32>
    %88 = arith.mulf %87, %66 : vector<2x128xf32>
    %89 = vector.extract_strided_slice %37 {offsets = [0, 0], sizes = [2, 128], strides = [1, 1]} : vector<16x128xf32> to vector<2x128xf32>
    %90 = arith.mulf %89, %65 : vector<2x128xf32>
    %91 = arith.addf %88, %90 : vector<2x128xf32>
    %92 = arith.addf %91, %80 : vector<2x128xf32>
    %c0_37 = arith.constant 0 : index
    %c0_38 = arith.constant 0 : index
    %93 = vector.load %arg21[%c0_37, %c0_38] : memref<16x128xf32, #tpu.memory_space<vmem>>, vector<2x128xf32>
    tpu.vector_store %arg21[%c0_37, %c0_38], %86 {strides = array<i32>} : memref<16x128xf32, #tpu.memory_space<vmem>>, vector<2x128xf32>,
    %c0_39 = arith.constant 0 : index
    %c0_40 = arith.constant 0 : index
    %94 = vector.load %arg22[%c0_39, %c0_40] : memref<16x128xf32, #tpu.memory_space<vmem>>, vector<2x128xf32>
    tpu.vector_store %arg22[%c0_39, %c0_40], %92 {strides = array<i32>} : memref<16x128xf32, #tpu.memory_space<vmem>>, vector<2x128xf32>,
    %95 = vector.extract_strided_slice %55 {offsets = [2, 0], sizes = [2, 128], strides = [1, 1]} : vector<16x128xf32> to vector<2x128xf32>
    %96 = vector.extract_strided_slice %30 {offsets = [2, 0], sizes = [2, 128], strides = [1, 1]} : vector<16x128xf32> to vector<2x128xf32>
    %97 = arith.mulf %95, %96 : vector<2x128xf32>
    %98 = vector.extract_strided_slice %64 {offsets = [2, 0], sizes = [2, 128], strides = [1, 1]} : vector<16x128xf32> to vector<2x128xf32>
    %99 = vector.extract_strided_slice %33 {offsets = [2, 0], sizes = [2, 128], strides = [1, 1]} : vector<16x128xf32> to vector<2x128xf32>
    %100 = arith.mulf %98, %99 : vector<2x128xf32>
    %101 = arith.subf %97, %100 : vector<2x128xf32>
    %102 = vector.extract_strided_slice %55 {offsets = [2, 0], sizes = [2, 128], strides = [1, 1]} : vector<16x128xf32> to vector<2x128xf32>
    %103 = vector.extract_strided_slice %33 {offsets = [2, 0], sizes = [2, 128], strides = [1, 1]} : vector<16x128xf32> to vector<2x128xf32>
    %104 = arith.mulf %102, %103 : vector<2x128xf32>
    %105 = vector.extract_strided_slice %64 {offsets = [2, 0], sizes = [2, 128], strides = [1, 1]} : vector<16x128xf32> to vector<2x128xf32>
    %106 = vector.extract_strided_slice %30 {offsets = [2, 0], sizes = [2, 128], strides = [1, 1]} : vector<16x128xf32> to vector<2x128xf32>
    %107 = arith.mulf %105, %106 : vector<2x128xf32>
    %108 = arith.addf %104, %107 : vector<2x128xf32>
    %109 = vector.extract_strided_slice %35 {offsets = [2, 0], sizes = [2, 128], strides = [1, 1]} : vector<16x128xf32> to vector<2x128xf32>
    %110 = arith.mulf %109, %86 : vector<2x128xf32>
    %111 = vector.extract_strided_slice %37 {offsets = [2, 0], sizes = [2, 128], strides = [1, 1]} : vector<16x128xf32> to vector<2x128xf32>
    %112 = arith.mulf %111, %92 : vector<2x128xf32>
    %113 = arith.subf %110, %112 : vector<2x128xf32>
    %114 = arith.addf %113, %101 : vector<2x128xf32>
    %115 = vector.extract_strided_slice %35 {offsets = [2, 0], sizes = [2, 128], strides = [1, 1]} : vector<16x128xf32> to vector<2x128xf32>
    %116 = arith.mulf %115, %92 : vector<2x128xf32>
    %117 = vector.extract_strided_slice %37 {offsets = [2, 0], sizes = [2, 128], strides = [1, 1]} : vector<16x128xf32> to vector<2x128xf32>
    %118 = arith.mulf %117, %86 : vector<2x128xf32>
    %119 = arith.addf %116, %118 : vector<2x128xf32>
    %120 = arith.addf %119, %108 : vector<2x128xf32>
    %c2 = arith.constant 2 : index
    %c0_41 = arith.constant 0 : index
    %121 = vector.load %arg21[%c2, %c0_41] : memref<16x128xf32, #tpu.memory_space<vmem>>, vector<2x128xf32>
    tpu.vector_store %arg21[%c2, %c0_41], %114 {strides = array<i32>} : memref<16x128xf32, #tpu.memory_space<vmem>>, vector<2x128xf32>,
    %c2_42 = arith.constant 2 : index
    %c0_43 = arith.constant 0 : index
    %122 = vector.load %arg22[%c2_42, %c0_43] : memref<16x128xf32, #tpu.memory_space<vmem>>, vector<2x128xf32>
    tpu.vector_store %arg22[%c2_42, %c0_43], %120 {strides = array<i32>} : memref<16x128xf32, #tpu.memory_space<vmem>>, vector<2x128xf32>,
    %123 = vector.extract_strided_slice %55 {offsets = [4, 0], sizes = [2, 128], strides = [1, 1]} : vector<16x128xf32> to vector<2x128xf32>
    %124 = vector.extract_strided_slice %30 {offsets = [4, 0], sizes = [2, 128], strides = [1, 1]} : vector<16x128xf32> to vector<2x128xf32>
    %125 = arith.mulf %123, %124 : vector<2x128xf32>
    %126 = vector.extract_strided_slice %64 {offsets = [4, 0], sizes = [2, 128], strides = [1, 1]} : vector<16x128xf32> to vector<2x128xf32>
    %127 = vector.extract_strided_slice %33 {offsets = [4, 0], sizes = [2, 128], strides = [1, 1]} : vector<16x128xf32> to vector<2x128xf32>
    %128 = arith.mulf %126, %127 : vector<2x128xf32>
    %129 = arith.subf %125, %128 : vector<2x128xf32>
    %130 = vector.extract_strided_slice %55 {offsets = [4, 0], sizes = [2, 128], strides = [1, 1]} : vector<16x128xf32> to vector<2x128xf32>
    %131 = vector.extract_strided_slice %33 {offsets = [4, 0], sizes = [2, 128], strides = [1, 1]} : vector<16x128xf32> to vector<2x128xf32>
    %132 = arith.mulf %130, %131 : vector<2x128xf32>
    %133 = vector.extract_strided_slice %64 {offsets = [4, 0], sizes = [2, 128], strides = [1, 1]} : vector<16x128xf32> to vector<2x128xf32>
    %134 = vector.extract_strided_slice %30 {offsets = [4, 0], sizes = [2, 128], strides = [1, 1]} : vector<16x128xf32> to vector<2x128xf32>
    %135 = arith.mulf %133, %134 : vector<2x128xf32>
    %136 = arith.addf %132, %135 : vector<2x128xf32>
    %137 = vector.extract_strided_slice %35 {offsets = [4, 0], sizes = [2, 128], strides = [1, 1]} : vector<16x128xf32> to vector<2x128xf32>
    %138 = arith.mulf %137, %114 : vector<2x128xf32>
    %139 = vector.extract_strided_slice %37 {offsets = [4, 0], sizes = [2, 128], strides = [1, 1]} : vector<16x128xf32> to vector<2x128xf32>
    %140 = arith.mulf %139, %120 : vector<2x128xf32>
    %141 = arith.subf %138, %140 : vector<2x128xf32>
    %142 = arith.addf %141, %129 : vector<2x128xf32>
    %143 = vector.extract_strided_slice %35 {offsets = [4, 0], sizes = [2, 128], strides = [1, 1]} : vector<16x128xf32> to vector<2x128xf32>
    %144 = arith.mulf %143, %120 : vector<2x128xf32>
    %145 = vector.extract_strided_slice %37 {offsets = [4, 0], sizes = [2, 128], strides = [1, 1]} : vector<16x128xf32> to vector<2x128xf32>
    %146 = arith.mulf %145, %114 : vector<2x128xf32>
    %147 = arith.addf %144, %146 : vector<2x128xf32>
    %148 = arith.addf %147, %136 : vector<2x128xf32>
    %c4 = arith.constant 4 : index
    %c0_44 = arith.constant 0 : index
    %149 = vector.load %arg21[%c4, %c0_44] : memref<16x128xf32, #tpu.memory_space<vmem>>, vector<2x128xf32>
    tpu.vector_store %arg21[%c4, %c0_44], %142 {strides = array<i32>} : memref<16x128xf32, #tpu.memory_space<vmem>>, vector<2x128xf32>,
    %c4_45 = arith.constant 4 : index
    %c0_46 = arith.constant 0 : index
    %150 = vector.load %arg22[%c4_45, %c0_46] : memref<16x128xf32, #tpu.memory_space<vmem>>, vector<2x128xf32>
    tpu.vector_store %arg22[%c4_45, %c0_46], %148 {strides = array<i32>} : memref<16x128xf32, #tpu.memory_space<vmem>>, vector<2x128xf32>,
    %151 = vector.extract_strided_slice %55 {offsets = [6, 0], sizes = [2, 128], strides = [1, 1]} : vector<16x128xf32> to vector<2x128xf32>
    %152 = vector.extract_strided_slice %30 {offsets = [6, 0], sizes = [2, 128], strides = [1, 1]} : vector<16x128xf32> to vector<2x128xf32>
    %153 = arith.mulf %151, %152 : vector<2x128xf32>
    %154 = vector.extract_strided_slice %64 {offsets = [6, 0], sizes = [2, 128], strides = [1, 1]} : vector<16x128xf32> to vector<2x128xf32>
    %155 = vector.extract_strided_slice %33 {offsets = [6, 0], sizes = [2, 128], strides = [1, 1]} : vector<16x128xf32> to vector<2x128xf32>
    %156 = arith.mulf %154, %155 : vector<2x128xf32>
    %157 = arith.subf %153, %156 : vector<2x128xf32>
    %158 = vector.extract_strided_slice %55 {offsets = [6, 0], sizes = [2, 128], strides = [1, 1]} : vector<16x128xf32> to vector<2x128xf32>
    %159 = vector.extract_strided_slice %33 {offsets = [6, 0], sizes = [2, 128], strides = [1, 1]} : vector<16x128xf32> to vector<2x128xf32>
    %160 = arith.mulf %158, %159 : vector<2x128xf32>
    %161 = vector.extract_strided_slice %64 {offsets = [6, 0], sizes = [2, 128], strides = [1, 1]} : vector<16x128xf32> to vector<2x128xf32>
    %162 = vector.extract_strided_slice %30 {offsets = [6, 0], sizes = [2, 128], strides = [1, 1]} : vector<16x128xf32> to vector<2x128xf32>
    %163 = arith.mulf %161, %162 : vector<2x128xf32>
    %164 = arith.addf %160, %163 : vector<2x128xf32>
    %165 = vector.extract_strided_slice %35 {offsets = [6, 0], sizes = [2, 128], strides = [1, 1]} : vector<16x128xf32> to vector<2x128xf32>
    %166 = arith.mulf %165, %142 : vector<2x128xf32>
    %167 = vector.extract_strided_slice %37 {offsets = [6, 0], sizes = [2, 128], strides = [1, 1]} : vector<16x128xf32> to vector<2x128xf32>
    %168 = arith.mulf %167, %148 : vector<2x128xf32>
    %169 = arith.subf %166, %168 : vector<2x128xf32>
    %170 = arith.addf %169, %157 : vector<2x128xf32>
    %171 = vector.extract_strided_slice %35 {offsets = [6, 0], sizes = [2, 128], strides = [1, 1]} : vector<16x128xf32> to vector<2x128xf32>
    %172 = arith.mulf %171, %148 : vector<2x128xf32>
    %173 = vector.extract_strided_slice %37 {offsets = [6, 0], sizes = [2, 128], strides = [1, 1]} : vector<16x128xf32> to vector<2x128xf32>
    %174 = arith.mulf %173, %142 : vector<2x128xf32>
    %175 = arith.addf %172, %174 : vector<2x128xf32>
    %176 = arith.addf %175, %164 : vector<2x128xf32>
    %c6 = arith.constant 6 : index
    %c0_47 = arith.constant 0 : index
    %177 = vector.load %arg21[%c6, %c0_47] : memref<16x128xf32, #tpu.memory_space<vmem>>, vector<2x128xf32>
    tpu.vector_store %arg21[%c6, %c0_47], %170 {strides = array<i32>} : memref<16x128xf32, #tpu.memory_space<vmem>>, vector<2x128xf32>,
    %c6_48 = arith.constant 6 : index
    %c0_49 = arith.constant 0 : index
    %178 = vector.load %arg22[%c6_48, %c0_49] : memref<16x128xf32, #tpu.memory_space<vmem>>, vector<2x128xf32>
    tpu.vector_store %arg22[%c6_48, %c0_49], %176 {strides = array<i32>} : memref<16x128xf32, #tpu.memory_space<vmem>>, vector<2x128xf32>,
    %179 = vector.extract_strided_slice %55 {offsets = [8, 0], sizes = [2, 128], strides = [1, 1]} : vector<16x128xf32> to vector<2x128xf32>
    %180 = vector.extract_strided_slice %30 {offsets = [8, 0], sizes = [2, 128], strides = [1, 1]} : vector<16x128xf32> to vector<2x128xf32>
    %181 = arith.mulf %179, %180 : vector<2x128xf32>
    %182 = vector.extract_strided_slice %64 {offsets = [8, 0], sizes = [2, 128], strides = [1, 1]} : vector<16x128xf32> to vector<2x128xf32>
    %183 = vector.extract_strided_slice %33 {offsets = [8, 0], sizes = [2, 128], strides = [1, 1]} : vector<16x128xf32> to vector<2x128xf32>
    %184 = arith.mulf %182, %183 : vector<2x128xf32>
    %185 = arith.subf %181, %184 : vector<2x128xf32>
    %186 = vector.extract_strided_slice %55 {offsets = [8, 0], sizes = [2, 128], strides = [1, 1]} : vector<16x128xf32> to vector<2x128xf32>
    %187 = vector.extract_strided_slice %33 {offsets = [8, 0], sizes = [2, 128], strides = [1, 1]} : vector<16x128xf32> to vector<2x128xf32>
    %188 = arith.mulf %186, %187 : vector<2x128xf32>
    %189 = vector.extract_strided_slice %64 {offsets = [8, 0], sizes = [2, 128], strides = [1, 1]} : vector<16x128xf32> to vector<2x128xf32>
    %190 = vector.extract_strided_slice %30 {offsets = [8, 0], sizes = [2, 128], strides = [1, 1]} : vector<16x128xf32> to vector<2x128xf32>
    %191 = arith.mulf %189, %190 : vector<2x128xf32>
    %192 = arith.addf %188, %191 : vector<2x128xf32>
    %193 = vector.extract_strided_slice %35 {offsets = [8, 0], sizes = [2, 128], strides = [1, 1]} : vector<16x128xf32> to vector<2x128xf32>
    %194 = arith.mulf %193, %170 : vector<2x128xf32>
    %195 = vector.extract_strided_slice %37 {offsets = [8, 0], sizes = [2, 128], strides = [1, 1]} : vector<16x128xf32> to vector<2x128xf32>
    %196 = arith.mulf %195, %176 : vector<2x128xf32>
    %197 = arith.subf %194, %196 : vector<2x128xf32>
    %198 = arith.addf %197, %185 : vector<2x128xf32>
    %199 = vector.extract_strided_slice %35 {offsets = [8, 0], sizes = [2, 128], strides = [1, 1]} : vector<16x128xf32> to vector<2x128xf32>
    %200 = arith.mulf %199, %176 : vector<2x128xf32>
    %201 = vector.extract_strided_slice %37 {offsets = [8, 0], sizes = [2, 128], strides = [1, 1]} : vector<16x128xf32> to vector<2x128xf32>
    %202 = arith.mulf %201, %170 : vector<2x128xf32>
    %203 = arith.addf %200, %202 : vector<2x128xf32>
    %204 = arith.addf %203, %192 : vector<2x128xf32>
    %c8 = arith.constant 8 : index
    %c0_50 = arith.constant 0 : index
    %205 = vector.load %arg21[%c8, %c0_50] : memref<16x128xf32, #tpu.memory_space<vmem>>, vector<2x128xf32>
    tpu.vector_store %arg21[%c8, %c0_50], %198 {strides = array<i32>} : memref<16x128xf32, #tpu.memory_space<vmem>>, vector<2x128xf32>,
    %c8_51 = arith.constant 8 : index
    %c0_52 = arith.constant 0 : index
    %206 = vector.load %arg22[%c8_51, %c0_52] : memref<16x128xf32, #tpu.memory_space<vmem>>, vector<2x128xf32>
    tpu.vector_store %arg22[%c8_51, %c0_52], %204 {strides = array<i32>} : memref<16x128xf32, #tpu.memory_space<vmem>>, vector<2x128xf32>,
    %207 = vector.extract_strided_slice %55 {offsets = [10, 0], sizes = [2, 128], strides = [1, 1]} : vector<16x128xf32> to vector<2x128xf32>
    %208 = vector.extract_strided_slice %30 {offsets = [10, 0], sizes = [2, 128], strides = [1, 1]} : vector<16x128xf32> to vector<2x128xf32>
    %209 = arith.mulf %207, %208 : vector<2x128xf32>
    %210 = vector.extract_strided_slice %64 {offsets = [10, 0], sizes = [2, 128], strides = [1, 1]} : vector<16x128xf32> to vector<2x128xf32>
    %211 = vector.extract_strided_slice %33 {offsets = [10, 0], sizes = [2, 128], strides = [1, 1]} : vector<16x128xf32> to vector<2x128xf32>
    %212 = arith.mulf %210, %211 : vector<2x128xf32>
    %213 = arith.subf %209, %212 : vector<2x128xf32>
    %214 = vector.extract_strided_slice %55 {offsets = [10, 0], sizes = [2, 128], strides = [1, 1]} : vector<16x128xf32> to vector<2x128xf32>
    %215 = vector.extract_strided_slice %33 {offsets = [10, 0], sizes = [2, 128], strides = [1, 1]} : vector<16x128xf32> to vector<2x128xf32>
    %216 = arith.mulf %214, %215 : vector<2x128xf32>
    %217 = vector.extract_strided_slice %64 {offsets = [10, 0], sizes = [2, 128], strides = [1, 1]} : vector<16x128xf32> to vector<2x128xf32>
    %218 = vector.extract_strided_slice %30 {offsets = [10, 0], sizes = [2, 128], strides = [1, 1]} : vector<16x128xf32> to vector<2x128xf32>
    %219 = arith.mulf %217, %218 : vector<2x128xf32>
    %220 = arith.addf %216, %219 : vector<2x128xf32>
    %221 = vector.extract_strided_slice %35 {offsets = [10, 0], sizes = [2, 128], strides = [1, 1]} : vector<16x128xf32> to vector<2x128xf32>
    %222 = arith.mulf %221, %198 : vector<2x128xf32>
    %223 = vector.extract_strided_slice %37 {offsets = [10, 0], sizes = [2, 128], strides = [1, 1]} : vector<16x128xf32> to vector<2x128xf32>
    %224 = arith.mulf %223, %204 : vector<2x128xf32>
    %225 = arith.subf %222, %224 : vector<2x128xf32>
    %226 = arith.addf %225, %213 : vector<2x128xf32>
    %227 = vector.extract_strided_slice %35 {offsets = [10, 0], sizes = [2, 128], strides = [1, 1]} : vector<16x128xf32> to vector<2x128xf32>
    %228 = arith.mulf %227, %204 : vector<2x128xf32>
    %229 = vector.extract_strided_slice %37 {offsets = [10, 0], sizes = [2, 128], strides = [1, 1]} : vector<16x128xf32> to vector<2x128xf32>
    %230 = arith.mulf %229, %198 : vector<2x128xf32>
    %231 = arith.addf %228, %230 : vector<2x128xf32>
    %232 = arith.addf %231, %220 : vector<2x128xf32>
    %c10 = arith.constant 10 : index
    %c0_53 = arith.constant 0 : index
    %233 = vector.load %arg21[%c10, %c0_53] : memref<16x128xf32, #tpu.memory_space<vmem>>, vector<2x128xf32>
    tpu.vector_store %arg21[%c10, %c0_53], %226 {strides = array<i32>} : memref<16x128xf32, #tpu.memory_space<vmem>>, vector<2x128xf32>,
    %c10_54 = arith.constant 10 : index
    %c0_55 = arith.constant 0 : index
    %234 = vector.load %arg22[%c10_54, %c0_55] : memref<16x128xf32, #tpu.memory_space<vmem>>, vector<2x128xf32>
    tpu.vector_store %arg22[%c10_54, %c0_55], %232 {strides = array<i32>} : memref<16x128xf32, #tpu.memory_space<vmem>>, vector<2x128xf32>,
    %235 = vector.extract_strided_slice %55 {offsets = [12, 0], sizes = [2, 128], strides = [1, 1]} : vector<16x128xf32> to vector<2x128xf32>
    %236 = vector.extract_strided_slice %30 {offsets = [12, 0], sizes = [2, 128], strides = [1, 1]} : vector<16x128xf32> to vector<2x128xf32>
    %237 = arith.mulf %235, %236 : vector<2x128xf32>
    %238 = vector.extract_strided_slice %64 {offsets = [12, 0], sizes = [2, 128], strides = [1, 1]} : vector<16x128xf32> to vector<2x128xf32>
    %239 = vector.extract_strided_slice %33 {offsets = [12, 0], sizes = [2, 128], strides = [1, 1]} : vector<16x128xf32> to vector<2x128xf32>
    %240 = arith.mulf %238, %239 : vector<2x128xf32>
    %241 = arith.subf %237, %240 : vector<2x128xf32>
    %242 = vector.extract_strided_slice %55 {offsets = [12, 0], sizes = [2, 128], strides = [1, 1]} : vector<16x128xf32> to vector<2x128xf32>
    %243 = vector.extract_strided_slice %33 {offsets = [12, 0], sizes = [2, 128], strides = [1, 1]} : vector<16x128xf32> to vector<2x128xf32>
    %244 = arith.mulf %242, %243 : vector<2x128xf32>
    %245 = vector.extract_strided_slice %64 {offsets = [12, 0], sizes = [2, 128], strides = [1, 1]} : vector<16x128xf32> to vector<2x128xf32>
    %246 = vector.extract_strided_slice %30 {offsets = [12, 0], sizes = [2, 128], strides = [1, 1]} : vector<16x128xf32> to vector<2x128xf32>
    %247 = arith.mulf %245, %246 : vector<2x128xf32>
    %248 = arith.addf %244, %247 : vector<2x128xf32>
    %249 = vector.extract_strided_slice %35 {offsets = [12, 0], sizes = [2, 128], strides = [1, 1]} : vector<16x128xf32> to vector<2x128xf32>
    %250 = arith.mulf %249, %226 : vector<2x128xf32>
    %251 = vector.extract_strided_slice %37 {offsets = [12, 0], sizes = [2, 128], strides = [1, 1]} : vector<16x128xf32> to vector<2x128xf32>
    %252 = arith.mulf %251, %232 : vector<2x128xf32>
    %253 = arith.subf %250, %252 : vector<2x128xf32>
    %254 = arith.addf %253, %241 : vector<2x128xf32>
    %255 = vector.extract_strided_slice %35 {offsets = [12, 0], sizes = [2, 128], strides = [1, 1]} : vector<16x128xf32> to vector<2x128xf32>
    %256 = arith.mulf %255, %232 : vector<2x128xf32>
    %257 = vector.extract_strided_slice %37 {offsets = [12, 0], sizes = [2, 128], strides = [1, 1]} : vector<16x128xf32> to vector<2x128xf32>
    %258 = arith.mulf %257, %226 : vector<2x128xf32>
    %259 = arith.addf %256, %258 : vector<2x128xf32>
    %260 = arith.addf %259, %248 : vector<2x128xf32>
    %c12 = arith.constant 12 : index
    %c0_56 = arith.constant 0 : index
    %261 = vector.load %arg21[%c12, %c0_56] : memref<16x128xf32, #tpu.memory_space<vmem>>, vector<2x128xf32>
    tpu.vector_store %arg21[%c12, %c0_56], %254 {strides = array<i32>} : memref<16x128xf32, #tpu.memory_space<vmem>>, vector<2x128xf32>,
    %c12_57 = arith.constant 12 : index
    %c0_58 = arith.constant 0 : index
    %262 = vector.load %arg22[%c12_57, %c0_58] : memref<16x128xf32, #tpu.memory_space<vmem>>, vector<2x128xf32>
    tpu.vector_store %arg22[%c12_57, %c0_58], %260 {strides = array<i32>} : memref<16x128xf32, #tpu.memory_space<vmem>>, vector<2x128xf32>,
    %263 = vector.extract_strided_slice %55 {offsets = [14, 0], sizes = [2, 128], strides = [1, 1]} : vector<16x128xf32> to vector<2x128xf32>
    %264 = vector.extract_strided_slice %30 {offsets = [14, 0], sizes = [2, 128], strides = [1, 1]} : vector<16x128xf32> to vector<2x128xf32>
    %265 = arith.mulf %263, %264 : vector<2x128xf32>
    %266 = vector.extract_strided_slice %64 {offsets = [14, 0], sizes = [2, 128], strides = [1, 1]} : vector<16x128xf32> to vector<2x128xf32>
    %267 = vector.extract_strided_slice %33 {offsets = [14, 0], sizes = [2, 128], strides = [1, 1]} : vector<16x128xf32> to vector<2x128xf32>
    %268 = arith.mulf %266, %267 : vector<2x128xf32>
    %269 = arith.subf %265, %268 : vector<2x128xf32>
    %270 = vector.extract_strided_slice %55 {offsets = [14, 0], sizes = [2, 128], strides = [1, 1]} : vector<16x128xf32> to vector<2x128xf32>
    %271 = vector.extract_strided_slice %33 {offsets = [14, 0], sizes = [2, 128], strides = [1, 1]} : vector<16x128xf32> to vector<2x128xf32>
    %272 = arith.mulf %270, %271 : vector<2x128xf32>
    %273 = vector.extract_strided_slice %64 {offsets = [14, 0], sizes = [2, 128], strides = [1, 1]} : vector<16x128xf32> to vector<2x128xf32>
    %274 = vector.extract_strided_slice %30 {offsets = [14, 0], sizes = [2, 128], strides = [1, 1]} : vector<16x128xf32> to vector<2x128xf32>
    %275 = arith.mulf %273, %274 : vector<2x128xf32>
    %276 = arith.addf %272, %275 : vector<2x128xf32>
    %277 = vector.extract_strided_slice %35 {offsets = [14, 0], sizes = [2, 128], strides = [1, 1]} : vector<16x128xf32> to vector<2x128xf32>
    %278 = arith.mulf %277, %254 : vector<2x128xf32>
    %279 = vector.extract_strided_slice %37 {offsets = [14, 0], sizes = [2, 128], strides = [1, 1]} : vector<16x128xf32> to vector<2x128xf32>
    %280 = arith.mulf %279, %260 : vector<2x128xf32>
    %281 = arith.subf %278, %280 : vector<2x128xf32>
    %282 = arith.addf %281, %269 : vector<2x128xf32>
    %283 = vector.extract_strided_slice %35 {offsets = [14, 0], sizes = [2, 128], strides = [1, 1]} : vector<16x128xf32> to vector<2x128xf32>
    %284 = arith.mulf %283, %260 : vector<2x128xf32>
    %285 = vector.extract_strided_slice %37 {offsets = [14, 0], sizes = [2, 128], strides = [1, 1]} : vector<16x128xf32> to vector<2x128xf32>
    %286 = arith.mulf %285, %254 : vector<2x128xf32>
    %287 = arith.addf %284, %286 : vector<2x128xf32>
    %288 = arith.addf %287, %276 : vector<2x128xf32>
    %c14 = arith.constant 14 : index
    %c0_59 = arith.constant 0 : index
    %289 = vector.load %arg21[%c14, %c0_59] : memref<16x128xf32, #tpu.memory_space<vmem>>, vector<2x128xf32>
    tpu.vector_store %arg21[%c14, %c0_59], %282 {strides = array<i32>} : memref<16x128xf32, #tpu.memory_space<vmem>>, vector<2x128xf32>,
    %c14_60 = arith.constant 14 : index
    %c0_61 = arith.constant 0 : index
    %290 = vector.load %arg22[%c14_60, %c0_61] : memref<16x128xf32, #tpu.memory_space<vmem>>, vector<2x128xf32>
    tpu.vector_store %arg22[%c14_60, %c0_61], %288 {strides = array<i32>} : memref<16x128xf32, #tpu.memory_space<vmem>>, vector<2x128xf32>,
    %c0_62 = arith.constant 0 : index
    %c0_63 = arith.constant 0 : index
    %c0_64 = arith.constant 0 : index
    %291 = vector.load %arg19[%c0_62, %c0_63, %c0_64] : memref<1x2x128xf32, #tpu.memory_space<vmem>>, vector<1x2x128xf32>
    %292 = vector.shape_cast %291 : vector<1x2x128xf32> to vector<2x128xf32>
    %293 = vector.shape_cast %282 : vector<2x128xf32> to vector<1x2x128xf32>
    tpu.vector_store %arg19[%c0_62, %c0_63, %c0_64], %293 {strides = array<i32>} : memref<1x2x128xf32, #tpu.memory_space<vmem>>, vector<1x2x128xf32>,
    %c0_65 = arith.constant 0 : index
    %c0_66 = arith.constant 0 : index
    %c0_67 = arith.constant 0 : index
    %294 = vector.load %arg20[%c0_65, %c0_66, %c0_67] : memref<1x2x128xf32, #tpu.memory_space<vmem>>, vector<1x2x128xf32>
    %295 = vector.shape_cast %294 : vector<1x2x128xf32> to vector<2x128xf32>
    %296 = vector.shape_cast %288 : vector<2x128xf32> to vector<1x2x128xf32>
    tpu.vector_store %arg20[%c0_65, %c0_66, %c0_67], %296 {strides = array<i32>} : memref<1x2x128xf32, #tpu.memory_space<vmem>>, vector<1x2x128xf32>,
    %c0_68 = arith.constant 0 : index
    %c0_69 = arith.constant 0 : index
    %297 = vector.load %arg21[%c0_68, %c0_69] : memref<16x128xf32, #tpu.memory_space<vmem>>, vector<16x128xf32>
    %c0_70 = arith.constant 0 : index
    %c0_71 = arith.constant 0 : index
    %c0_72 = arith.constant 0 : index
    %298 = vector.load %arg10[%c0_70, %c0_71, %c0_72] : memref<1x128x16xf32, #tpu.memory_space<vmem>>, vector<1x128x16xf32>
    %299 = vector.shape_cast %298 : vector<1x128x16xf32> to vector<128x16xf32>
    %cst_73 = arith.constant dense<0.000000e+00> : vector<16x16xf32>
    %300 = tpu.matmul %297, %299, %cst_73 {dimension_numbers = #tpu.dot_dimension_numbers<[1], [0], [0], [1], [0, 0, 1, 1], [], []>} : vector<16x128xf32>, vector<128x16xf32>, vector<16x16xf32> -> vector<16x16xf32>
    %c0_74 = arith.constant 0 : index
    %c0_75 = arith.constant 0 : index
    %301 = vector.load %arg22[%c0_74, %c0_75] : memref<16x128xf32, #tpu.memory_space<vmem>>, vector<16x128xf32>
    %c0_76 = arith.constant 0 : index
    %c0_77 = arith.constant 0 : index
    %c0_78 = arith.constant 0 : index
    %302 = vector.load %arg11[%c0_76, %c0_77, %c0_78] : memref<1x128x16xf32, #tpu.memory_space<vmem>>, vector<1x128x16xf32>
    %303 = vector.shape_cast %302 : vector<1x128x16xf32> to vector<128x16xf32>
    %cst_79 = arith.constant dense<0.000000e+00> : vector<16x16xf32>
    %304 = tpu.matmul %301, %303, %cst_79 {dimension_numbers = #tpu.dot_dimension_numbers<[1], [0], [0], [1], [0, 0, 1, 1], [], []>} : vector<16x128xf32>, vector<128x16xf32>, vector<16x16xf32> -> vector<16x16xf32>
    %305 = arith.subf %300, %304 : vector<16x16xf32>
    %cst_80 = arith.constant 2.000000e+00 : f32
    %306 = vector.broadcast %cst_80 : f32 to vector<16x16xf32>
    %307 = arith.mulf %306, %305 : vector<16x16xf32>
    %c0_81 = arith.constant 0 : index
    %c0_82 = arith.constant 0 : index
    %c0_83 = arith.constant 0 : index
    %308 = vector.load %arg12[%c0_81, %c0_82, %c0_83] : memref<1x1x16xf32, #tpu.memory_space<vmem>>, vector<1x1x16xf32>
    %309 = vector.shape_cast %308 : vector<1x1x16xf32> to vector<1x16xf32>
    %310 = vector.broadcast %309 : vector<1x16xf32> to vector<16x16xf32>
    %311 = arith.mulf %27, %310 : vector<16x16xf32>
    %312 = arith.addf %307, %311 : vector<16x16xf32>
    %cst_84 = arith.constant 5.000000e-01 : f32
    %313 = vector.broadcast %cst_84 : f32 to vector<16x16xf32>
    %314 = arith.mulf %313, %312 : vector<16x16xf32>
    %cst_85 = arith.constant 0.707106769 : f32
    %315 = vector.broadcast %cst_85 : f32 to vector<16x16xf32>
    %316 = arith.mulf %312, %315 : vector<16x16xf32>
    %cst_86 = arith.constant 0.000000e+00 : f32
    %317 = vector.broadcast %cst_86 : f32 to vector<16x16xf32>
    %318 = arith.cmpf oge, %316, %317 : vector<16x16xf32>
    %cst_87 = arith.constant 1.000000e+00 : f32
    %cst_88 = arith.constant -1.000000e+00 : f32
    %319 = vector.broadcast %cst_87 : f32 to vector<16x16xf32>
    %320 = vector.broadcast %cst_88 : f32 to vector<16x16xf32>
    %321 = arith.select %318, %319, %320 : vector<16x16xi1>, vector<16x16xf32>
    %322 = math.absf %316 : vector<16x16xf32>
    %cst_89 = arith.constant 0.327591091 : f32
    %323 = vector.broadcast %cst_89 : f32 to vector<16x16xf32>
    %324 = arith.mulf %323, %322 : vector<16x16xf32>
    %cst_90 = arith.constant 1.000000e+00 : f32
    %325 = vector.broadcast %cst_90 : f32 to vector<16x16xf32>
    %326 = arith.addf %325, %324 : vector<16x16xf32>
    %cst_91 = arith.constant 1.000000e+00 : f32
    %327 = vector.broadcast %cst_91 : f32 to vector<16x16xf32>
    %328 = arith.divf %327, %326 : vector<16x16xf32>
    %cst_92 = arith.constant 1.06140542 : f32
    %329 = vector.broadcast %cst_92 : f32 to vector<16x16xf32>
    %330 = arith.mulf %329, %328 : vector<16x16xf32>
    %cst_93 = arith.constant -1.45315206 : f32
    %331 = vector.broadcast %cst_93 : f32 to vector<16x16xf32>
    %332 = arith.addf %330, %331 : vector<16x16xf32>
    %333 = arith.mulf %332, %328 : vector<16x16xf32>
    %cst_94 = arith.constant 1.42141378 : f32
    %334 = vector.broadcast %cst_94 : f32 to vector<16x16xf32>
    %335 = arith.addf %333, %334 : vector<16x16xf32>
    %336 = arith.mulf %335, %328 : vector<16x16xf32>
    %cst_95 = arith.constant -0.284496725 : f32
    %337 = vector.broadcast %cst_95 : f32 to vector<16x16xf32>
    %338 = arith.addf %336, %337 : vector<16x16xf32>
    %339 = arith.mulf %338, %328 : vector<16x16xf32>
    %cst_96 = arith.constant 0.254829586 : f32
    %340 = vector.broadcast %cst_96 : f32 to vector<16x16xf32>
    %341 = arith.addf %339, %340 : vector<16x16xf32>
    %342 = arith.mulf %341, %328 : vector<16x16xf32>
    %cst_97 = arith.constant 0.000000e+00 : f32
    %343 = vector.broadcast %cst_97 : f32 to vector<16x16xf32>
    %344 = arith.subf %343, %322 : vector<16x16xf32>
    %345 = arith.mulf %344, %322 : vector<16x16xf32>
    %346 = math.exp %345 : vector<16x16xf32>
    %347 = arith.mulf %342, %346 : vector<16x16xf32>
    %cst_98 = arith.constant 1.000000e+00 : f32
    %348 = vector.broadcast %cst_98 : f32 to vector<16x16xf32>
    %349 = arith.subf %348, %347 : vector<16x16xf32>
    %350 = arith.mulf %321, %349 : vector<16x16xf32>
    %cst_99 = arith.constant 1.000000e+00 : f32
    %351 = vector.broadcast %cst_99 : f32 to vector<16x16xf32>
    %352 = arith.addf %351, %350 : vector<16x16xf32>
    %353 = arith.mulf %314, %352 : vector<16x16xf32>
    %354 = arith.addf %353, %27 : vector<16x16xf32>
    %c0_100 = arith.constant 0 : index
    %c0_101 = arith.constant 0 : index
    %c0_102 = arith.constant 0 : index
    %355 = vector.load %arg13[%c0_100, %c0_101, %c0_102] : memref<1x1x16xf32, #tpu.memory_space<vmem>>, vector<1x1x16xf32>
    %356 = vector.shape_cast %355 : vector<1x1x16xf32> to vector<1x16xf32>
    %c0_103 = arith.constant 0 : index
    %c0_104 = arith.constant 0 : index
    %c0_105 = arith.constant 0 : index
    %357 = vector.load %arg14[%c0_103, %c0_104, %c0_105] : memref<1x1x16xf32, #tpu.memory_space<vmem>>, vector<1x1x16xf32>
    %358 = vector.shape_cast %357 : vector<1x1x16xf32> to vector<1x16xf32>
    %cst_106 = arith.constant dense<0.000000e+00> : vector<16xf32>
    %359 = vector.multi_reduction <add>, %354, %cst_106 [1] : vector<16x16xf32> to vector<16xf32>
    %360 = vector.shape_cast %359 : vector<16xf32> to vector<16x1xf32>
    %cst_107 = arith.constant 1.600000e+01 : f32
    %361 = vector.broadcast %cst_107 : f32 to vector<16x1xf32>
    %362 = arith.divf %360, %361 : vector<16x1xf32>
    %363 = vector.broadcast %362 : vector<16x1xf32> to vector<16x16xf32>
    %364 = arith.subf %354, %363 : vector<16x16xf32>
    %365 = arith.mulf %364, %364 : vector<16x16xf32>
    %cst_108 = arith.constant dense<0.000000e+00> : vector<16xf32>
    %366 = vector.multi_reduction <add>, %365, %cst_108 [1] : vector<16x16xf32> to vector<16xf32>
    %367 = vector.shape_cast %366 : vector<16xf32> to vector<16x1xf32>
    %cst_109 = arith.constant 1.600000e+01 : f32
    %368 = vector.broadcast %cst_109 : f32 to vector<16x1xf32>
    %369 = arith.divf %367, %368 : vector<16x1xf32>
    %370 = vector.broadcast %362 : vector<16x1xf32> to vector<16x16xf32>
    %371 = arith.subf %354, %370 : vector<16x16xf32>
    %cst_110 = arith.constant 9.99999974E-6 : f32
    %372 = vector.broadcast %cst_110 : f32 to vector<16x1xf32>
    %373 = arith.addf %369, %372 : vector<16x1xf32>
    %374 = math.rsqrt %373 : vector<16x1xf32>
    %375 = vector.broadcast %374 : vector<16x1xf32> to vector<16x16xf32>
    %376 = arith.mulf %371, %375 : vector<16x16xf32>
    %377 = vector.broadcast %356 : vector<1x16xf32> to vector<16x16xf32>
    %378 = arith.mulf %376, %377 : vector<16x16xf32>
    %379 = vector.broadcast %358 : vector<1x16xf32> to vector<16x16xf32>
    %380 = arith.addf %378, %379 : vector<16x16xf32>
    %c0_111 = arith.constant 0 : index
    %c0_112 = arith.constant 0 : index
    %c0_113 = arith.constant 0 : index
    %381 = vector.load %arg15[%c0_111, %c0_112, %c0_113] : memref<1x16x16xf32, #tpu.memory_space<vmem>>, vector<1x16x16xf32>
    %382 = vector.shape_cast %381 : vector<1x16x16xf32> to vector<16x16xf32>
    %cst_114 = arith.constant dense<0.000000e+00> : vector<16x16xf32>
    %383 = tpu.matmul %380, %382, %cst_114 {dimension_numbers = #tpu.dot_dimension_numbers<[1], [0], [0], [1], [0, 0, 1, 1], [], []>} : vector<16x16xf32>, vector<16x16xf32>, vector<16x16xf32> -> vector<16x16xf32>
    %c0_115 = arith.constant 0 : index
    %c0_116 = arith.constant 0 : index
    %c0_117 = arith.constant 0 : index
    %384 = vector.load %arg16[%c0_115, %c0_116, %c0_117] : memref<1x16x16xf32, #tpu.memory_space<vmem>>, vector<1x16x16xf32>
    %385 = vector.shape_cast %384 : vector<1x16x16xf32> to vector<16x16xf32>
    %cst_118 = arith.constant dense<0.000000e+00> : vector<16x16xf32>
    %386 = tpu.matmul %380, %385, %cst_118 {dimension_numbers = #tpu.dot_dimension_numbers<[1], [0], [0], [1], [0, 0, 1, 1], [], []>} : vector<16x16xf32>, vector<16x16xf32>, vector<16x16xf32> -> vector<16x16xf32>
    %cst_119 = arith.constant 5.000000e-01 : f32
    %387 = vector.broadcast %cst_119 : f32 to vector<16x16xf32>
    %388 = arith.mulf %387, %386 : vector<16x16xf32>
    %cst_120 = arith.constant 0.707106769 : f32
    %389 = vector.broadcast %cst_120 : f32 to vector<16x16xf32>
    %390 = arith.mulf %386, %389 : vector<16x16xf32>
    %cst_121 = arith.constant 0.000000e+00 : f32
    %391 = vector.broadcast %cst_121 : f32 to vector<16x16xf32>
    %392 = arith.cmpf oge, %390, %391 : vector<16x16xf32>
    %cst_122 = arith.constant 1.000000e+00 : f32
    %cst_123 = arith.constant -1.000000e+00 : f32
    %393 = vector.broadcast %cst_122 : f32 to vector<16x16xf32>
    %394 = vector.broadcast %cst_123 : f32 to vector<16x16xf32>
    %395 = arith.select %392, %393, %394 : vector<16x16xi1>, vector<16x16xf32>
    %396 = math.absf %390 : vector<16x16xf32>
    %cst_124 = arith.constant 0.327591091 : f32
    %397 = vector.broadcast %cst_124 : f32 to vector<16x16xf32>
    %398 = arith.mulf %397, %396 : vector<16x16xf32>
    %cst_125 = arith.constant 1.000000e+00 : f32
    %399 = vector.broadcast %cst_125 : f32 to vector<16x16xf32>
    %400 = arith.addf %399, %398 : vector<16x16xf32>
    %cst_126 = arith.constant 1.000000e+00 : f32
    %401 = vector.broadcast %cst_126 : f32 to vector<16x16xf32>
    %402 = arith.divf %401, %400 : vector<16x16xf32>
    %cst_127 = arith.constant 1.06140542 : f32
    %403 = vector.broadcast %cst_127 : f32 to vector<16x16xf32>
    %404 = arith.mulf %403, %402 : vector<16x16xf32>
    %cst_128 = arith.constant -1.45315206 : f32
    %405 = vector.broadcast %cst_128 : f32 to vector<16x16xf32>
    %406 = arith.addf %404, %405 : vector<16x16xf32>
    %407 = arith.mulf %406, %402 : vector<16x16xf32>
    %cst_129 = arith.constant 1.42141378 : f32
    %408 = vector.broadcast %cst_129 : f32 to vector<16x16xf32>
    %409 = arith.addf %407, %408 : vector<16x16xf32>
    %410 = arith.mulf %409, %402 : vector<16x16xf32>
    %cst_130 = arith.constant -0.284496725 : f32
    %411 = vector.broadcast %cst_130 : f32 to vector<16x16xf32>
    %412 = arith.addf %410, %411 : vector<16x16xf32>
    %413 = arith.mulf %412, %402 : vector<16x16xf32>
    %cst_131 = arith.constant 0.254829586 : f32
    %414 = vector.broadcast %cst_131 : f32 to vector<16x16xf32>
    %415 = arith.addf %413, %414 : vector<16x16xf32>
    %416 = arith.mulf %415, %402 : vector<16x16xf32>
    %cst_132 = arith.constant 0.000000e+00 : f32
    %417 = vector.broadcast %cst_132 : f32 to vector<16x16xf32>
    %418 = arith.subf %417, %396 : vector<16x16xf32>
    %419 = arith.mulf %418, %396 : vector<16x16xf32>
    %420 = math.exp %419 : vector<16x16xf32>
    %421 = arith.mulf %416, %420 : vector<16x16xf32>
    %cst_133 = arith.constant 1.000000e+00 : f32
    %422 = vector.broadcast %cst_133 : f32 to vector<16x16xf32>
    %423 = arith.subf %422, %421 : vector<16x16xf32>
    %424 = arith.mulf %395, %423 : vector<16x16xf32>
    %cst_134 = arith.constant 1.000000e+00 : f32
    %425 = vector.broadcast %cst_134 : f32 to vector<16x16xf32>
    %426 = arith.addf %425, %424 : vector<16x16xf32>
    %427 = arith.mulf %388, %426 : vector<16x16xf32>
    %428 = arith.mulf %383, %427 : vector<16x16xf32>
    %c0_135 = arith.constant 0 : index
    %c0_136 = arith.constant 0 : index
    %c0_137 = arith.constant 0 : index
    %429 = vector.load %arg17[%c0_135, %c0_136, %c0_137] : memref<1x16x16xf32, #tpu.memory_space<vmem>>, vector<1x16x16xf32>
    %430 = vector.shape_cast %429 : vector<1x16x16xf32> to vector<16x16xf32>
    %cst_138 = arith.constant dense<0.000000e+00> : vector<16x16xf32>
    %431 = tpu.matmul %428, %430, %cst_138 {dimension_numbers = #tpu.dot_dimension_numbers<[1], [0], [0], [1], [0, 0, 1, 1], [], []>} : vector<16x16xf32>, vector<16x16xf32>, vector<16x16xf32> -> vector<16x16xf32>
    %432 = arith.addf %431, %380 : vector<16x16xf32>
    %c0_139 = arith.constant 0 : index
    %c0_140 = arith.constant 0 : index
    %c0_141 = arith.constant 0 : index
    %433 = vector.load %arg18[%c0_139, %c0_140, %c0_141] : memref<1x16x16xf32, #tpu.memory_space<vmem>>, vector<1x16x16xf32>
    %434 = vector.shape_cast %433 : vector<1x16x16xf32> to vector<16x16xf32>
    %435 = vector.shape_cast %432 : vector<16x16xf32> to vector<1x16x16xf32>
    tpu.vector_store %arg18[%c0_139, %c0_140, %c0_141], %435 {strides = array<i32>} : memref<1x16x16xf32, #tpu.memory_space<vmem>>, vector<1x16x16xf32>,
    return
  }
  func.func @transform_0(%arg0: i32) -> (i32, i32, i32) {
    %c0_i32 = arith.constant 0 : i32
    %c0_i32_0 = arith.constant 0 : i32
    %c0_i32_1 = arith.constant 0 : i32
    return %arg0, %c0_i32, %c0_i32_0 : i32, i32, i32
  }
  func.func @transform_1(%arg0: i32) -> (i32, i32, i32) {
    %c0_i32 = arith.constant 0 : i32
    %c0_i32_0 = arith.constant 0 : i32
    %c0_i32_1 = arith.constant 0 : i32
    return %arg0, %c0_i32, %c0_i32_0 : i32, i32, i32
  }
  func.func @transform_2(%arg0: i32) -> (i32, i32, i32) {
    %c0_i32 = arith.constant 0 : i32
    %c0_i32_0 = arith.constant 0 : i32
    %c0_i32_1 = arith.constant 0 : i32
    return %arg0, %c0_i32, %c0_i32_0 : i32, i32, i32
  }
  func.func @transform_3(%arg0: i32) -> (i32, i32, i32) {
    %c0_i32 = arith.constant 0 : i32
    %c0_i32_0 = arith.constant 0 : i32
    %c0_i32_1 = arith.constant 0 : i32
    return %arg0, %c0_i32, %c0_i32_0 : i32, i32, i32
  }
  func.func @transform_4(%arg0: i32) -> (i32, i32, i32) {
    %c0_i32 = arith.constant 0 : i32
    %c0_i32_0 = arith.constant 0 : i32
    %c0_i32_1 = arith.constant 0 : i32
    return %arg0, %c0_i32, %c0_i32_0 : i32, i32, i32
  }
  func.func @transform_5(%arg0: i32) -> (i32, i32, i32) {
    %c0_i32 = arith.constant 0 : i32
    %c0_i32_0 = arith.constant 0 : i32
    %c0_i32_1 = arith.constant 0 : i32
    return %arg0, %c0_i32, %c0_i32_0 : i32, i32, i32
  }
  func.func @transform_6(%arg0: i32) -> (i32, i32, i32) {
    %c0_i32 = arith.constant 0 : i32
    %c0_i32_0 = arith.constant 0 : i32
    %c0_i32_1 = arith.constant 0 : i32
    return %arg0, %c0_i32, %c0_i32_0 : i32, i32, i32
  }
  func.func @transform_7(%arg0: i32) -> (i32, i32, i32) {
    %c0_i32 = arith.constant 0 : i32
    %c0_i32_0 = arith.constant 0 : i32
    %c0_i32_1 = arith.constant 0 : i32
    return %arg0, %c0_i32, %c0_i32_0 : i32, i32, i32
  }
  func.func @transform_8(%arg0: i32) -> (i32, i32, i32) {
    %c0_i32 = arith.constant 0 : i32
    %c0_i32_0 = arith.constant 0 : i32
    %c0_i32_1 = arith.constant 0 : i32
    return %arg0, %c0_i32, %c0_i32_0 : i32, i32, i32
  }
  func.func @transform_9(%arg0: i32) -> (i32, i32, i32) {
    %c0_i32 = arith.constant 0 : i32
    %c0_i32_0 = arith.constant 0 : i32
    %c0_i32_1 = arith.constant 0 : i32
    return %arg0, %c0_i32, %c0_i32_0 : i32, i32, i32
  }
  func.func @transform_10(%arg0: i32) -> (i32, i32, i32) {
    %c0_i32 = arith.constant 0 : i32
    %c0_i32_0 = arith.constant 0 : i32
    %c0_i32_1 = arith.constant 0 : i32
    return %arg0, %c0_i32, %c0_i32_0 : i32, i32, i32
  }
  func.func @transform_11(%arg0: i32) -> (i32, i32, i32) {
    %c0_i32 = arith.constant 0 : i32
    %c0_i32_0 = arith.constant 0 : i32
    %c0_i32_1 = arith.constant 0 : i32
    return %arg0, %c0_i32, %c0_i32_0 : i32, i32, i32
  }
  func.func @transform_12(%arg0: i32) -> (i32, i32, i32) {
    %c0_i32 = arith.constant 0 : i32
    %c0_i32_0 = arith.constant 0 : i32
    %c0_i32_1 = arith.constant 0 : i32
    return %arg0, %c0_i32, %c0_i32_0 : i32, i32, i32
  }
  func.func @transform_13(%arg0: i32) -> (i32, i32, i32) {
    %c0_i32 = arith.constant 0 : i32
    %c0_i32_0 = arith.constant 0 : i32
    %c0_i32_1 = arith.constant 0 : i32
    return %arg0, %c0_i32, %c0_i32_0 : i32, i32, i32
  }
  func.func @transform_14(%arg0: i32) -> (i32, i32, i32) {
    %c0_i32 = arith.constant 0 : i32
    %c0_i32_0 = arith.constant 0 : i32
    %c0_i32_1 = arith.constant 0 : i32
    return %arg0, %c0_i32, %c0_i32_0 : i32, i32, i32
  }
  func.func @transform_15(%arg0: i32) -> (i32, i32, i32) {
    %c0_i32 = arith.constant 0 : i32
    %c0_i32_0 = arith.constant 0 : i32
    %c0_i32_1 = arith.constant 0 : i32
    return %arg0, %c0_i32, %c0_i32_0 : i32, i32, i32
  }
  func.func @transform_16(%arg0: i32) -> (i32, i32, i32) {
    %c0_i32 = arith.constant 0 : i32
    %c0_i32_0 = arith.constant 0 : i32
    %c0_i32_1 = arith.constant 0 : i32
    return %arg0, %c0_i32, %c0_i32_0 : i32, i32, i32
  }
  func.func @transform_17(%arg0: i32) -> (i32, i32, i32) {
    %c0_i32 = arith.constant 0 : i32
    %c0_i32_0 = arith.constant 0 : i32
    %c0_i32_1 = arith.constant 0 : i32
    return %arg0, %c0_i32, %c0_i32_0 : i32, i32, i32
  }
  func.func @transform_18(%arg0: i32) -> (i32, i32, i32) {
    %c0_i32 = arith.constant 0 : i32
    %c0_i32_0 = arith.constant 0 : i32
    %c0_i32_1 = arith.constant 0 : i32
    return %arg0, %c0_i32, %c0_i32_0 : i32, i32, i32
  }
  func.func @transform_19(%arg0: i32) -> (i32, i32, i32) {
    %c0_i32 = arith.constant 0 : i32
    %c0_i32_0 = arith.constant 0 : i32
    %c0_i32_1 = arith.constant 0 : i32
    return %arg0, %c0_i32, %c0_i32_0 : i32, i32, i32
  }
}

</mosaic_0001>

<llo_original>
// kernel: mul.35
$region0: #{mul.35}
  %s0 = inlined_call_operand.vmem [shape: f32[8,2], index: 0, kind: input, shape index: {}]
  %s1 = inlined_call_operand.vmem [shape: f32[16], index: 1, kind: output, shape index: {}]
  $region1: #{mul.35} parent=0
    #allocation0 [shape = 'u8[4096]{0}', space=vmem, size = 0x1000, scoped, tag = 'scoped mem for output reshape']
    %v2 = vld [vmem:[%s0] sm:$0x1]
    %vm3 = vcmask 15360
    %4 = vst.msk [vmem:[#allocation0] sm:$0x1] %vm3, %v2
    %s5 = scalar_lea.vmem %s0, 7
    %v6 = vld [vmem:[%s5] sm:$0x1]
    %7 = vrot.lane.b32.xlu0 %v6, 14
    %v8 = vpop.permute.xlu0 %7
    %vm9 = vcmask 130160
    %10 = vst.msk [vmem:[#allocation0] sm:$0x1] %vm9, %v8
    %s11 = scalar_lea.vmem %s0, 6
    %v12 = vld [vmem:[%s11] sm:$0x1]
    %13 = vrot.lane.b32.xlu0 %v12, 12
    %v14 = vpop.permute.xlu0 %13
    %vm15 = vcmask 113760
    %16 = vst.msk [vmem:[#allocation0] sm:$0x1] %vm15, %v14
    %s17 = scalar_lea.vmem %s0, 5
    %v18 = vld [vmem:[%s17] sm:$0x1]
    %19 = vrot.lane.b32.xlu0 %v18, 10
    %v20 = vpop.permute.xlu0 %19
    %vm21 = vcmask 97360
    %22 = vst.msk [vmem:[#allocation0] sm:$0x1] %vm21, %v20
    %s23 = scalar_lea.vmem %s0, 4
    %v24 = vld [vmem:[%s23] sm:$0x1]
    %25 = vrot.lane.b32.xlu0 %v24, 8
    %v26 = vpop.permute.xlu0 %25
    %vm27 = vcmask 80960
    %28 = vst.msk [vmem:[#allocation0] sm:$0x1] %vm27, %v26
    %s29 = scalar_lea.vmem %s0, 3
    %v30 = vld [vmem:[%s29] sm:$0x1]
    %31 = vrot.lane.b32.xlu0 %v30, 6
    %v32 = vpop.permute.xlu0 %31
    %vm33 = vcmask 64560
    %34 = vst.msk [vmem:[#allocation0] sm:$0x1] %vm33, %v32
    %s35 = scalar_lea.vmem %s0, 2
    %v36 = vld [vmem:[%s35] sm:$0x1]
    %37 = vrot.lane.b32.xlu0 %v36, 4
    %v38 = vpop.permute.xlu0 %37
    %vm39 = vcmask 48160
    %40 = vst.msk [vmem:[#allocation0] sm:$0x1] %vm39, %v38
    %s41 = scalar_lea.vmem %s0, 1
    %v42 = vld [vmem:[%s41] sm:$0x1]
    %43 = vrot.lane.b32.xlu0 %v42, 2
    %v44 = vpop.permute.xlu0 %43
    %vm45 = vcmask 31760
    %46 = vst.msk [vmem:[#allocation0] sm:$0x1] %vm45, %v44
    %s48 = sshllo.u32 0, 1
    %v50 = vld [vmem:[#allocation0] sm:%s48]
    %s51 = sshllo.u32 0, 1
    %52 = vst [vmem:[%s1] sm:%s51] %v50

// kernel: physics_constraint_ssm_forward.5
$region0: #{physics_constraint_ssm_forward.5}
  #allocation0 [shape = 'u32[]', space=smem, size = 0x4, offset = 0x4, fixed_abs, tag = 'smem constant byte address 0x4 - core index']
  #allocation1 [shape = 'u32[144,128]{1,0:T(1,128)}', space=vmem, size = 0x12000, scoped, tag = 'internal scratch']
  %s0 = inlined_call_operand.vmem [shape: f32[2,16,16], index: 0, kind: input, shape index: {}]
  %s1 = inlined_call_operand.vmem [shape: f32[16,128], index: 1, kind: input, shape index: {}]
  %s2 = inlined_call_operand.vmem [shape: f32[1,128], index: 2, kind: input, shape index: {}]
  %s3 = inlined_call_operand.vmem [shape: f32[128,16], index: 3, kind: input, shape index: {}]
  %s4 = inlined_call_operand.vmem [shape: f32[1,16], index: 4, kind: input, shape index: {}]
  %s5 = inlined_call_operand.vmem [shape: f32[16,128], index: 5, kind: input, shape index: {}]
  %s6 = inlined_call_operand.vmem [shape: f32[1,128], index: 6, kind: input, shape index: {}]
  %s7 = inlined_call_operand.vmem [shape: f32[128,4], index: 7, kind: input, shape index: {}]
  %s8 = inlined_call_operand.vmem [shape: f32[1,4], index: 8, kind: input, shape index: {}]
  %s9 = inlined_call_operand.vmem [shape: f32[16,4], index: 9, kind: input, shape index: {}]
  %s10 = inlined_call_operand.vmem [shape: f32[16,1], index: 10, kind: input, shape index: {}]
  %s11 = inlined_call_operand.vmem [shape: f32[16,1], index: 11, kind: input, shape index: {}]
  %s12 = inlined_call_operand.vmem [shape: f32[16,4], index: 12, kind: output, shape index: {}]
  %s13 = sld [smem:[#allocation0]]
  $region58: #{physics_constraint_ssm_forward.5} parent=0
    _
  %s15 = ssub.s32 1, %s13
  %s16 = scalar_select 0, %s15, %s13
  // Predicated region
  $region2: #{physics_constraint_ssm_forward.5} parent=0 // pred_check
    _
  $region3: #{physics_constraint_ssm_forward.5} parent=0 // pred_check_branch
    %18 = sbr.rel (0) target = $region5
  $region4: #{physics_constraint_ssm_forward.5} parent=0 // pred_region
    _
  $region5: #{physics_constraint_ssm_forward.5} parent=0 // pred_fallthru
    _
  // Predicated region
  $region6: #{physics_constraint_ssm_forward.5} parent=0 // pred_check
    _
  $region7: #{physics_constraint_ssm_forward.5} parent=0 // pred_check_branch
    %20 = sbr.rel (0) target = $region9
  $region8: #{physics_constraint_ssm_forward.5} parent=0 // pred_region
    _
  $region9: #{physics_constraint_ssm_forward.5} parent=0 // pred_fallthru
    _
  // Predicated region
  $region10: #{physics_constraint_ssm_forward.5} parent=0 // pred_check
    _
  $region11: #{physics_constraint_ssm_forward.5} parent=0 // pred_check_branch
    %22 = sbr.rel (0) target = $region13
  $region12: #{physics_constraint_ssm_forward.5} parent=0 // pred_region
    _
  $region13: #{physics_constraint_ssm_forward.5} parent=0 // pred_fallthru
    _
  // Predicated region
  $region14: #{physics_constraint_ssm_forward.5} parent=0 // pred_check
    _
  $region15: #{physics_constraint_ssm_forward.5} parent=0 // pred_check_branch
    %24 = sbr.rel (0) target = $region17
  $region16: #{physics_constraint_ssm_forward.5} parent=0 // pred_region
    _
  $region17: #{physics_constraint_ssm_forward.5} parent=0 // pred_fallthru
    _
  // Predicated region
  $region18: #{physics_constraint_ssm_forward.5} parent=0 // pred_check
    _
  $region19: #{physics_constraint_ssm_forward.5} parent=0 // pred_check_branch
    %26 = sbr.rel (0) target = $region21
  $region20: #{physics_constraint_ssm_forward.5} parent=0 // pred_region
    _
  $region21: #{physics_constraint_ssm_forward.5} parent=0 // pred_fallthru
    _
  // Predicated region
  $region22: #{physics_constraint_ssm_forward.5} parent=0 // pred_check
    _
  $region23: #{physics_constraint_ssm_forward.5} parent=0 // pred_check_branch
    %28 = sbr.rel (0) target = $region25
  $region24: #{physics_constraint_ssm_forward.5} parent=0 // pred_region
    _
  $region25: #{physics_constraint_ssm_forward.5} parent=0 // pred_fallthru
    _
  // Predicated region
  $region26: #{physics_constraint_ssm_forward.5} parent=0 // pred_check
    _
  $region27: #{physics_constraint_ssm_forward.5} parent=0 // pred_check_branch
    %30 = sbr.rel (0) target = $region29
  $region28: #{physics_constraint_ssm_forward.5} parent=0 // pred_region
    _
  $region29: #{physics_constraint_ssm_forward.5} parent=0 // pred_fallthru
    _
  // Predicated region
  $region30: #{physics_constraint_ssm_forward.5} parent=0 // pred_check
    _
  $region31: #{physics_constraint_ssm_forward.5} parent=0 // pred_check_branch
    %32 = sbr.rel (0) target = $region33
  $region32: #{physics_constraint_ssm_forward.5} parent=0 // pred_region
    _
  $region33: #{physics_constraint_ssm_forward.5} parent=0 // pred_fallthru
    _
  // Predicated region
  $region34: #{physics_constraint_ssm_forward.5} parent=0 // pred_check
    _
  $region35: #{physics_constraint_ssm_forward.5} parent=0 // pred_check_branch
    %34 = sbr.rel (0) target = $region37
  $region36: #{physics_constraint_ssm_forward.5} parent=0 // pred_region
    _
  $region37: #{physics_constraint_ssm_forward.5} parent=0 // pred_fallthru
    _
  // Predicated region
  $region38: #{physics_constraint_ssm_forward.5} parent=0 // pred_check
    _
  $region39: #{physics_constraint_ssm_forward.5} parent=0 // pred_check_branch
    %36 = sbr.rel (0) target = $region41
  $region40: #{physics_constraint_ssm_forward.5} parent=0 // pred_region
    _
  $region41: #{physics_constraint_ssm_forward.5} parent=0 // pred_fallthru
    _
  // Predicated region
  $region42: #{physics_constraint_ssm_forward.5} parent=0 // pred_check
    _
  $region43: #{physics_constraint_ssm_forward.5} parent=0 // pred_check_branch
    %38 = sbr.rel (0) target = $region45
  $region44: #{physics_constraint_ssm_forward.5} parent=0 // pred_region
    _
  $region45: #{physics_constraint_ssm_forward.5} parent=0 // pred_fallthru
    _
  // Predicated region
  $region46: #{physics_constraint_ssm_forward.5} parent=0 // pred_check
    _
  $region47: #{physics_constraint_ssm_forward.5} parent=0 // pred_check_branch
    %40 = sbr.rel (0) target = $region49
  $region48: #{physics_constraint_ssm_forward.5} parent=0 // pred_region
    _
  $region49: #{physics_constraint_ssm_forward.5} parent=0 // pred_fallthru
    _
  %v41 = vld [vmem:[%s0] sm:$0xff]
  %v42 = vld [vmem:[%s0 + $0x8] sm:$0xff]
  %s43 = scalar_lea.vmem %s0, 16
  %v44 = vld [vmem:[%s43] sm:$0xff]
  %v45 = vld [vmem:[%s43 + $0x8] sm:$0xff]
  %v46 = vld [vmem:[%s1] sm:$0xff]
  %v47 = vld [vmem:[%s1 + $0x8] sm:$0xff]
  %v48 = vld [vmem:[%s2] sm:$0x1]
  %v50 = vlaneseq
  %v51 = vshrl.u32 %v50, 7
  %v52 = vsub.s32 0, %v51
  %v53 = vrot.slane %v48, %v52
  %vm55 = vcmask 130048
  %v57 = vsel %vm55, %v41, 0
  %v60 = vsel %vm55, %v42, 0
  %62 = vmatprep.subr.mxu0 0.0
  %63 = vmatpush1.msra.mxu0 %v46
  %64 = vmatprep.subr.mxu0 0.0
  %65 = vmatpush1.msra.mxu0 %v47
  %66 = vmatprep.subr.mxu0 0.0
  %67 = vmatpush1.msra.mxu0 0.0
  %68 = vmatprep.subr.mxu0 0.0
  %69 = vmatpush1.msra.mxu0 0.0
  %70 = vmatprep.subr.mxu0 0.0
  %71 = vmatpush1.msra.mxu0 0.0
  %72 = vmatprep.subr.mxu0 0.0
  %73 = vmatpush1.msra.mxu0 0.0
  %74 = vmatprep.subr.mxu0 0.0
  %75 = vmatpush1.msra.mxu0 0.0
  %76 = vmatprep.subr.mxu0 0.0
  %77 = vmatpush1.msra.mxu0 0.0
  %78 = vmatprep.subr.mxu0 0.0
  %79 = vmatpush1.msra.mxu0 0.0
  %80 = vmatprep.subr.mxu0 0.0
  %81 = vmatpush1.msra.mxu0 0.0
  %82 = vmatprep.subr.mxu0 0.0
  %83 = vmatpush1.msra.mxu0 0.0
  %84 = vmatprep.subr.mxu0 0.0
  %85 = vmatpush1.msra.mxu0 0.0
  %86 = vmatprep.subr.mxu0 0.0
  %87 = vmatpush1.msra.mxu0 0.0
  %88 = vmatprep.subr.mxu0 0.0
  %89 = vmatpush1.msra.mxu0 0.0
  %90 = vmatprep.subr.mxu0 0.0
  %91 = vmatpush1.msra.mxu0 0.0
  %92 = vmatprep.subr.mxu0 0.0
  %93 = vmatpush1.msra.mxu0 0.0
  %94 = vmatprep.subr.mxu0 0.0
  %95 = vmatpush1.msra.mxu0 0.0
  %96 = vmatprep.subr.mxu0 0.0
  %97 = vmatpush1.msra.mxu0 0.0
  %98 = vmatprep.subr.mxu0 0.0
  %99 = vmatpush1.msra.mxu0 0.0
  %100 = vmatprep.subr.mxu0 0.0
  %101 = vmatpush1.msra.mxu0 0.0
  %102 = vmatprep.subr.mxu0 0.0
  %103 = vmatpush1.msra.mxu0 0.0
  %104 = vmatprep.subr.mxu0 0.0
  %105 = vmatpush1.msra.mxu0 0.0
  %106 = vmatprep.subr.mxu0 0.0
  %107 = vmatpush1.msra.mxu0 0.0
  %108 = vmatprep.subr.mxu0 0.0
  %109 = vmatpush1.msra.mxu0 0.0
  %110 = vmatprep.subr.mxu0 0.0
  %111 = vmatpush1.msra.mxu0 0.0
  %112 = vmatprep.subr.mxu0 0.0
  %113 = vmatpush1.msra.mxu0 0.0
  %114 = vmatprep.subr.mxu0 0.0
  %115 = vmatpush1.msra.mxu0 0.0
  %116 = vmatprep.subr.mxu0 0.0
  %117 = vmatpush1.msra.mxu0 0.0
  %118 = vmatprep.subr.mxu0 0.0
  %119 = vmatpush1.msra.mxu0 0.0
  %120 = vmatprep.subr.mxu0 0.0
  %121 = vmatpush1.msra.mxu0 0.0
  %122 = vmatprep.subr.mxu0 0.0
  %123 = vmatpush1.msra.mxu0 0.0
  %124 = vmatprep.subr.mxu0 0.0
  %125 = vmatpush1.msra.mxu0 0.0
  %126 = vmatprep.mubr.f32.mxu0 0.0
  %127 = vmatmul.mubr.f32.gmra.mrb[0].mxu0 %v57
  %v128 = vpop.f32.mrb[0].mxu0
  %v129 = vadd.f32 %v53, %v128
  %v130 = vpop.f32.mrb[0].mxu0
  %131 = vmatprep.mubr.f32.mxu0 0.0
  %132 = vmatmul.mubr.f32.gmra.mrb[0].mxu0 %v60
  %v133 = vpop.f32.mrb[0].mxu0
  %v134 = vadd.f32 %v53, %v133
  %v135 = vpop.f32.mrb[0].mxu0
  %136 = vdwg.mxu0
  %vm137 = vcmp.gt.f32.partialorder %v129, 20.0
  %vm138 = vcmp.gt.f32.partialorder %v134, 20.0
  %v139 = vmin.f32 %v129, 20.0
  %v140 = vmin.f32 %v134, 20.0
  %v141 = vmul.f32 %v139, 1.442695
  %v142 = vpow.pop %v141
  %v143 = vmul.f32 %v140, 1.442695
  %v144 = vpow.pop %v143
  %v145 = vadd.f32 %v142, 1.0
  %v146 = vadd.f32 %v144, 1.0
  %v147 = vlog2.pop %v145
  %v148 = vmul.f32 %v147, 0.6931472
  %v149 = vlog2.pop %v146
  %v150 = vmul.f32 %v149, 0.6931472
  %v151 = vsel %vm137, %v129, %v148
  %v152 = vsel %vm138, %v134, %v150
  %v153 = vld [vmem:[%s3] sm:$0xff]
  %v154 = vld [vmem:[%s3 + $0x8] sm:$0xff]
  %v155 = vld [vmem:[%s3 + $0x10] sm:$0xff]
  %v156 = vld [vmem:[%s3 + $0x18] sm:$0xff]
  %v157 = vld [vmem:[%s3 + $0x20] sm:$0xff]
  %v158 = vld [vmem:[%s3 + $0x28] sm:$0xff]
  %v159 = vld [vmem:[%s3 + $0x30] sm:$0xff]
  %v160 = vld [vmem:[%s3 + $0x38] sm:$0xff]
  %v161 = vld [vmem:[%s3 + $0x40] sm:$0xff]
  %v162 = vld [vmem:[%s3 + $0x48] sm:$0xff]
  %v163 = vld [vmem:[%s3 + $0x50] sm:$0xff]
  %v164 = vld [vmem:[%s3 + $0x58] sm:$0xff]
  %v165 = vld [vmem:[%s3 + $0x60] sm:$0xff]
  %v166 = vld [vmem:[%s3 + $0x68] sm:$0xff]
  %v167 = vld [vmem:[%s3 + $0x70] sm:$0xff]
  %v168 = vld [vmem:[%s3 + $0x78] sm:$0xff]
  %v169 = vld [vmem:[%s4] sm:$0x1]
  %v171 = vlaneseq
  %v172 = vshrl.u32 %v171, 7
  %v173 = vsub.s32 0, %v172
  %v174 = vrot.slane %v169, %v173
  %176 = vmatprep.subr.mxu0 0.0
  %177 = vmatpush1.msra.mxu0 %v153
  %178 = vmatprep.subr.mxu0 0.0
  %179 = vmatpush1.msra.mxu0 %v154
  %180 = vmatprep.subr.mxu0 0.0
  %181 = vmatpush1.msra.mxu0 %v155
  %182 = vmatprep.subr.mxu0 0.0
  %183 = vmatpush1.msra.mxu0 %v156
  %184 = vmatprep.subr.mxu0 0.0
  %185 = vmatpush1.msra.mxu0 %v157
  %186 = vmatprep.subr.mxu0 0.0
  %187 = vmatpush1.msra.mxu0 %v158
  %188 = vmatprep.subr.mxu0 0.0
  %189 = vmatpush1.msra.mxu0 %v159
  %190 = vmatprep.subr.mxu0 0.0
  %191 = vmatpush1.msra.mxu0 %v160
  %192 = vmatprep.subr.mxu0 0.0
  %193 = vmatpush1.msra.mxu0 %v161
  %194 = vmatprep.subr.mxu0 0.0
  %195 = vmatpush1.msra.mxu0 %v162
  %196 = vmatprep.subr.mxu0 0.0
  %197 = vmatpush1.msra.mxu0 %v163
  %198 = vmatprep.subr.mxu0 0.0
  %199 = vmatpush1.msra.mxu0 %v164
  %200 = vmatprep.subr.mxu0 0.0
  %201 = vmatpush1.msra.mxu0 %v165
  %202 = vmatprep.subr.mxu0 0.0
  %203 = vmatpush1.msra.mxu0 %v166
  %204 = vmatprep.subr.mxu0 0.0
  %205 = vmatpush1.msra.mxu0 %v167
  %206 = vmatprep.subr.mxu0 0.0
  %207 = vmatpush1.msra.mxu0 %v168
  %208 = vmatprep.subr.mxu0 0.0
  %209 = vmatpush1.msra.mxu0 0.0
  %210 = vmatprep.subr.mxu0 0.0
  %211 = vmatpush1.msra.mxu0 0.0
  %212 = vmatprep.subr.mxu0 0.0
  %213 = vmatpush1.msra.mxu0 0.0
  %214 = vmatprep.subr.mxu0 0.0
  %215 = vmatpush1.msra.mxu0 0.0
  %216 = vmatprep.subr.mxu0 0.0
  %217 = vmatpush1.msra.mxu0 0.0
  %218 = vmatprep.subr.mxu0 0.0
  %219 = vmatpush1.msra.mxu0 0.0
  %220 = vmatprep.subr.mxu0 0.0
  %221 = vmatpush1.msra.mxu0 0.0
  %222 = vmatprep.subr.mxu0 0.0
  %223 = vmatpush1.msra.mxu0 0.0
  %224 = vmatprep.subr.mxu0 0.0
  %225 = vmatpush1.msra.mxu0 0.0
  %226 = vmatprep.subr.mxu0 0.0
  %227 = vmatpush1.msra.mxu0 0.0
  %228 = vmatprep.subr.mxu0 0.0
  %229 = vmatpush1.msra.mxu0 0.0
  %230 = vmatprep.subr.mxu0 0.0
  %231 = vmatpush1.msra.mxu0 0.0
  %232 = vmatprep.subr.mxu0 0.0
  %233 = vmatpush1.msra.mxu0 0.0
  %234 = vmatprep.subr.mxu0 0.0
  %235 = vmatpush1.msra.mxu0 0.0
  %236 = vmatprep.subr.mxu0 0.0
  %237 = vmatpush1.msra.mxu0 0.0
  %238 = vmatprep.subr.mxu0 0.0
  %239 = vmatpush1.msra.mxu0 0.0
  %240 = vmatprep.mubr.f32.mxu0 0.0
  %241 = vmatmul.mubr.f32.gmra.mrb[0].mxu0 %v151
  %v242 = vpop.f32.mrb[0].mxu0
  %v243 = vadd.f32 %v174, %v242
  %v244 = vpop.f32.mrb[0].mxu0
  %245 = vmatprep.mubr.f32.mxu0 0.0
  %246 = vmatmul.mubr.f32.gmra.mrb[0].mxu0 %v152
  %v247 = vpop.f32.mrb[0].mxu0
  %v248 = vadd.f32 %v174, %v247
  %v249 = vpop.f32.mrb[0].mxu0
  %250 = vdwg.mxu0
  %v251 = vld [vmem:[%s5] sm:$0xff]
  %v252 = vld [vmem:[%s5 + $0x8] sm:$0xff]
  %v253 = vld [vmem:[%s6] sm:$0x1]
  %v255 = vlaneseq
  %v256 = vshrl.u32 %v255, 7
  %v257 = vsub.s32 0, %v256
  %v258 = vrot.slane %v253, %v257
  %v261 = vsel %vm55, %v44, 0
  %v264 = vsel %vm55, %v45, 0
  %266 = vmatprep.subr.mxu0 0.0
  %267 = vmatpush1.msra.mxu0 %v251
  %268 = vmatprep.subr.mxu0 0.0
  %269 = vmatpush1.msra.mxu0 %v252
  %270 = vmatprep.subr.mxu0 0.0
  %271 = vmatpush1.msra.mxu0 0.0
  %272 = vmatprep.subr.mxu0 0.0
  %273 = vmatpush1.msra.mxu0 0.0
  %274 = vmatprep.subr.mxu0 0.0
  %275 = vmatpush1.msra.mxu0 0.0
  %276 = vmatprep.subr.mxu0 0.0
  %277 = vmatpush1.msra.mxu0 0.0
  %278 = vmatprep.subr.mxu0 0.0
  %279 = vmatpush1.msra.mxu0 0.0
  %280 = vmatprep.subr.mxu0 0.0
  %281 = vmatpush1.msra.mxu0 0.0
  %282 = vmatprep.subr.mxu0 0.0
  %283 = vmatpush1.msra.mxu0 0.0
  %284 = vmatprep.subr.mxu0 0.0
  %285 = vmatpush1.msra.mxu0 0.0
  %286 = vmatprep.subr.mxu0 0.0
  %287 = vmatpush1.msra.mxu0 0.0
  %288 = vmatprep.subr.mxu0 0.0
  %289 = vmatpush1.msra.mxu0 0.0
  %290 = vmatprep.subr.mxu0 0.0
  %291 = vmatpush1.msra.mxu0 0.0
  %292 = vmatprep.subr.mxu0 0.0
  %293 = vmatpush1.msra.mxu0 0.0
  %294 = vmatprep.subr.mxu0 0.0
  %295 = vmatpush1.msra.mxu0 0.0
  %296 = vmatprep.subr.mxu0 0.0
  %297 = vmatpush1.msra.mxu0 0.0
  %298 = vmatprep.subr.mxu0 0.0
  %299 = vmatpush1.msra.mxu0 0.0
  %300 = vmatprep.subr.mxu0 0.0
  %301 = vmatpush1.msra.mxu0 0.0
  %302 = vmatprep.subr.mxu0 0.0
  %303 = vmatpush1.msra.mxu0 0.0
  %304 = vmatprep.subr.mxu0 0.0
  %305 = vmatpush1.msra.mxu0 0.0
  %306 = vmatprep.subr.mxu0 0.0
  %307 = vmatpush1.msra.mxu0 0.0
  %308 = vmatprep.subr.mxu0 0.0
  %309 = vmatpush1.msra.mxu0 0.0
  %310 = vmatprep.subr.mxu0 0.0
  %311 = vmatpush1.msra.mxu0 0.0
  %312 = vmatprep.subr.mxu0 0.0
  %313 = vmatpush1.msra.mxu0 0.0
  %314 = vmatprep.subr.mxu0 0.0
  %315 = vmatpush1.msra.mxu0 0.0
  %316 = vmatprep.subr.mxu0 0.0
  %317 = vmatpush1.msra.mxu0 0.0
  %318 = vmatprep.subr.mxu0 0.0
  %319 = vmatpush1.msra.mxu0 0.0
  %320 = vmatprep.subr.mxu0 0.0
  %321 = vmatpush1.msra.mxu0 0.0
  %322 = vmatprep.subr.mxu0 0.0
  %323 = vmatpush1.msra.mxu0 0.0
  %324 = vmatprep.subr.mxu0 0.0
  %325 = vmatpush1.msra.mxu0 0.0
  %326 = vmatprep.subr.mxu0 0.0
  %327 = vmatpush1.msra.mxu0 0.0
  %328 = vmatprep.subr.mxu0 0.0
  %329 = vmatpush1.msra.mxu0 0.0
  %330 = vmatprep.mubr.f32.mxu0 0.0
  %331 = vmatmul.mubr.f32.gmra.mrb[0].mxu0 %v261
  %v332 = vpop.f32.mrb[0].mxu0
  %v333 = vadd.f32 %v258, %v332
  %v334 = vpop.f32.mrb[0].mxu0
  %335 = vmatprep.mubr.f32.mxu0 0.0
  %336 = vmatmul.mubr.f32.gmra.mrb[0].mxu0 %v264
  %v337 = vpop.f32.mrb[0].mxu0
  %v338 = vadd.f32 %v258, %v337
  %v339 = vpop.f32.mrb[0].mxu0
  %340 = vdwg.mxu0
  %vm341 = vcmp.gt.f32.partialorder %v333, 20.0
  %vm342 = vcmp.gt.f32.partialorder %v338, 20.0
  %v343 = vmin.f32 %v333, 20.0
  %v344 = vmin.f32 %v338, 20.0
  %v345 = vmul.f32 %v343, 1.442695
  %v346 = vpow.pop %v345
  %v347 = vmul.f32 %v344, 1.442695
  %v348 = vpow.pop %v347
  %v349 = vadd.f32 %v346, 1.0
  %v350 = vadd.f32 %v348, 1.0
  %v351 = vlog2.pop %v349
  %v352 = vmul.f32 %v351, 0.6931472
  %v353 = vlog2.pop %v350
  %v354 = vmul.f32 %v353, 0.6931472
  %v355 = vsel %vm341, %v333, %v352
  %v356 = vsel %vm342, %v338, %v354
  %v357 = vld [vmem:[%s7] sm:$0xff]
  %v358 = vld [vmem:[%s7 + $0x8] sm:$0xff]
  %v359 = vld [vmem:[%s7 + $0x10] sm:$0xff]
  %v360 = vld [vmem:[%s7 + $0x18] sm:$0xff]
  %v361 = vld [vmem:[%s7 + $0x20] sm:$0xff]
  %v362 = vld [vmem:[%s7 + $0x28] sm:$0xff]
  %v363 = vld [vmem:[%s7 + $0x30] sm:$0xff]
  %v364 = vld [vmem:[%s7 + $0x38] sm:$0xff]
  %v365 = vld [vmem:[%s7 + $0x40] sm:$0xff]
  %v366 = vld [vmem:[%s7 + $0x48] sm:$0xff]
  %v367 = vld [vmem:[%s7 + $0x50] sm:$0xff]
  %v368 = vld [vmem:[%s7 + $0x58] sm:$0xff]
  %v369 = vld [vmem:[%s7 + $0x60] sm:$0xff]
  %v370 = vld [vmem:[%s7 + $0x68] sm:$0xff]
  %v371 = vld [vmem:[%s7 + $0x70] sm:$0xff]
  %v372 = vld [vmem:[%s7 + $0x78] sm:$0xff]
  %v373 = vld [vmem:[%s8] sm:$0x1]
  %v375 = vlaneseq
  %v376 = vshrl.u32 %v375, 7
  %v377 = vsub.s32 0, %v376
  %v378 = vrot.slane %v373, %v377
  %380 = vmatprep.subr.mxu0 0.0
  %381 = vmatpush1.msra.mxu0 %v357
  %382 = vmatprep.subr.mxu0 0.0
  %383 = vmatpush1.msra.mxu0 %v358
  %384 = vmatprep.subr.mxu0 0.0
  %385 = vmatpush1.msra.mxu0 %v359
  %386 = vmatprep.subr.mxu0 0.0
  %387 = vmatpush1.msra.mxu0 %v360
  %388 = vmatprep.subr.mxu0 0.0
  %389 = vmatpush1.msra.mxu0 %v361
  %390 = vmatprep.subr.mxu0 0.0
  %391 = vmatpush1.msra.mxu0 %v362
  %392 = vmatprep.subr.mxu0 0.0
  %393 = vmatpush1.msra.mxu0 %v363
  %394 = vmatprep.subr.mxu0 0.0
  %395 = vmatpush1.msra.mxu0 %v364
  %396 = vmatprep.subr.mxu0 0.0
  %397 = vmatpush1.msra.mxu0 %v365
  %398 = vmatprep.subr.mxu0 0.0
  %399 = vmatpush1.msra.mxu0 %v366
  %400 = vmatprep.subr.mxu0 0.0
  %401 = vmatpush1.msra.mxu0 %v367
  %402 = vmatprep.subr.mxu0 0.0
  %403 = vmatpush1.msra.mxu0 %v368
  %404 = vmatprep.subr.mxu0 0.0
  %405 = vmatpush1.msra.mxu0 %v369
  %406 = vmatprep.subr.mxu0 0.0
  %407 = vmatpush1.msra.mxu0 %v370
  %408 = vmatprep.subr.mxu0 0.0
  %409 = vmatpush1.msra.mxu0 %v371
  %410 = vmatprep.subr.mxu0 0.0
  %411 = vmatpush1.msra.mxu0 %v372
  %412 = vmatprep.subr.mxu0 0.0
  %413 = vmatpush1.msra.mxu0 0.0
  %414 = vmatprep.subr.mxu0 0.0
  %415 = vmatpush1.msra.mxu0 0.0
  %416 = vmatprep.subr.mxu0 0.0
  %417 = vmatpush1.msra.mxu0 0.0
  %418 = vmatprep.subr.mxu0 0.0
  %419 = vmatpush1.msra.mxu0 0.0
  %420 = vmatprep.subr.mxu0 0.0
  %421 = vmatpush1.msra.mxu0 0.0
  %422 = vmatprep.subr.mxu0 0.0
  %423 = vmatpush1.msra.mxu0 0.0
  %424 = vmatprep.subr.mxu0 0.0
  %425 = vmatpush1.msra.mxu0 0.0
  %426 = vmatprep.subr.mxu0 0.0
  %427 = vmatpush1.msra.mxu0 0.0
  %428 = vmatprep.subr.mxu0 0.0
  %429 = vmatpush1.msra.mxu0 0.0
  %430 = vmatprep.subr.mxu0 0.0
  %431 = vmatpush1.msra.mxu0 0.0
  %432 = vmatprep.subr.mxu0 0.0
  %433 = vmatpush1.msra.mxu0 0.0
  %434 = vmatprep.subr.mxu0 0.0
  %435 = vmatpush1.msra.mxu0 0.0
  %436 = vmatprep.subr.mxu0 0.0
  %437 = vmatpush1.msra.mxu0 0.0
  %438 = vmatprep.subr.mxu0 0.0
  %439 = vmatpush1.msra.mxu0 0.0
  %440 = vmatprep.subr.mxu0 0.0
  %441 = vmatpush1.msra.mxu0 0.0
  %442 = vmatprep.subr.mxu0 0.0
  %443 = vmatpush1.msra.mxu0 0.0
  %444 = vmatprep.mubr.f32.mxu0 0.0
  %445 = vmatmul.mubr.f32.gmra.mrb[0].mxu0 %v355
  %v446 = vpop.f32.mrb[0].mxu0
  %v447 = vadd.f32 %v378, %v446
  %v448 = vpop.f32.mrb[0].mxu0
  %449 = vmatprep.mubr.f32.mxu0 0.0
  %450 = vmatmul.mubr.f32.gmra.mrb[0].mxu0 %v356
  %v451 = vpop.f32.mrb[0].mxu0
  %v452 = vadd.f32 %v378, %v451
  %v453 = vpop.f32.mrb[0].mxu0
  %454 = vdwg.mxu0
  %v455 = vld [vmem:[%s11] sm:$0xff]
  %v456 = vld [vmem:[%s11 + $0x8] sm:$0xff]
  %v457 = vmul.f32 %v455, 0.5
  %v458 = vmul.f32 %v456, 0.5
  %v459 = vld [vmem:[%s9] sm:$0xff]
  %v460 = vld [vmem:[%s9 + $0x8] sm:$0xff]
  %v461 = vld [vmem:[%s10] sm:$0xff]
  %v462 = vld [vmem:[%s10 + $0x8] sm:$0xff]
  %v463 = vsub.f32 0.0, %v459
  %v464 = vsub.f32 0.0, %v460
  %v465 = vmul.f32 %v457, 0.0
  %v466 = vmul.f32 %v458, 0.0
  %v467 = vsub.f32 1.0, %v465
  %v468 = vsub.f32 1.0, %v466
  %v469 = vsub.f32 0.0, %v457
  %v470 = vsub.f32 0.0, %v458
  %v471 = vsub.f32 0.0, %v465
  %v472 = vsub.f32 0.0, %v466
  %475 = vrot.lane.b32.xlu0 %v243, 124
  %v476 = vpop.permute.xlu0 %475
  %477 = vrot.lane.b32.xlu0 %v248, 124
  %v478 = vpop.permute.xlu0 %477
  %v481 = vmul.f32 %v457, %v476
  %v482 = vmul.f32 %v458, %v478
  %v483 = vsub.f32 0.0, %v481
  %v484 = vsub.f32 0.0, %v482
  %485 = vrot.lane.b32.xlu0 %v243, 123
  %v486 = vpop.permute.xlu0 %485
  %487 = vrot.lane.b32.xlu0 %v248, 123
  %v488 = vpop.permute.xlu0 %487
  %v491 = vmul.f32 %v457, %v486
  %v492 = vmul.f32 %v458, %v488
  %v493 = vsub.f32 1.0, %v491
  %v494 = vsub.f32 1.0, %v492
  %495 = vrot.lane.b32.xlu0 %v243, 122
  %v496 = vpop.permute.xlu0 %495
  %497 = vrot.lane.b32.xlu0 %v248, 122
  %v498 = vpop.permute.xlu0 %497
  %v501 = vmul.f32 %v457, %v496
  %v502 = vmul.f32 %v458, %v498
  %v503 = vsub.f32 0.0, %v501
  %v504 = vsub.f32 0.0, %v502
  %505 = vrot.lane.b32.xlu0 %v243, 121
  %v506 = vpop.permute.xlu0 %505
  %507 = vrot.lane.b32.xlu0 %v248, 121
  %v508 = vpop.permute.xlu0 %507
  %v511 = vmul.f32 %v457, %v506
  %v512 = vmul.f32 %v458, %v508
  %v513 = vsub.f32 0.0, %v511
  %v514 = vsub.f32 0.0, %v512
  %517 = vrot.lane.b32.xlu0 %v459, 127
  %v518 = vpop.permute.xlu0 %517
  %519 = vrot.lane.b32.xlu0 %v460, 127
  %v520 = vpop.permute.xlu0 %519
  %v523 = vmul.f32 %v457, %v518
  %v524 = vmul.f32 %v458, %v520
  %v525 = vsub.f32 0.0, %v523
  %v526 = vsub.f32 0.0, %v524
  %529 = vrot.lane.b32.xlu0 %v463, 127
  %v530 = vpop.permute.xlu0 %529
  %531 = vrot.lane.b32.xlu0 %v464, 127
  %v532 = vpop.permute.xlu0 %531
  %v535 = vmul.f32 %v457, %v530
  %v536 = vmul.f32 %v458, %v532
  %v537 = vsub.f32 0.0, %v535
  %v538 = vsub.f32 0.0, %v536
  %v539 = vadd.f32 %v465, 1.0
  %v540 = vadd.f32 %v466, 1.0
  %v541 = vadd.f32 %v457, 0.0
  %v542 = vadd.f32 %v458, 0.0
  %v543 = vadd.f32 %v465, 0.0
  %v544 = vadd.f32 %v466, 0.0
  %v545 = vadd.f32 %v481, 0.0
  %v546 = vadd.f32 %v482, 0.0
  %v547 = vadd.f32 %v491, 1.0
  %v548 = vadd.f32 %v492, 1.0
  %v549 = vadd.f32 %v501, 0.0
  %v550 = vadd.f32 %v502, 0.0
  %v551 = vadd.f32 %v511, 0.0
  %v552 = vadd.f32 %v512, 0.0
  %v553 = vadd.f32 %v523, 0.0
  %v554 = vadd.f32 %v524, 0.0
  %v555 = vadd.f32 %v535, 0.0
  %v556 = vadd.f32 %v536, 0.0
  %559 = vrot.lane.b32.xlu0 %v447, 127
  %v560 = vpop.permute.xlu0 %559
  %561 = vrot.lane.b32.xlu0 %v452, 127
  %v562 = vpop.permute.xlu0 %561
  %v565 = vmul.f32 %v455, %v560
  %v566 = vmul.f32 %v456, %v562
  %v567 = vrcp.pop %v467
  %v568 = vmul.f32 1.0, %v567
  %v569 = vrcp.pop %v468
  %v570 = vmul.f32 1.0, %v569
  %v571 = vmul.f32 %v469, %v568
  %v572 = vmul.f32 %v470, %v570
  %v573 = vmul.f32 %v471, %v568
  %v574 = vmul.f32 %v472, %v570
  %v575 = vmul.f32 %v539, %v568
  %v576 = vmul.f32 %v540, %v570
  %v577 = vmul.f32 %v541, %v568
  %v578 = vmul.f32 %v542, %v570
  %v579 = vmul.f32 %v543, %v568
  %v580 = vmul.f32 %v544, %v570
  %v581 = vmul.f32 %v568, 0.0
  %v582 = vmul.f32 %v570, 0.0
  %v583 = vmul.f32 %v483, %v571
  %v584 = vmul.f32 %v484, %v572
  %v585 = vsub.f32 %v493, %v583
  %v586 = vsub.f32 %v494, %v584
  %v587 = vmul.f32 %v483, %v573
  %v588 = vmul.f32 %v484, %v574
  %v589 = vsub.f32 %v503, %v587
  %v590 = vsub.f32 %v504, %v588
  %v591 = vsub.f32 %v513, %v587
  %v592 = vsub.f32 %v514, %v588
  %v593 = vmul.f32 %v483, %v575
  %v594 = vmul.f32 %v484, %v576
  %v595 = vsub.f32 %v545, %v593
  %v596 = vsub.f32 %v546, %v594
  %v597 = vmul.f32 %v483, %v577
  %v598 = vmul.f32 %v484, %v578
  %v599 = vsub.f32 %v547, %v597
  %v600 = vsub.f32 %v548, %v598
  %v601 = vmul.f32 %v483, %v579
  %v602 = vmul.f32 %v484, %v580
  %v603 = vsub.f32 %v549, %v601
  %v604 = vsub.f32 %v550, %v602
  %v605 = vsub.f32 %v551, %v601
  %v606 = vsub.f32 %v552, %v602
  %v607 = vmul.f32 %v483, %v581
  %v608 = vmul.f32 %v484, %v582
  %v609 = vsub.f32 %v565, %v607
  %v610 = vsub.f32 %v566, %v608
  %v611 = vmul.f32 %v471, %v571
  %v612 = vmul.f32 %v472, %v572
  %v613 = vsub.f32 %v471, %v611
  %v614 = vsub.f32 %v472, %v612
  %v615 = vmul.f32 %v471, %v573
  %v616 = vmul.f32 %v472, %v574
  %v617 = vsub.f32 %v467, %v615
  %v618 = vsub.f32 %v468, %v616
  %v619 = vsub.f32 %v525, %v615
  %v620 = vsub.f32 %v526, %v616
  %v621 = vmul.f32 %v471, %v575
  %v622 = vmul.f32 %v472, %v576
  %v623 = vsub.f32 %v543, %v621
  %v624 = vsub.f32 %v544, %v622
  %v625 = vmul.f32 %v471, %v577
  %v626 = vmul.f32 %v472, %v578
  %v627 = vsub.f32 %v543, %v625
  %v628 = vsub.f32 %v544, %v626
  %v629 = vmul.f32 %v471, %v579
  %v630 = vmul.f32 %v472, %v580
  %v631 = vsub.f32 %v539, %v629
  %v632 = vsub.f32 %v540, %v630
  %v633 = vsub.f32 %v553, %v629
  %v634 = vsub.f32 %v554, %v630
  %v635 = vmul.f32 %v471, %v581
  %v636 = vmul.f32 %v472, %v582
  %v637 = vsub.f32 0.0, %v635
  %v638 = vsub.f32 0.0, %v636
  %v639 = vsub.f32 %v537, %v615
  %v640 = vsub.f32 %v538, %v616
  %v641 = vsub.f32 %v555, %v629
  %v642 = vsub.f32 %v556, %v630
  %v643 = vrcp.pop %v585
  %v644 = vmul.f32 1.0, %v643
  %v645 = vrcp.pop %v586
  %v646 = vmul.f32 1.0, %v645
  %v647 = vmul.f32 %v589, %v644
  %v648 = vmul.f32 %v590, %v646
  %v649 = vmul.f32 %v591, %v644
  %v650 = vmul.f32 %v592, %v646
  %v651 = vmul.f32 %v595, %v644
  %v652 = vmul.f32 %v596, %v646
  %v653 = vmul.f32 %v599, %v644
  %v654 = vmul.f32 %v600, %v646
  %v655 = vmul.f32 %v603, %v644
  %v656 = vmul.f32 %v604, %v646
  %v657 = vmul.f32 %v605, %v644
  %v658 = vmul.f32 %v606, %v646
  %v659 = vmul.f32 %v609, %v644
  %v660 = vmul.f32 %v610, %v646
  %v661 = vmul.f32 %v571, %v647
  %v662 = vmul.f32 %v572, %v648
  %v663 = vsub.f32 %v573, %v661
  %v664 = vsub.f32 %v574, %v662
  %v665 = vmul.f32 %v571, %v649
  %v666 = vmul.f32 %v572, %v650
  %v667 = vsub.f32 %v573, %v665
  %v668 = vsub.f32 %v574, %v666
  %v669 = vmul.f32 %v571, %v651
  %v670 = vmul.f32 %v572, %v652
  %v671 = vsub.f32 %v575, %v669
  %v672 = vsub.f32 %v576, %v670
  %v673 = vmul.f32 %v571, %v653
  %v674 = vmul.f32 %v572, %v654
  %v675 = vsub.f32 %v577, %v673
  %v676 = vsub.f32 %v578, %v674
  %v677 = vmul.f32 %v571, %v655
  %v678 = vmul.f32 %v572, %v656
  %v679 = vsub.f32 %v579, %v677
  %v680 = vsub.f32 %v580, %v678
  %v681 = vmul.f32 %v571, %v657
  %v682 = vmul.f32 %v572, %v658
  %v683 = vsub.f32 %v579, %v681
  %v684 = vsub.f32 %v580, %v682
  %v685 = vmul.f32 %v571, %v659
  %v686 = vmul.f32 %v572, %v660
  %v687 = vsub.f32 %v581, %v685
  %v688 = vsub.f32 %v582, %v686
  %v689 = vmul.f32 %v613, %v647
  %v690 = vmul.f32 %v614, %v648
  %v691 = vsub.f32 %v617, %v689
  %v692 = vsub.f32 %v618, %v690
  %v693 = vmul.f32 %v613, %v649
  %v694 = vmul.f32 %v614, %v650
  %v695 = vsub.f32 %v619, %v693
  %v696 = vsub.f32 %v620, %v694
  %v697 = vmul.f32 %v613, %v651
  %v698 = vmul.f32 %v614, %v652
  %v699 = vsub.f32 %v623, %v697
  %v700 = vsub.f32 %v624, %v698
  %v701 = vmul.f32 %v613, %v653
  %v702 = vmul.f32 %v614, %v654
  %v703 = vsub.f32 %v627, %v701
  %v704 = vsub.f32 %v628, %v702
  %v705 = vmul.f32 %v613, %v655
  %v706 = vmul.f32 %v614, %v656
  %v707 = vsub.f32 %v631, %v705
  %v708 = vsub.f32 %v632, %v706
  %v709 = vmul.f32 %v613, %v657
  %v710 = vmul.f32 %v614, %v658
  %v711 = vsub.f32 %v633, %v709
  %v712 = vsub.f32 %v634, %v710
  %v713 = vmul.f32 %v613, %v659
  %v714 = vmul.f32 %v614, %v660
  %v715 = vsub.f32 %v637, %v713
  %v716 = vsub.f32 %v638, %v714
  %v717 = vsub.f32 %v639, %v689
  %v718 = vsub.f32 %v640, %v690
  %v719 = vsub.f32 %v617, %v693
  %v720 = vsub.f32 %v618, %v694
  %v721 = vsub.f32 %v641, %v705
  %v722 = vsub.f32 %v642, %v706
  %v723 = vsub.f32 %v631, %v709
  %v724 = vsub.f32 %v632, %v710
  %v725 = vrcp.pop %v691
  %v726 = vmul.f32 1.0, %v725
  %v727 = vrcp.pop %v692
  %v728 = vmul.f32 1.0, %v727
  %v729 = vmul.f32 %v695, %v726
  %v730 = vmul.f32 %v696, %v728
  %v731 = vmul.f32 %v699, %v726
  %v732 = vmul.f32 %v700, %v728
  %v733 = vmul.f32 %v703, %v726
  %v734 = vmul.f32 %v704, %v728
  %v735 = vmul.f32 %v707, %v726
  %v736 = vmul.f32 %v708, %v728
  %v737 = vmul.f32 %v711, %v726
  %v738 = vmul.f32 %v712, %v728
  %v739 = vmul.f32 %v715, %v726
  %v740 = vmul.f32 %v716, %v728
  %v741 = vmul.f32 %v663, %v729
  %v742 = vmul.f32 %v664, %v730
  %v743 = vsub.f32 %v667, %v741
  %v744 = vsub.f32 %v668, %v742
  %v745 = vmul.f32 %v663, %v731
  %v746 = vmul.f32 %v664, %v732
  %v747 = vsub.f32 %v671, %v745
  %v748 = vsub.f32 %v672, %v746
  %v749 = vmul.f32 %v663, %v733
  %v750 = vmul.f32 %v664, %v734
  %v751 = vsub.f32 %v675, %v749
  %v752 = vsub.f32 %v676, %v750
  %v753 = vmul.f32 %v663, %v735
  %v754 = vmul.f32 %v664, %v736
  %v755 = vsub.f32 %v679, %v753
  %v756 = vsub.f32 %v680, %v754
  %v757 = vmul.f32 %v663, %v737
  %v758 = vmul.f32 %v664, %v738
  %v759 = vsub.f32 %v683, %v757
  %v760 = vsub.f32 %v684, %v758
  %v761 = vmul.f32 %v663, %v739
  %v762 = vmul.f32 %v664, %v740
  %v763 = vsub.f32 %v687, %v761
  %v764 = vsub.f32 %v688, %v762
  %v765 = vmul.f32 %v647, %v729
  %v766 = vmul.f32 %v648, %v730
  %v767 = vsub.f32 %v649, %v765
  %v768 = vsub.f32 %v650, %v766
  %v769 = vmul.f32 %v647, %v731
  %v770 = vmul.f32 %v648, %v732
  %v771 = vsub.f32 %v651, %v769
  %v772 = vsub.f32 %v652, %v770
  %v773 = vmul.f32 %v647, %v733
  %v774 = vmul.f32 %v648, %v734
  %v775 = vsub.f32 %v653, %v773
  %v776 = vsub.f32 %v654, %v774
  %v777 = vmul.f32 %v647, %v735
  %v778 = vmul.f32 %v648, %v736
  %v779 = vsub.f32 %v655, %v777
  %v780 = vsub.f32 %v656, %v778
  %v781 = vmul.f32 %v647, %v737
  %v782 = vmul.f32 %v648, %v738
  %v783 = vsub.f32 %v657, %v781
  %v784 = vsub.f32 %v658, %v782
  %v785 = vmul.f32 %v647, %v739
  %v786 = vmul.f32 %v648, %v740
  %v787 = vsub.f32 %v659, %v785
  %v788 = vsub.f32 %v660, %v786
  %v789 = vmul.f32 %v717, %v729
  %v790 = vmul.f32 %v718, %v730
  %v791 = vsub.f32 %v719, %v789
  %v792 = vsub.f32 %v720, %v790
  %v793 = vmul.f32 %v717, %v731
  %v794 = vmul.f32 %v718, %v732
  %v795 = vsub.f32 %v699, %v793
  %v796 = vsub.f32 %v700, %v794
  %v797 = vmul.f32 %v717, %v733
  %v798 = vmul.f32 %v718, %v734
  %v799 = vsub.f32 %v703, %v797
  %v800 = vsub.f32 %v704, %v798
  %v801 = vmul.f32 %v717, %v735
  %v802 = vmul.f32 %v718, %v736
  %v803 = vsub.f32 %v721, %v801
  %v804 = vsub.f32 %v722, %v802
  %v805 = vmul.f32 %v717, %v737
  %v806 = vmul.f32 %v718, %v738
  %v807 = vsub.f32 %v723, %v805
  %v808 = vsub.f32 %v724, %v806
  %v809 = vmul.f32 %v717, %v739
  %v810 = vmul.f32 %v718, %v740
  %v811 = vsub.f32 %v715, %v809
  %v812 = vsub.f32 %v716, %v810
  %v813 = vrcp.pop %v791
  %v814 = vmul.f32 1.0, %v813
  %v815 = vrcp.pop %v792
  %v816 = vmul.f32 1.0, %v815
  %v817 = vmul.f32 %v795, %v814
  %v818 = vmul.f32 %v796, %v816
  %v819 = vmul.f32 %v799, %v814
  %v820 = vmul.f32 %v800, %v816
  %v821 = vmul.f32 %v803, %v814
  %v822 = vmul.f32 %v804, %v816
  %v823 = vmul.f32 %v807, %v814
  %v824 = vmul.f32 %v808, %v816
  %v825 = vmul.f32 %v811, %v814
  %v826 = vmul.f32 %v812, %v816
  %v827 = vmul.f32 %v743, %v817
  %v828 = vmul.f32 %v744, %v818
  %v829 = vsub.f32 %v747, %v827
  %v830 = vsub.f32 %v748, %v828
  %v831 = vmul.f32 %v743, %v819
  %v832 = vmul.f32 %v744, %v820
  %v833 = vsub.f32 %v751, %v831
  %v834 = vsub.f32 %v752, %v832
  %v835 = vmul.f32 %v743, %v821
  %v836 = vmul.f32 %v744, %v822
  %v837 = vsub.f32 %v755, %v835
  %v838 = vsub.f32 %v756, %v836
  %v839 = vmul.f32 %v743, %v823
  %v840 = vmul.f32 %v744, %v824
  %v841 = vsub.f32 %v759, %v839
  %v842 = vsub.f32 %v760, %v840
  %v843 = vmul.f32 %v743, %v825
  %v844 = vmul.f32 %v744, %v826
  %v845 = vsub.f32 %v763, %v843
  %v846 = vsub.f32 %v764, %v844
  %v847 = vmul.f32 %v767, %v817
  %v848 = vmul.f32 %v768, %v818
  %v849 = vsub.f32 %v771, %v847
  %v850 = vsub.f32 %v772, %v848
  %v851 = vmul.f32 %v767, %v819
  %v852 = vmul.f32 %v768, %v820
  %v853 = vsub.f32 %v775, %v851
  %v854 = vsub.f32 %v776, %v852
  %v855 = vmul.f32 %v767, %v821
  %v856 = vmul.f32 %v768, %v822
  %v857 = vsub.f32 %v779, %v855
  %v858 = vsub.f32 %v780, %v856
  %v859 = vmul.f32 %v767, %v823
  %v860 = vmul.f32 %v768, %v824
  %v861 = vsub.f32 %v783, %v859
  %v862 = vsub.f32 %v784, %v860
  %v863 = vmul.f32 %v767, %v825
  %v864 = vmul.f32 %v768, %v826
  %v865 = vsub.f32 %v787, %v863
  %v866 = vsub.f32 %v788, %v864
  %v867 = vmul.f32 %v729, %v817
  %v868 = vmul.f32 %v730, %v818
  %v869 = vsub.f32 %v731, %v867
  %v870 = vsub.f32 %v732, %v868
  %v871 = vmul.f32 %v729, %v819
  %v872 = vmul.f32 %v730, %v820
  %v873 = vsub.f32 %v733, %v871
  %v874 = vsub.f32 %v734, %v872
  %v875 = vmul.f32 %v729, %v821
  %v876 = vmul.f32 %v730, %v822
  %v877 = vsub.f32 %v735, %v875
  %v878 = vsub.f32 %v736, %v876
  %v879 = vmul.f32 %v729, %v823
  %v880 = vmul.f32 %v730, %v824
  %v881 = vsub.f32 %v737, %v879
  %v882 = vsub.f32 %v738, %v880
  %v883 = vmul.f32 %v729, %v825
  %v884 = vmul.f32 %v730, %v826
  %v885 = vsub.f32 %v739, %v883
  %v886 = vsub.f32 %v740, %v884
  %v887 = vlaneseq
  %v888 = vand.u32 %v887, 127
  %v889 = vmul.f32 %v845, %v461
  %v890 = vmul.f32 %v846, %v462
  %v891 = vmul.f32 %v829, %v459
  %v892 = vmul.f32 %v830, %v460
  %v893 = vadd.f32 %v889, %v891
  %v894 = vadd.f32 %v890, %v892
  %v895 = vmul.f32 %v833, %v518
  %v896 = vmul.f32 %v834, %v520
  %v897 = vadd.f32 %v893, %v895
  %v898 = vadd.f32 %v894, %v896
  %899 = vrot.lane.b32.xlu0 %v459, 126
  %v900 = vpop.permute.xlu0 %899
  %901 = vrot.lane.b32.xlu0 %v460, 126
  %v902 = vpop.permute.xlu0 %901
  %v905 = vmul.f32 %v837, %v900
  %v906 = vmul.f32 %v838, %v902
  %v907 = vadd.f32 %v897, %v905
  %v908 = vadd.f32 %v898, %v906
  %909 = vrot.lane.b32.xlu0 %v459, 125
  %v910 = vpop.permute.xlu0 %909
  %911 = vrot.lane.b32.xlu0 %v460, 125
  %v912 = vpop.permute.xlu0 %911
  %v915 = vmul.f32 %v841, %v910
  %v916 = vmul.f32 %v842, %v912
  %v917 = vadd.f32 %v907, %v915
  %v918 = vadd.f32 %v908, %v916
  %vm919 = vcmp.eq.s32.totalorder %v888, 0
  %921 = vset.pattern.permute.xlu0 0
  %922 = vperm.xlu0 %921, %v917
  %v923 = vpop.permute.xlu0 %922
  %926 = vset.pattern.permute.xlu0 0
  %927 = vperm.xlu0 %926, %v918
  %v928 = vpop.permute.xlu0 %927
  %v930 = vsel %vm919, %v923, 0.0
  %v931 = vsel %vm919, %v928, 0.0
  %v932 = vmul.f32 %v865, %v461
  %v933 = vmul.f32 %v866, %v462
  %v934 = vmul.f32 %v849, %v459
  %v935 = vmul.f32 %v850, %v460
  %v936 = vadd.f32 %v932, %v934
  %v937 = vadd.f32 %v933, %v935
  %v938 = vmul.f32 %v853, %v518
  %v939 = vmul.f32 %v854, %v520
  %v940 = vadd.f32 %v936, %v938
  %v941 = vadd.f32 %v937, %v939
  %v942 = vmul.f32 %v857, %v900
  %v943 = vmul.f32 %v858, %v902
  %v944 = vadd.f32 %v940, %v942
  %v945 = vadd.f32 %v941, %v943
  %v946 = vmul.f32 %v861, %v910
  %v947 = vmul.f32 %v862, %v912
  %v948 = vadd.f32 %v944, %v946
  %v949 = vadd.f32 %v945, %v947
  %vm950 = vcmp.eq.s32.totalorder %v888, 1
  %952 = vset.pattern.permute.xlu0 0
  %953 = vperm.xlu0 %952, %v948
  %v954 = vpop.permute.xlu0 %953
  %957 = vset.pattern.permute.xlu0 0
  %958 = vperm.xlu0 %957, %v949
  %v959 = vpop.permute.xlu0 %958
  %v961 = vsel %vm950, %v954, %v930
  %v962 = vsel %vm950, %v959, %v931
  %v963 = vmul.f32 %v885, %v461
  %v964 = vmul.f32 %v886, %v462
  %v965 = vmul.f32 %v869, %v459
  %v966 = vmul.f32 %v870, %v460
  %v967 = vadd.f32 %v963, %v965
  %v968 = vadd.f32 %v964, %v966
  %v969 = vmul.f32 %v873, %v518
  %v970 = vmul.f32 %v874, %v520
  %v971 = vadd.f32 %v967, %v969
  %v972 = vadd.f32 %v968, %v970
  %v973 = vmul.f32 %v877, %v900
  %v974 = vmul.f32 %v878, %v902
  %v975 = vadd.f32 %v971, %v973
  %v976 = vadd.f32 %v972, %v974
  %v977 = vmul.f32 %v881, %v910
  %v978 = vmul.f32 %v882, %v912
  %v979 = vadd.f32 %v975, %v977
  %v980 = vadd.f32 %v976, %v978
  %vm981 = vcmp.eq.s32.totalorder %v888, 2
  %983 = vset.pattern.permute.xlu0 0
  %984 = vperm.xlu0 %983, %v979
  %v985 = vpop.permute.xlu0 %984
  %988 = vset.pattern.permute.xlu0 0
  %989 = vperm.xlu0 %988, %v980
  %v990 = vpop.permute.xlu0 %989
  %v992 = vsel %vm981, %v985, %v961
  %v993 = vsel %vm981, %v990, %v962
  %v994 = vmul.f32 %v825, %v461
  %v995 = vmul.f32 %v826, %v462
  %v996 = vmul.f32 %v817, %v459
  %v997 = vmul.f32 %v818, %v460
  %v998 = vadd.f32 %v994, %v996
  %v999 = vadd.f32 %v995, %v997
  %v1000 = vmul.f32 %v819, %v518
  %v1001 = vmul.f32 %v820, %v520
  %v1002 = vadd.f32 %v998, %v1000
  %v1003 = vadd.f32 %v999, %v1001
  %v1004 = vmul.f32 %v821, %v900
  %v1005 = vmul.f32 %v822, %v902
  %v1006 = vadd.f32 %v1002, %v1004
  %v1007 = vadd.f32 %v1003, %v1005
  %v1008 = vmul.f32 %v823, %v910
  %v1009 = vmul.f32 %v824, %v912
  %v1010 = vadd.f32 %v1006, %v1008
  %v1011 = vadd.f32 %v1007, %v1009
  %vm1012 = vcmp.eq.s32.totalorder %v888, 3
  %1014 = vset.pattern.permute.xlu0 0
  %1015 = vperm.xlu0 %1014, %v1010
  %v1016 = vpop.permute.xlu0 %1015
  %1019 = vset.pattern.permute.xlu0 0
  %1020 = vperm.xlu0 %1019, %v1011
  %v1021 = vpop.permute.xlu0 %1020
  %v1023 = vsel %vm1012, %v1016, %v992
  %v1024 = vsel %vm1012, %v1021, %v993
  %vm1025 = vcmask 31744
  %1026 = vst.msk [vmem:[%s12] sm:$0xff] %vm1025, %v1023
  %1027 = vst.msk [vmem:[%s12 + $0x8] sm:$0xff] %vm1025, %v1024
  // Predicated region
  $region50: #{physics_constraint_ssm_forward.5} parent=0 // pred_check
    _
  $region51: #{physics_constraint_ssm_forward.5} parent=0 // pred_check_branch
    %1029 = sbr.rel (0) target = $region53
  $region52: #{physics_constraint_ssm_forward.5} parent=0 // pred_region
    _
  $region53: #{physics_constraint_ssm_forward.5} parent=0 // pred_fallthru
    _
  // Predicated region
  $region54: #{physics_constraint_ssm_forward.5} parent=0 // pred_check
    _
  $region55: #{physics_constraint_ssm_forward.5} parent=0 // pred_check_branch
    %1031 = sbr.rel (0) target = $region57
  $region56: #{physics_constraint_ssm_forward.5} parent=0 // pred_region
    _
  $region57: #{physics_constraint_ssm_forward.5} parent=0 // pred_fallthru
    _

// kernel: physics_constraint_ssm_forward.3
$region0: #{physics_constraint_ssm_forward.3}
  #allocation0 [shape = 'u32[]', space=smem, size = 0x4, offset = 0x4, fixed_abs, tag = 'smem constant byte address 0x4 - core index']
  #allocation1 [shape = 'u32[144,128]{1,0:T(1,128)}', space=vmem, size = 0x12000, scoped, tag = 'internal scratch']
  #allocation2 [shape = 'f32[16,128]{1,0:T(8,128)}', space=vmem, size = 0x2000, scoped, tag = 'scratch operand']
  #allocation3 [shape = 'f32[16,128]{1,0:T(8,128)}', space=vmem, size = 0x2000, scoped, tag = 'scratch operand']
  %s0 = inlined_call_operand.vmem [shape: f32[2,16,16], index: 0, kind: input, shape index: {}]
  %s1 = inlined_call_operand.vmem [shape: f32[2,1,16], index: 1, kind: input, shape index: {}]
  %s2 = inlined_call_operand.vmem [shape: f32[2,1,16], index: 2, kind: input, shape index: {}]
  %s3 = inlined_call_operand.vmem [shape: f32[2,16,128], index: 3, kind: input, shape index: {}]
  %s4 = inlined_call_operand.vmem [shape: f32[2,16,128], index: 4, kind: input, shape index: {}]
  %s5 = inlined_call_operand.vmem [shape: f32[2,1,128], index: 5, kind: input, shape index: {}]
  %s6 = inlined_call_operand.vmem [shape: f32[2,1,128], index: 6, kind: input, shape index: {}]
  %s7 = inlined_call_operand.vmem [shape: f32[2,16,128], index: 7, kind: input, shape index: {}]
  %s8 = inlined_call_operand.vmem [shape: f32[2,16,128], index: 8, kind: input, shape index: {}]
  %s9 = inlined_call_operand.vmem [shape: f32[2,128,16], index: 9, kind: input, shape index: {}]
  %s10 = inlined_call_operand.vmem [shape: f32[2,128,16], index: 10, kind: input, shape index: {}]
  %s11 = inlined_call_operand.vmem [shape: f32[2,1,16], index: 11, kind: input, shape index: {}]
  %s12 = inlined_call_operand.vmem [shape: f32[2,1,16], index: 12, kind: input, shape index: {}]
  %s13 = inlined_call_operand.vmem [shape: f32[2,1,16], index: 13, kind: input, shape index: {}]
  %s14 = inlined_call_operand.vmem [shape: f32[2,16,16], index: 14, kind: input, shape index: {}]
  %s15 = inlined_call_operand.vmem [shape: f32[2,16,16], index: 15, kind: input, shape index: {}]
  %s16 = inlined_call_operand.vmem [shape: f32[2,16,16], index: 16, kind: input, shape index: {}]
  %s17 = inlined_call_operand.vmem [shape: f32[2,16,16], index: 17, kind: output, shape index: {0}]
  %s18 = inlined_call_operand.vmem [shape: f32[2,2,128], index: 18, kind: output, shape index: {1}]
  %s19 = inlined_call_operand.vmem [shape: f32[2,2,128], index: 19, kind: output, shape index: {2}]
  %20 = xla_tuple %s17, %s18, %s19
  %s21 = sld [smem:[#allocation0]]
  $region117: #{physics_constraint_ssm_forward.3} parent=0
    _
  %s23 = ssub.s32 1, %s21
  %s24 = scalar_select 0, %s23, %s21
  loop: start=0, step=1, limit=4
  $region2: #{physics_constraint_ssm_forward.3} parent=0 // loop_pre_header
    _
  $region3: #{physics_constraint_ssm_forward.3} parent=0 // loop_header
    %s26 = sphi 0, %s30
    %p27 = scmp.ge.s32.totalorder %s26, 4
    %s36 = sphi 0, %s38
    %s39 = sphi 0, %s36
    %s40 = sphi 0, %s39
    %s56 = sphi 0, %s40
    %s62 = sphi 0, %s64
    %s65 = sphi 0, %s62
    %s66 = sphi 0, %s65
    %s82 = sphi 0, %s66
    %s88 = sphi 0, %s90
    %s91 = sphi 0, %s88
    %s92 = sphi 0, %s91
    %s108 = sphi 0, %s92
    %s114 = sphi 0, %s116
    %s117 = sphi 0, %s114
    %s118 = sphi 0, %s117
    %s134 = sphi 0, %s118
    %s140 = sphi 0, %s142
    %s143 = sphi 0, %s140
    %s144 = sphi 0, %s143
    %s160 = sphi 0, %s144
    %s166 = sphi 0, %s168
    %s169 = sphi 0, %s166
    %s170 = sphi 0, %s169
    %s186 = sphi 0, %s170
    %s192 = sphi 0, %s194
    %s195 = sphi 0, %s192
    %s196 = sphi 0, %s195
    %s212 = sphi 0, %s196
    %s218 = sphi 0, %s220
    %s221 = sphi 0, %s218
    %s222 = sphi 0, %s221
    %s238 = sphi 0, %s222
    %s244 = sphi 0, %s246
    %s247 = sphi 0, %s244
    %s248 = sphi 0, %s247
    %s264 = sphi 0, %s248
    %s270 = sphi 0, %s272
    %s273 = sphi 0, %s270
    %s274 = sphi 0, %s273
    %s290 = sphi 0, %s274
    %s296 = sphi 0, %s298
    %s299 = sphi 0, %s296
    %s300 = sphi 0, %s299
    %s316 = sphi 0, %s300
    %s322 = sphi 0, %s324
    %s325 = sphi 0, %s322
    %s326 = sphi 0, %s325
    %s342 = sphi 0, %s326
    %s348 = sphi 0, %s350
    %s351 = sphi 0, %s348
    %s352 = sphi 0, %s351
    %s368 = sphi 0, %s352
    %s374 = sphi 0, %s376
    %s377 = sphi 0, %s374
    %s378 = sphi 0, %s377
    %s394 = sphi 0, %s378
    %s400 = sphi 0, %s402
    %s403 = sphi 0, %s400
    %s404 = sphi 0, %s403
    %s420 = sphi 0, %s404
    %s426 = sphi 0, %s428
    %s429 = sphi 0, %s426
    %s430 = sphi 0, %s429
    %s446 = sphi 0, %s430
    %s452 = sphi 0, %s454
    %s455 = sphi 0, %s452
    %s456 = sphi 0, %s455
    %s472 = sphi 0, %s456
    %s478 = sphi 0, %s480
    %s481 = sphi 0, %s478
    %s482 = sphi 0, %s481
    %s498 = sphi 0, %s482
    %s504 = sphi 0, %s506
    %s507 = sphi 0, %s504
    %s508 = sphi 0, %s507
    %s524 = sphi 0, %s508
    %s530 = sphi 0, %s532
    %s533 = sphi 0, %s530
    %s534 = sphi 0, %s533
    %s550 = sphi 0, %s534
  $region4: #{physics_constraint_ssm_forward.3} parent=0 // loop_header_branch
    %29 = sbr.rel (%p27) target = $region8
  $region5: #{physics_constraint_ssm_forward.3} parent=0 // loop_body
    %s31 = ssub.s32 %s26, 1
    %s32 = ssub.s32 %s26, 2
    %s33 = sadd.s32 %s26, 1
    %s34 = ssub.s32 %s26, %s33
    %p35 = scmp.eq.s32.totalorder %s34, 0
    %s37 = sadd.s32 %s36, 1
    %s38 = scalar_select %p35, %s36, %s37
    %p41 = pneg %p35
    %p42 = scmp.eq.s32.totalorder %s26, 1
    %p43 = por %p41, %p42
    %p44 = scmp.ne.s32.totalorder %s36, %s39
    %p45 = scmp.eq.s32.totalorder %s26, 0
    %p46 = por %p44, %p45
    %p47 = scmp.ne.s32.totalorder %s36, %s39
    %p48 = scmp.eq.s32.totalorder %s31, 1
    %p49 = por %p47, %p48
    %p50 = scmp.ne.s32.totalorder %s39, %s40
    %p51 = scmp.eq.s32.totalorder %s31, 0
    %p52 = por %p50, %p51
    %p53 = scmp.ne.s32.totalorder %s39, %s40
    %p54 = scmp.eq.s32.totalorder %s32, 1
    %p55 = por %p53, %p54
    %p57 = scmp.ne.s32.totalorder %s40, %s56
    %p58 = scmp.eq.s32.totalorder %s32, 0
    %p59 = por %p57, %p58
    %s60 = ssub.s32 %s26, %s33
    %p61 = scmp.eq.s32.totalorder %s60, 0
    %s63 = sadd.s32 %s62, 1
    %s64 = scalar_select %p61, %s62, %s63
    %p67 = pneg %p61
    %p68 = scmp.eq.s32.totalorder %s26, 1
    %p69 = por %p67, %p68
    %p70 = scmp.ne.s32.totalorder %s62, %s65
    %p71 = scmp.eq.s32.totalorder %s26, 0
    %p72 = por %p70, %p71
    %p73 = scmp.ne.s32.totalorder %s62, %s65
    %p74 = scmp.eq.s32.totalorder %s31, 1
    %p75 = por %p73, %p74
    %p76 = scmp.ne.s32.totalorder %s65, %s66
    %p77 = scmp.eq.s32.totalorder %s31, 0
    %p78 = por %p76, %p77
    %p79 = scmp.ne.s32.totalorder %s65, %s66
    %p80 = scmp.eq.s32.totalorder %s32, 1
    %p81 = por %p79, %p80
    %p83 = scmp.ne.s32.totalorder %s66, %s82
    %p84 = scmp.eq.s32.totalorder %s32, 0
    %p85 = por %p83, %p84
    %s86 = ssub.s32 %s26, %s33
    %p87 = scmp.eq.s32.totalorder %s86, 0
    %s89 = sadd.s32 %s88, 1
    %s90 = scalar_select %p87, %s88, %s89
    %p93 = pneg %p87
    %p94 = scmp.eq.s32.totalorder %s26, 1
    %p95 = por %p93, %p94
    %p96 = scmp.ne.s32.totalorder %s88, %s91
    %p97 = scmp.eq.s32.totalorder %s26, 0
    %p98 = por %p96, %p97
    %p99 = scmp.ne.s32.totalorder %s88, %s91
    %p100 = scmp.eq.s32.totalorder %s31, 1
    %p101 = por %p99, %p100
    %p102 = scmp.ne.s32.totalorder %s91, %s92
    %p103 = scmp.eq.s32.totalorder %s31, 0
    %p104 = por %p102, %p103
    %p105 = scmp.ne.s32.totalorder %s91, %s92
    %p106 = scmp.eq.s32.totalorder %s32, 1
    %p107 = por %p105, %p106
    %p109 = scmp.ne.s32.totalorder %s92, %s108
    %p110 = scmp.eq.s32.totalorder %s32, 0
    %p111 = por %p109, %p110
    %s112 = ssub.s32 %s26, %s33
    %p113 = scmp.eq.s32.totalorder %s112, 0
    %s115 = sadd.s32 %s114, 1
    %s116 = scalar_select %p113, %s114, %s115
    %p119 = pneg %p113
    %p120 = scmp.eq.s32.totalorder %s26, 1
    %p121 = por %p119, %p120
    %p122 = scmp.ne.s32.totalorder %s114, %s117
    %p123 = scmp.eq.s32.totalorder %s26, 0
    %p124 = por %p122, %p123
    %p125 = scmp.ne.s32.totalorder %s114, %s117
    %p126 = scmp.eq.s32.totalorder %s31, 1
    %p127 = por %p125, %p126
    %p128 = scmp.ne.s32.totalorder %s117, %s118
    %p129 = scmp.eq.s32.totalorder %s31, 0
    %p130 = por %p128, %p129
    %p131 = scmp.ne.s32.totalorder %s117, %s118
    %p132 = scmp.eq.s32.totalorder %s32, 1
    %p133 = por %p131, %p132
    %p135 = scmp.ne.s32.totalorder %s118, %s134
    %p136 = scmp.eq.s32.totalorder %s32, 0
    %p137 = por %p135, %p136
    %s138 = ssub.s32 %s26, %s33
    %p139 = scmp.eq.s32.totalorder %s138, 0
    %s141 = sadd.s32 %s140, 1
    %s142 = scalar_select %p139, %s140, %s141
    %p145 = pneg %p139
    %p146 = scmp.eq.s32.totalorder %s26, 1
    %p147 = por %p145, %p146
    %p148 = scmp.ne.s32.totalorder %s140, %s143
    %p149 = scmp.eq.s32.totalorder %s26, 0
    %p150 = por %p148, %p149
    %p151 = scmp.ne.s32.totalorder %s140, %s143
    %p152 = scmp.eq.s32.totalorder %s31, 1
    %p153 = por %p151, %p152
    %p154 = scmp.ne.s32.totalorder %s143, %s144
    %p155 = scmp.eq.s32.totalorder %s31, 0
    %p156 = por %p154, %p155
    %p157 = scmp.ne.s32.totalorder %s143, %s144
    %p158 = scmp.eq.s32.totalorder %s32, 1
    %p159 = por %p157, %p158
    %p161 = scmp.ne.s32.totalorder %s144, %s160
    %p162 = scmp.eq.s32.totalorder %s32, 0
    %p163 = por %p161, %p162
    %s164 = ssub.s32 %s26, %s33
    %p165 = scmp.eq.s32.totalorder %s164, 0
    %s167 = sadd.s32 %s166, 1
    %s168 = scalar_select %p165, %s166, %s167
    %p171 = pneg %p165
    %p172 = scmp.eq.s32.totalorder %s26, 1
    %p173 = por %p171, %p172
    %p174 = scmp.ne.s32.totalorder %s166, %s169
    %p175 = scmp.eq.s32.totalorder %s26, 0
    %p176 = por %p174, %p175
    %p177 = scmp.ne.s32.totalorder %s166, %s169
    %p178 = scmp.eq.s32.totalorder %s31, 1
    %p179 = por %p177, %p178
    %p180 = scmp.ne.s32.totalorder %s169, %s170
    %p181 = scmp.eq.s32.totalorder %s31, 0
    %p182 = por %p180, %p181
    %p183 = scmp.ne.s32.totalorder %s169, %s170
    %p184 = scmp.eq.s32.totalorder %s32, 1
    %p185 = por %p183, %p184
    %p187 = scmp.ne.s32.totalorder %s170, %s186
    %p188 = scmp.eq.s32.totalorder %s32, 0
    %p189 = por %p187, %p188
    %s190 = ssub.s32 %s26, %s33
    %p191 = scmp.eq.s32.totalorder %s190, 0
    %s193 = sadd.s32 %s192, 1
    %s194 = scalar_select %p191, %s192, %s193
    %p197 = pneg %p191
    %p198 = scmp.eq.s32.totalorder %s26, 1
    %p199 = por %p197, %p198
    %p200 = scmp.ne.s32.totalorder %s192, %s195
    %p201 = scmp.eq.s32.totalorder %s26, 0
    %p202 = por %p200, %p201
    %p203 = scmp.ne.s32.totalorder %s192, %s195
    %p204 = scmp.eq.s32.totalorder %s31, 1
    %p205 = por %p203, %p204
    %p206 = scmp.ne.s32.totalorder %s195, %s196
    %p207 = scmp.eq.s32.totalorder %s31, 0
    %p208 = por %p206, %p207
    %p209 = scmp.ne.s32.totalorder %s195, %s196
    %p210 = scmp.eq.s32.totalorder %s32, 1
    %p211 = por %p209, %p210
    %p213 = scmp.ne.s32.totalorder %s196, %s212
    %p214 = scmp.eq.s32.totalorder %s32, 0
    %p215 = por %p213, %p214
    %s216 = ssub.s32 %s26, %s33
    %p217 = scmp.eq.s32.totalorder %s216, 0
    %s219 = sadd.s32 %s218, 1
    %s220 = scalar_select %p217, %s218, %s219
    %p223 = pneg %p217
    %p224 = scmp.eq.s32.totalorder %s26, 1
    %p225 = por %p223, %p224
    %p226 = scmp.ne.s32.totalorder %s218, %s221
    %p227 = scmp.eq.s32.totalorder %s26, 0
    %p228 = por %p226, %p227
    %p229 = scmp.ne.s32.totalorder %s218, %s221
    %p230 = scmp.eq.s32.totalorder %s31, 1
    %p231 = por %p229, %p230
    %p232 = scmp.ne.s32.totalorder %s221, %s222
    %p233 = scmp.eq.s32.totalorder %s31, 0
    %p234 = por %p232, %p233
    %p235 = scmp.ne.s32.totalorder %s221, %s222
    %p236 = scmp.eq.s32.totalorder %s32, 1
    %p237 = por %p235, %p236
    %p239 = scmp.ne.s32.totalorder %s222, %s238
    %p240 = scmp.eq.s32.totalorder %s32, 0
    %p241 = por %p239, %p240
    %s242 = ssub.s32 %s26, %s33
    %p243 = scmp.eq.s32.totalorder %s242, 0
    %s245 = sadd.s32 %s244, 1
    %s246 = scalar_select %p243, %s244, %s245
    %p249 = pneg %p243
    %p250 = scmp.eq.s32.totalorder %s26, 1
    %p251 = por %p249, %p250
    %p252 = scmp.ne.s32.totalorder %s244, %s247
    %p253 = scmp.eq.s32.totalorder %s26, 0
    %p254 = por %p252, %p253
    %p255 = scmp.ne.s32.totalorder %s244, %s247
    %p256 = scmp.eq.s32.totalorder %s31, 1
    %p257 = por %p255, %p256
    %p258 = scmp.ne.s32.totalorder %s247, %s248
    %p259 = scmp.eq.s32.totalorder %s31, 0
    %p260 = por %p258, %p259
    %p261 = scmp.ne.s32.totalorder %s247, %s248
    %p262 = scmp.eq.s32.totalorder %s32, 1
    %p263 = por %p261, %p262
    %p265 = scmp.ne.s32.totalorder %s248, %s264
    %p266 = scmp.eq.s32.totalorder %s32, 0
    %p267 = por %p265, %p266
    %s268 = ssub.s32 %s26, %s33
    %p269 = scmp.eq.s32.totalorder %s268, 0
    %s271 = sadd.s32 %s270, 1
    %s272 = scalar_select %p269, %s270, %s271
    %p275 = pneg %p269
    %p276 = scmp.eq.s32.totalorder %s26, 1
    %p277 = por %p275, %p276
    %p278 = scmp.ne.s32.totalorder %s270, %s273
    %p279 = scmp.eq.s32.totalorder %s26, 0
    %p280 = por %p278, %p279
    %p281 = scmp.ne.s32.totalorder %s270, %s273
    %p282 = scmp.eq.s32.totalorder %s31, 1
    %p283 = por %p281, %p282
    %p284 = scmp.ne.s32.totalorder %s273, %s274
    %p285 = scmp.eq.s32.totalorder %s31, 0
    %p286 = por %p284, %p285
    %p287 = scmp.ne.s32.totalorder %s273, %s274
    %p288 = scmp.eq.s32.totalorder %s32, 1
    %p289 = por %p287, %p288
    %p291 = scmp.ne.s32.totalorder %s274, %s290
    %p292 = scmp.eq.s32.totalorder %s32, 0
    %p293 = por %p291, %p292
    %s294 = ssub.s32 %s26, %s33
    %p295 = scmp.eq.s32.totalorder %s294, 0
    %s297 = sadd.s32 %s296, 1
    %s298 = scalar_select %p295, %s296, %s297
    %p301 = pneg %p295
    %p302 = scmp.eq.s32.totalorder %s26, 1
    %p303 = por %p301, %p302
    %p304 = scmp.ne.s32.totalorder %s296, %s299
    %p305 = scmp.eq.s32.totalorder %s26, 0
    %p306 = por %p304, %p305
    %p307 = scmp.ne.s32.totalorder %s296, %s299
    %p308 = scmp.eq.s32.totalorder %s31, 1
    %p309 = por %p307, %p308
    %p310 = scmp.ne.s32.totalorder %s299, %s300
    %p311 = scmp.eq.s32.totalorder %s31, 0
    %p312 = por %p310, %p311
    %p313 = scmp.ne.s32.totalorder %s299, %s300
    %p314 = scmp.eq.s32.totalorder %s32, 1
    %p315 = por %p313, %p314
    %p317 = scmp.ne.s32.totalorder %s300, %s316
    %p318 = scmp.eq.s32.totalorder %s32, 0
    %p319 = por %p317, %p318
    %s320 = ssub.s32 %s26, %s33
    %p321 = scmp.eq.s32.totalorder %s320, 0
    %s323 = sadd.s32 %s322, 1
    %s324 = scalar_select %p321, %s322, %s323
    %p327 = pneg %p321
    %p328 = scmp.eq.s32.totalorder %s26, 1
    %p329 = por %p327, %p328
    %p330 = scmp.ne.s32.totalorder %s322, %s325
    %p331 = scmp.eq.s32.totalorder %s26, 0
    %p332 = por %p330, %p331
    %p333 = scmp.ne.s32.totalorder %s322, %s325
    %p334 = scmp.eq.s32.totalorder %s31, 1
    %p335 = por %p333, %p334
    %p336 = scmp.ne.s32.totalorder %s325, %s326
    %p337 = scmp.eq.s32.totalorder %s31, 0
    %p338 = por %p336, %p337
    %p339 = scmp.ne.s32.totalorder %s325, %s326
    %p340 = scmp.eq.s32.totalorder %s32, 1
    %p341 = por %p339, %p340
    %p343 = scmp.ne.s32.totalorder %s326, %s342
    %p344 = scmp.eq.s32.totalorder %s32, 0
    %p345 = por %p343, %p344
    %s346 = ssub.s32 %s26, %s33
    %p347 = scmp.eq.s32.totalorder %s346, 0
    %s349 = sadd.s32 %s348, 1
    %s350 = scalar_select %p347, %s348, %s349
    %p353 = pneg %p347
    %p354 = scmp.eq.s32.totalorder %s26, 1
    %p355 = por %p353, %p354
    %p356 = scmp.ne.s32.totalorder %s348, %s351
    %p357 = scmp.eq.s32.totalorder %s26, 0
    %p358 = por %p356, %p357
    %p359 = scmp.ne.s32.totalorder %s348, %s351
    %p360 = scmp.eq.s32.totalorder %s31, 1
    %p361 = por %p359, %p360
    %p362 = scmp.ne.s32.totalorder %s351, %s352
    %p363 = scmp.eq.s32.totalorder %s31, 0
    %p364 = por %p362, %p363
    %p365 = scmp.ne.s32.totalorder %s351, %s352
    %p366 = scmp.eq.s32.totalorder %s32, 1
    %p367 = por %p365, %p366
    %p369 = scmp.ne.s32.totalorder %s352, %s368
    %p370 = scmp.eq.s32.totalorder %s32, 0
    %p371 = por %p369, %p370
    %s372 = ssub.s32 %s26, %s33
    %p373 = scmp.eq.s32.totalorder %s372, 0
    %s375 = sadd.s32 %s374, 1
    %s376 = scalar_select %p373, %s374, %s375
    %p379 = pneg %p373
    %p380 = scmp.eq.s32.totalorder %s26, 1
    %p381 = por %p379, %p380
    %p382 = scmp.ne.s32.totalorder %s374, %s377
    %p383 = scmp.eq.s32.totalorder %s26, 0
    %p384 = por %p382, %p383
    %p385 = scmp.ne.s32.totalorder %s374, %s377
    %p386 = scmp.eq.s32.totalorder %s31, 1
    %p387 = por %p385, %p386
    %p388 = scmp.ne.s32.totalorder %s377, %s378
    %p389 = scmp.eq.s32.totalorder %s31, 0
    %p390 = por %p388, %p389
    %p391 = scmp.ne.s32.totalorder %s377, %s378
    %p392 = scmp.eq.s32.totalorder %s32, 1
    %p393 = por %p391, %p392
    %p395 = scmp.ne.s32.totalorder %s378, %s394
    %p396 = scmp.eq.s32.totalorder %s32, 0
    %p397 = por %p395, %p396
    %s398 = ssub.s32 %s26, %s33
    %p399 = scmp.eq.s32.totalorder %s398, 0
    %s401 = sadd.s32 %s400, 1
    %s402 = scalar_select %p399, %s400, %s401
    %p405 = pneg %p399
    %p406 = scmp.eq.s32.totalorder %s26, 1
    %p407 = por %p405, %p406
    %p408 = scmp.ne.s32.totalorder %s400, %s403
    %p409 = scmp.eq.s32.totalorder %s26, 0
    %p410 = por %p408, %p409
    %p411 = scmp.ne.s32.totalorder %s400, %s403
    %p412 = scmp.eq.s32.totalorder %s31, 1
    %p413 = por %p411, %p412
    %p414 = scmp.ne.s32.totalorder %s403, %s404
    %p415 = scmp.eq.s32.totalorder %s31, 0
    %p416 = por %p414, %p415
    %p417 = scmp.ne.s32.totalorder %s403, %s404
    %p418 = scmp.eq.s32.totalorder %s32, 1
    %p419 = por %p417, %p418
    %p421 = scmp.ne.s32.totalorder %s404, %s420
    %p422 = scmp.eq.s32.totalorder %s32, 0
    %p423 = por %p421, %p422
    %s424 = ssub.s32 %s26, %s33
    %p425 = scmp.eq.s32.totalorder %s424, 0
    %s427 = sadd.s32 %s426, 1
    %s428 = scalar_select %p425, %s426, %s427
    %p431 = pneg %p425
    %p432 = scmp.eq.s32.totalorder %s26, 1
    %p433 = por %p431, %p432
    %p434 = scmp.ne.s32.totalorder %s426, %s429
    %p435 = scmp.eq.s32.totalorder %s26, 0
    %p436 = por %p434, %p435
    %p437 = scmp.ne.s32.totalorder %s426, %s429
    %p438 = scmp.eq.s32.totalorder %s31, 1
    %p439 = por %p437, %p438
    %p440 = scmp.ne.s32.totalorder %s429, %s430
    %p441 = scmp.eq.s32.totalorder %s31, 0
    %p442 = por %p440, %p441
    %p443 = scmp.ne.s32.totalorder %s429, %s430
    %p444 = scmp.eq.s32.totalorder %s32, 1
    %p445 = por %p443, %p444
    %p447 = scmp.ne.s32.totalorder %s430, %s446
    %p448 = scmp.eq.s32.totalorder %s32, 0
    %p449 = por %p447, %p448
    %s450 = ssub.s32 %s26, %s33
    %p451 = scmp.eq.s32.totalorder %s450, 0
    %s453 = sadd.s32 %s452, 1
    %s454 = scalar_select %p451, %s452, %s453
    %p457 = pneg %p451
    %p458 = scmp.eq.s32.totalorder %s26, 1
    %p459 = por %p457, %p458
    %p460 = scmp.ne.s32.totalorder %s452, %s455
    %p461 = scmp.eq.s32.totalorder %s26, 0
    %p462 = por %p460, %p461
    %p463 = scmp.ne.s32.totalorder %s452, %s455
    %p464 = scmp.eq.s32.totalorder %s31, 1
    %p465 = por %p463, %p464
    %p466 = scmp.ne.s32.totalorder %s455, %s456
    %p467 = scmp.eq.s32.totalorder %s31, 0
    %p468 = por %p466, %p467
    %p469 = scmp.ne.s32.totalorder %s455, %s456
    %p470 = scmp.eq.s32.totalorder %s32, 1
    %p471 = por %p469, %p470
    %p473 = scmp.ne.s32.totalorder %s456, %s472
    %p474 = scmp.eq.s32.totalorder %s32, 0
    %p475 = por %p473, %p474
    %s476 = ssub.s32 %s26, %s33
    %p477 = scmp.eq.s32.totalorder %s476, 0
    %s479 = sadd.s32 %s478, 1
    %s480 = scalar_select %p477, %s478, %s479
    %p483 = pneg %p477
    %p484 = scmp.eq.s32.totalorder %s26, 1
    %p485 = por %p483, %p484
    %p486 = scmp.ne.s32.totalorder %s478, %s481
    %p487 = scmp.eq.s32.totalorder %s26, 0
    %p488 = por %p486, %p487
    %p489 = scmp.ne.s32.totalorder %s478, %s481
    %p490 = scmp.eq.s32.totalorder %s31, 1
    %p491 = por %p489, %p490
    %p492 = scmp.ne.s32.totalorder %s481, %s482
    %p493 = scmp.eq.s32.totalorder %s31, 0
    %p494 = por %p492, %p493
    %p495 = scmp.ne.s32.totalorder %s481, %s482
    %p496 = scmp.eq.s32.totalorder %s32, 1
    %p497 = por %p495, %p496
    %p499 = scmp.ne.s32.totalorder %s482, %s498
    %p500 = scmp.eq.s32.totalorder %s32, 0
    %p501 = por %p499, %p500
    %s502 = ssub.s32 %s26, %s33
    %p503 = scmp.eq.s32.totalorder %s502, 0
    %s505 = sadd.s32 %s504, 1
    %s506 = scalar_select %p503, %s504, %s505
    %p509 = pneg %p503
    %p510 = scmp.eq.s32.totalorder %s26, 1
    %p511 = por %p509, %p510
    %p512 = scmp.ne.s32.totalorder %s504, %s507
    %p513 = scmp.eq.s32.totalorder %s26, 0
    %p514 = por %p512, %p513
    %p515 = scmp.ne.s32.totalorder %s504, %s507
    %p516 = scmp.eq.s32.totalorder %s31, 1
    %p517 = por %p515, %p516
    %p518 = scmp.ne.s32.totalorder %s507, %s508
    %p519 = scmp.eq.s32.totalorder %s31, 0
    %p520 = por %p518, %p519
    %p521 = scmp.ne.s32.totalorder %s507, %s508
    %p522 = scmp.eq.s32.totalorder %s32, 1
    %p523 = por %p521, %p522
    %p525 = scmp.ne.s32.totalorder %s508, %s524
    %p526 = scmp.eq.s32.totalorder %s32, 0
    %p527 = por %p525, %p526
    %s528 = ssub.s32 %s26, %s33
    %p529 = scmp.eq.s32.totalorder %s528, 0
    %s531 = sadd.s32 %s530, 1
    %s532 = scalar_select %p529, %s530, %s531
    %p535 = pneg %p529
    %p536 = scmp.eq.s32.totalorder %s26, 1
    %p537 = por %p535, %p536
    %p538 = scmp.ne.s32.totalorder %s530, %s533
    %p539 = scmp.eq.s32.totalorder %s26, 0
    %p540 = por %p538, %p539
    %p541 = scmp.ne.s32.totalorder %s530, %s533
    %p542 = scmp.eq.s32.totalorder %s31, 1
    %p543 = por %p541, %p542
    %p544 = scmp.ne.s32.totalorder %s533, %s534
    %p545 = scmp.eq.s32.totalorder %s31, 0
    %p546 = por %p544, %p545
    %p547 = scmp.ne.s32.totalorder %s533, %s534
    %p548 = scmp.eq.s32.totalorder %s32, 1
    %p549 = por %p547, %p548
    %p551 = scmp.ne.s32.totalorder %s534, %s550
    %p552 = scmp.eq.s32.totalorder %s32, 0
    %p553 = por %p551, %p552
    %p554 = scmp.le.s32.totalorder 1, %s26
    %p555 = scmp.lt.s32.totalorder %s26, 3
    %p556 = pnand %p554, %p555
    %p557 = pneg %p556
    // Predicated region
    $region9: #{physics_constraint_ssm_forward.3} parent=5 // pred_check
      _
    $region10: #{physics_constraint_ssm_forward.3} parent=5 // pred_check_branch
      %559 = sbr.rel (%p556) target = $region12
    $region11: #{physics_constraint_ssm_forward.3} parent=5 // pred_region
      %s560 = ssub.s32 %s26, 1
    $region12: #{physics_constraint_ssm_forward.3} parent=5 // pred_fallthru
      _
    %p561 = scmp.lt.s32.totalorder %s26, 2
    // Predicated region
    $region13: #{physics_constraint_ssm_forward.3} parent=5 // pred_check
      %p562 = pneg %p561
    $region14: #{physics_constraint_ssm_forward.3} parent=5 // pred_check_branch
      %564 = sbr.rel (%p562) target = $region16
    $region15: #{physics_constraint_ssm_forward.3} parent=5 // pred_region
      // Predicated region
      $region17: #{physics_constraint_ssm_forward.3} parent=15 // pred_check
        %p565 = pneg %p46
      $region18: #{physics_constraint_ssm_forward.3} parent=15 // pred_check_branch
        %567 = sbr.rel (%p565) target = $region20
      $region19: #{physics_constraint_ssm_forward.3} parent=15 // pred_region
        %p568 = scmp.lt.s32.totalorder %s26, 1
        %s569 = scalar_select %p568, %s26, 1
        %s570 = smul.addr %s569, 2
        %s571 = smul.addr %s570, 8
        %s572 = scalar_lea.vmem %s0, %s571
      $region20: #{physics_constraint_ssm_forward.3} parent=15 // pred_fallthru
        _
      // Predicated region
      $region21: #{physics_constraint_ssm_forward.3} parent=15 // pred_check
        %p573 = pneg %p72
      $region22: #{physics_constraint_ssm_forward.3} parent=15 // pred_check_branch
        %575 = sbr.rel (%p573) target = $region24
      $region23: #{physics_constraint_ssm_forward.3} parent=15 // pred_region
        %p576 = scmp.lt.s32.totalorder %s26, 1
        %s577 = scalar_select %p576, %s26, 1
        %s578 = scalar_lea.vmem %s1, %s577
      $region24: #{physics_constraint_ssm_forward.3} parent=15 // pred_fallthru
        _
      // Predicated region
      $region25: #{physics_constraint_ssm_forward.3} parent=15 // pred_check
        %p579 = pneg %p98
      $region26: #{physics_constraint_ssm_forward.3} parent=15 // pred_check_branch
        %581 = sbr.rel (%p579) target = $region28
      $region27: #{physics_constraint_ssm_forward.3} parent=15 // pred_region
        %p582 = scmp.lt.s32.totalorder %s26, 1
        %s583 = scalar_select %p582, %s26, 1
        %s584 = scalar_lea.vmem %s2, %s583
      $region28: #{physics_constraint_ssm_forward.3} parent=15 // pred_fallthru
        _
      // Predicated region
      $region29: #{physics_constraint_ssm_forward.3} parent=15 // pred_check
        %p585 = pneg %p124
      $region30: #{physics_constraint_ssm_forward.3} parent=15 // pred_check_branch
        %587 = sbr.rel (%p585) target = $region32
      $region31: #{physics_constraint_ssm_forward.3} parent=15 // pred_region
        %p588 = scmp.lt.s32.totalorder %s26, 1
        %s589 = scalar_select %p588, %s26, 1
        %s590 = smul.addr %s589, 2
        %s591 = smul.addr %s590, 8
        %s592 = scalar_lea.vmem %s3, %s591
      $region32: #{physics_constraint_ssm_forward.3} parent=15 // pred_fallthru
        _
      // Predicated region
      $region33: #{physics_constraint_ssm_forward.3} parent=15 // pred_check
        %p593 = pneg %p150
      $region34: #{physics_constraint_ssm_forward.3} parent=15 // pred_check_branch
        %595 = sbr.rel (%p593) target = $region36
      $region35: #{physics_constraint_ssm_forward.3} parent=15 // pred_region
        %p596 = scmp.lt.s32.totalorder %s26, 1
        %s597 = scalar_select %p596, %s26, 1
        %s598 = smul.addr %s597, 2
        %s599 = smul.addr %s598, 8
        %s600 = scalar_lea.vmem %s4, %s599
      $region36: #{physics_constraint_ssm_forward.3} parent=15 // pred_fallthru
        _
      // Predicated region
      $region37: #{physics_constraint_ssm_forward.3} parent=15 // pred_check
        %p601 = pneg %p176
      $region38: #{physics_constraint_ssm_forward.3} parent=15 // pred_check_branch
        %603 = sbr.rel (%p601) target = $region40
      $region39: #{physics_constraint_ssm_forward.3} parent=15 // pred_region
        %p604 = scmp.lt.s32.totalorder %s26, 1
        %s605 = scalar_select %p604, %s26, 1
        %s606 = scalar_lea.vmem %s5, %s605
      $region40: #{physics_constraint_ssm_forward.3} parent=15 // pred_fallthru
        _
      // Predicated region
      $region41: #{physics_constraint_ssm_forward.3} parent=15 // pred_check
        %p607 = pneg %p202
      $region42: #{physics_constraint_ssm_forward.3} parent=15 // pred_check_branch
        %609 = sbr.rel (%p607) target = $region44
      $region43: #{physics_constraint_ssm_forward.3} parent=15 // pred_region
        %p610 = scmp.lt.s32.totalorder %s26, 1
        %s611 = scalar_select %p610, %s26, 1
        %s612 = scalar_lea.vmem %s6, %s611
      $region44: #{physics_constraint_ssm_forward.3} parent=15 // pred_fallthru
        _
      // Predicated region
      $region45: #{physics_constraint_ssm_forward.3} parent=15 // pred_check
        %p613 = pneg %p228
      $region46: #{physics_constraint_ssm_forward.3} parent=15 // pred_check_branch
        %615 = sbr.rel (%p613) target = $region48
      $region47: #{physics_constraint_ssm_forward.3} parent=15 // pred_region
        %p616 = scmp.lt.s32.totalorder %s26, 1
        %s617 = scalar_select %p616, %s26, 1
        %s618 = smul.addr %s617, 2
        %s619 = smul.addr %s618, 8
        %s620 = scalar_lea.vmem %s7, %s619
      $region48: #{physics_constraint_ssm_forward.3} parent=15 // pred_fallthru
        _
      // Predicated region
      $region49: #{physics_constraint_ssm_forward.3} parent=15 // pred_check
        %p621 = pneg %p254
      $region50: #{physics_constraint_ssm_forward.3} parent=15 // pred_check_branch
        %623 = sbr.rel (%p621) target = $region52
      $region51: #{physics_constraint_ssm_forward.3} parent=15 // pred_region
        %p624 = scmp.lt.s32.totalorder %s26, 1
        %s625 = scalar_select %p624, %s26, 1
        %s626 = smul.addr %s625, 2
        %s627 = smul.addr %s626, 8
        %s628 = scalar_lea.vmem %s8, %s627
      $region52: #{physics_constraint_ssm_forward.3} parent=15 // pred_fallthru
        _
      // Predicated region
      $region53: #{physics_constraint_ssm_forward.3} parent=15 // pred_check
        %p629 = pneg %p280
      $region54: #{physics_constraint_ssm_forward.3} parent=15 // pred_check_branch
        %631 = sbr.rel (%p629) target = $region56
      $region55: #{physics_constraint_ssm_forward.3} parent=15 // pred_region
        %p632 = scmp.lt.s32.totalorder %s26, 1
        %s633 = scalar_select %p632, %s26, 1
        %s634 = smul.addr %s633, 16
        %s635 = smul.addr %s634, 8
        %s636 = scalar_lea.vmem %s9, %s635
      $region56: #{physics_constraint_ssm_forward.3} parent=15 // pred_fallthru
        _
      // Predicated region
      $region57: #{physics_constraint_ssm_forward.3} parent=15 // pred_check
        %p637 = pneg %p306
      $region58: #{physics_constraint_ssm_forward.3} parent=15 // pred_check_branch
        %639 = sbr.rel (%p637) target = $region60
      $region59: #{physics_constraint_ssm_forward.3} parent=15 // pred_region
        %p640 = scmp.lt.s32.totalorder %s26, 1
        %s641 = scalar_select %p640, %s26, 1
        %s642 = smul.addr %s641, 16
        %s643 = smul.addr %s642, 8
        %s644 = scalar_lea.vmem %s10, %s643
      $region60: #{physics_constraint_ssm_forward.3} parent=15 // pred_fallthru
        _
      // Predicated region
      $region61: #{physics_constraint_ssm_forward.3} parent=15 // pred_check
        %p645 = pneg %p332
      $region62: #{physics_constraint_ssm_forward.3} parent=15 // pred_check_branch
        %647 = sbr.rel (%p645) target = $region64
      $region63: #{physics_constraint_ssm_forward.3} parent=15 // pred_region
        %p648 = scmp.lt.s32.totalorder %s26, 1
        %s649 = scalar_select %p648, %s26, 1
        %s650 = scalar_lea.vmem %s11, %s649
      $region64: #{physics_constraint_ssm_forward.3} parent=15 // pred_fallthru
        _
      // Predicated region
      $region65: #{physics_constraint_ssm_forward.3} parent=15 // pred_check
        %p651 = pneg %p358
      $region66: #{physics_constraint_ssm_forward.3} parent=15 // pred_check_branch
        %653 = sbr.rel (%p651) target = $region68
      $region67: #{physics_constraint_ssm_forward.3} parent=15 // pred_region
        %p654 = scmp.lt.s32.totalorder %s26, 1
        %s655 = scalar_select %p654, %s26, 1
        %s656 = scalar_lea.vmem %s12, %s655
      $region68: #{physics_constraint_ssm_forward.3} parent=15 // pred_fallthru
        _
      // Predicated region
      $region69: #{physics_constraint_ssm_forward.3} parent=15 // pred_check
        %p657 = pneg %p384
      $region70: #{physics_constraint_ssm_forward.3} parent=15 // pred_check_branch
        %659 = sbr.rel (%p657) target = $region72
      $region71: #{physics_constraint_ssm_forward.3} parent=15 // pred_region
        %p660 = scmp.lt.s32.totalorder %s26, 1
        %s661 = scalar_select %p660, %s26, 1
        %s662 = scalar_lea.vmem %s13, %s661
      $region72: #{physics_constraint_ssm_forward.3} parent=15 // pred_fallthru
        _
      // Predicated region
      $region73: #{physics_constraint_ssm_forward.3} parent=15 // pred_check
        %p663 = pneg %p410
      $region74: #{physics_constraint_ssm_forward.3} parent=15 // pred_check_branch
        %665 = sbr.rel (%p663) target = $region76
      $region75: #{physics_constraint_ssm_forward.3} parent=15 // pred_region
        %p666 = scmp.lt.s32.totalorder %s26, 1
        %s667 = scalar_select %p666, %s26, 1
        %s668 = smul.addr %s667, 2
        %s669 = smul.addr %s668, 8
        %s670 = scalar_lea.vmem %s14, %s669
      $region76: #{physics_constraint_ssm_forward.3} parent=15 // pred_fallthru
        _
      // Predicated region
      $region77: #{physics_constraint_ssm_forward.3} parent=15 // pred_check
        %p671 = pneg %p436
      $region78: #{physics_constraint_ssm_forward.3} parent=15 // pred_check_branch
        %673 = sbr.rel (%p671) target = $region80
      $region79: #{physics_constraint_ssm_forward.3} parent=15 // pred_region
        %p674 = scmp.lt.s32.totalorder %s26, 1
        %s675 = scalar_select %p674, %s26, 1
        %s676 = smul.addr %s675, 2
        %s677 = smul.addr %s676, 8
        %s678 = scalar_lea.vmem %s15, %s677
      $region80: #{physics_constraint_ssm_forward.3} parent=15 // pred_fallthru
        _
      // Predicated region
      $region81: #{physics_constraint_ssm_forward.3} parent=15 // pred_check
        %p679 = pneg %p462
      $region82: #{physics_constraint_ssm_forward.3} parent=15 // pred_check_branch
        %681 = sbr.rel (%p679) target = $region84
      $region83: #{physics_constraint_ssm_forward.3} parent=15 // pred_region
        %p682 = scmp.lt.s32.totalorder %s26, 1
        %s683 = scalar_select %p682, %s26, 1
        %s684 = smul.addr %s683, 2
        %s685 = smul.addr %s684, 8
        %s686 = scalar_lea.vmem %s16, %s685
      $region84: #{physics_constraint_ssm_forward.3} parent=15 // pred_fallthru
        _
    $region16: #{physics_constraint_ssm_forward.3} parent=5 // pred_fallthru
      _
    %p687 = scmp.le.s32.totalorder 1, %s26
    %p688 = scmp.lt.s32.totalorder %s26, 3
    %p689 = pnand %p687, %p688
    %p690 = pneg %p689
    // Predicated region
    $region85: #{physics_constraint_ssm_forward.3} parent=5 // pred_check
      _
    $region86: #{physics_constraint_ssm_forward.3} parent=5 // pred_check_branch
      %692 = sbr.rel (%p689) target = $region88
    $region87: #{physics_constraint_ssm_forward.3} parent=5 // pred_region
      %s693 = ssub.s32 %s26, 1
      %p694 = scmp.lt.s32.totalorder %s31, 1
      %s695 = scalar_select %p694, %s31, 1
      %s696 = smul.addr %s695, 2
      %s697 = smul.addr %s696, 8
      %s698 = scalar_lea.vmem %s0, %s697
      %p699 = pneg %p52
      %p700 = pneg %p49
      %p701 = scmp.lt.s32.totalorder %s31, 1
      %s702 = scalar_select %p701, %s31, 1
      %s703 = scalar_lea.vmem %s1, %s702
      %p704 = pneg %p78
      %p705 = pneg %p75
      %p706 = scmp.lt.s32.totalorder %s31, 1
      %s707 = scalar_select %p706, %s31, 1
      %s708 = scalar_lea.vmem %s2, %s707
      %p709 = pneg %p104
      %p710 = pneg %p101
      %p711 = scmp.lt.s32.totalorder %s31, 1
      %s712 = scalar_select %p711, %s31, 1
      %s713 = smul.addr %s712, 2
      %s714 = smul.addr %s713, 8
      %s715 = scalar_lea.vmem %s3, %s714
      %p716 = pneg %p130
      %p717 = pneg %p127
      %p718 = scmp.lt.s32.totalorder %s31, 1
      %s719 = scalar_select %p718, %s31, 1
      %s720 = smul.addr %s719, 2
      %s721 = smul.addr %s720, 8
      %s722 = scalar_lea.vmem %s4, %s721
      %p723 = pneg %p156
      %p724 = pneg %p153
      %p725 = scmp.lt.s32.totalorder %s31, 1
      %s726 = scalar_select %p725, %s31, 1
      %s727 = scalar_lea.vmem %s5, %s726
      %p728 = pneg %p182
      %p729 = pneg %p179
      %p730 = scmp.lt.s32.totalorder %s31, 1
      %s731 = scalar_select %p730, %s31, 1
      %s732 = scalar_lea.vmem %s6, %s731
      %p733 = pneg %p208
      %p734 = pneg %p205
      %p735 = scmp.lt.s32.totalorder %s31, 1
      %s736 = scalar_select %p735, %s31, 1
      %s737 = smul.addr %s736, 2
      %s738 = smul.addr %s737, 8
      %s739 = scalar_lea.vmem %s7, %s738
      %p740 = pneg %p234
      %p741 = pneg %p231
      %p742 = scmp.lt.s32.totalorder %s31, 1
      %s743 = scalar_select %p742, %s31, 1
      %s744 = smul.addr %s743, 2
      %s745 = smul.addr %s744, 8
      %s746 = scalar_lea.vmem %s8, %s745
      %p747 = pneg %p260
      %p748 = pneg %p257
      %p749 = scmp.lt.s32.totalorder %s31, 1
      %s750 = scalar_select %p749, %s31, 1
      %s751 = smul.addr %s750, 16
      %s752 = smul.addr %s751, 8
      %s753 = scalar_lea.vmem %s9, %s752
      %p754 = pneg %p286
      %p755 = pneg %p283
      %p756 = scmp.lt.s32.totalorder %s31, 1
      %s757 = scalar_select %p756, %s31, 1
      %s758 = smul.addr %s757, 16
      %s759 = smul.addr %s758, 8
      %s760 = scalar_lea.vmem %s10, %s759
      %p761 = pneg %p312
      %p762 = pneg %p309
      %p763 = scmp.lt.s32.totalorder %s31, 1
      %s764 = scalar_select %p763, %s31, 1
      %s765 = scalar_lea.vmem %s11, %s764
      %p766 = pneg %p338
      %p767 = pneg %p335
      %p768 = scmp.lt.s32.totalorder %s31, 1
      %s769 = scalar_select %p768, %s31, 1
      %s770 = scalar_lea.vmem %s12, %s769
      %p771 = pneg %p364
      %p772 = pneg %p361
      %p773 = scmp.lt.s32.totalorder %s31, 1
      %s774 = scalar_select %p773, %s31, 1
      %s775 = scalar_lea.vmem %s13, %s774
      %p776 = pneg %p390
      %p777 = pneg %p387
      %p778 = scmp.lt.s32.totalorder %s31, 1
      %s779 = scalar_select %p778, %s31, 1
      %s780 = smul.addr %s779, 2
      %s781 = smul.addr %s780, 8
      %s782 = scalar_lea.vmem %s14, %s781
      %p783 = pneg %p416
      %p784 = pneg %p413
      %p785 = scmp.lt.s32.totalorder %s31, 1
      %s786 = scalar_select %p785, %s31, 1
      %s787 = smul.addr %s786, 2
      %s788 = smul.addr %s787, 8
      %s789 = scalar_lea.vmem %s15, %s788
      %p790 = pneg %p442
      %p791 = pneg %p439
      %p792 = scmp.lt.s32.totalorder %s31, 1
      %s793 = scalar_select %p792, %s31, 1
      %s794 = smul.addr %s793, 2
      %s795 = smul.addr %s794, 8
      %s796 = scalar_lea.vmem %s16, %s795
      %p797 = pneg %p468
      %p798 = pneg %p465
      %p799 = pneg %p494
      %p800 = pneg %p491
      %p801 = scmp.lt.s32.totalorder %s31, 1
      %s802 = scalar_select %p801, %s31, 1
      %s803 = smul.addr %s802, 2
      %s804 = smul.addr %s803, 8
      %s805 = scalar_lea.vmem %s17, %s804
      %p806 = pneg %p520
      %p807 = pneg %p517
      %p808 = scmp.lt.s32.totalorder %s31, 1
      %s809 = scalar_select %p808, %s31, 1
      %s810 = smul.addr %s809, 2
      %s811 = scalar_lea.vmem %s18, %s810
      %p812 = pneg %p546
      %p813 = pneg %p543
      %p814 = scmp.lt.s32.totalorder %s31, 1
      %s815 = scalar_select %p814, %s31, 1
      %s816 = smul.addr %s815, 2
      %s817 = scalar_lea.vmem %s19, %s816
      %p818 = scmp.lt.s32.totalorder %s31, 1
      %s819 = scalar_select %p818, %s31, 1
      %s820 = smul.addr %s819, 2
      %s821 = smul.addr %s820, 8
      %s822 = scalar_lea.vmem %s0, %s821
      %p823 = scmp.lt.s32.totalorder %s31, 1
      %s824 = scalar_select %p823, %s31, 1
      %s825 = scalar_lea.vmem %s1, %s824
      %p826 = scmp.lt.s32.totalorder %s31, 1
      %s827 = scalar_select %p826, %s31, 1
      %s828 = scalar_lea.vmem %s2, %s827
      %p829 = scmp.lt.s32.totalorder %s31, 1
      %s830 = scalar_select %p829, %s31, 1
      %s831 = smul.addr %s830, 2
      %s832 = smul.addr %s831, 8
      %s833 = scalar_lea.vmem %s3, %s832
      %p834 = scmp.lt.s32.totalorder %s31, 1
      %s835 = scalar_select %p834, %s31, 1
      %s836 = smul.addr %s835, 2
      %s837 = smul.addr %s836, 8
      %s838 = scalar_lea.vmem %s4, %s837
      %p839 = scmp.lt.s32.totalorder %s31, 1
      %s840 = scalar_select %p839, %s31, 1
      %s841 = scalar_lea.vmem %s5, %s840
      %p842 = scmp.lt.s32.totalorder %s31, 1
      %s843 = scalar_select %p842, %s31, 1
      %s844 = scalar_lea.vmem %s6, %s843
      %p845 = scmp.lt.s32.totalorder %s31, 1
      %s846 = scalar_select %p845, %s31, 1
      %s847 = smul.addr %s846, 2
      %s848 = smul.addr %s847, 8
      %s849 = scalar_lea.vmem %s7, %s848
      %p850 = scmp.lt.s32.totalorder %s31, 1
      %s851 = scalar_select %p850, %s31, 1
      %s852 = smul.addr %s851, 2
      %s853 = smul.addr %s852, 8
      %s854 = scalar_lea.vmem %s8, %s853
      %p855 = scmp.lt.s32.totalorder %s31, 1
      %s856 = scalar_select %p855, %s31, 1
      %s857 = smul.addr %s856, 16
      %s858 = smul.addr %s857, 8
      %s859 = scalar_lea.vmem %s9, %s858
      %p860 = scmp.lt.s32.totalorder %s31, 1
      %s861 = scalar_select %p860, %s31, 1
      %s862 = smul.addr %s861, 16
      %s863 = smul.addr %s862, 8
      %s864 = scalar_lea.vmem %s10, %s863
      %p865 = scmp.lt.s32.totalorder %s31, 1
      %s866 = scalar_select %p865, %s31, 1
      %s867 = scalar_lea.vmem %s11, %s866
      %p868 = scmp.lt.s32.totalorder %s31, 1
      %s869 = scalar_select %p868, %s31, 1
      %s870 = scalar_lea.vmem %s12, %s869
      %p871 = scmp.lt.s32.totalorder %s31, 1
      %s872 = scalar_select %p871, %s31, 1
      %s873 = scalar_lea.vmem %s13, %s872
      %p874 = scmp.lt.s32.totalorder %s31, 1
      %s875 = scalar_select %p874, %s31, 1
      %s876 = smul.addr %s875, 2
      %s877 = smul.addr %s876, 8
      %s878 = scalar_lea.vmem %s14, %s877
      %p879 = scmp.lt.s32.totalorder %s31, 1
      %s880 = scalar_select %p879, %s31, 1
      %s881 = smul.addr %s880, 2
      %s882 = smul.addr %s881, 8
      %s883 = scalar_lea.vmem %s15, %s882
      %p884 = scmp.lt.s32.totalorder %s31, 1
      %s885 = scalar_select %p884, %s31, 1
      %s886 = smul.addr %s885, 2
      %s887 = smul.addr %s886, 8
      %s888 = scalar_lea.vmem %s16, %s887
      %p889 = scmp.lt.s32.totalorder %s31, 1
      %s890 = scalar_select %p889, %s31, 1
      %s891 = smul.addr %s890, 2
      %s892 = smul.addr %s891, 8
      %s893 = scalar_lea.vmem %s17, %s892
      %p894 = scmp.lt.s32.totalorder %s31, 1
      %s895 = scalar_select %p894, %s31, 1
      %s896 = smul.addr %s895, 2
      %s897 = scalar_lea.vmem %s18, %s896
      %p898 = scmp.lt.s32.totalorder %s31, 1
      %s899 = scalar_select %p898, %s31, 1
      %s900 = smul.addr %s899, 2
      %s901 = scalar_lea.vmem %s19, %s900
      %v902 = vld [vmem:[%s822] sm:$0xff]
      %v903 = vld [vmem:[%s822 + $0x8] sm:$0xff]
      %v904 = vld [vmem:[%s825] sm:$0x1]
      %v905 = vld [vmem:[%s828] sm:$0x1]
      %vm906 = vcmask 130048
      %v907 = vsel %vm906, %v902, 0.0
      %908 = vadd.xlane.f32.xlu0 %v907
      %v909 = vpop.xlane.xlu0 %908
      %v910 = vsel %vm906, %v903, 0.0
      %911 = vadd.xlane.f32.xlu0 %v910
      %v912 = vpop.xlane.xlu0 %911
      %v913 = vrcp.pop 16.0
      %v914 = vmul.f32 %v909, %v913
      %v915 = vmul.f32 %v912, %v913
      %v916 = vsub.f32 %v902, %v914
      %v917 = vsub.f32 %v903, %v915
      %v918 = vmul.f32 %v916, %v916
      %v919 = vmul.f32 %v917, %v917
      %v920 = vsel %vm906, %v918, 0.0
      %921 = vadd.xlane.f32.xlu0 %v920
      %v922 = vpop.xlane.xlu0 %921
      %v923 = vsel %vm906, %v919, 0.0
      %924 = vadd.xlane.f32.xlu0 %v923
      %v925 = vpop.xlane.xlu0 %924
      %v926 = vmul.f32 %v922, %v913
      %v927 = vmul.f32 %v925, %v913
      %v928 = vadd.f32 %v926, 1e-05
      %v929 = vadd.f32 %v927, 1e-05
      %v930 = vrsqrt.pop %v928
      %v931 = vrsqrt.pop %v929
      %v932 = vmul.f32 %v916, %v930
      %v933 = vmul.f32 %v917, %v931
      %v935 = vlaneseq
      %v936 = vshrl.u32 %v935, 7
      %v937 = vsub.s32 0, %v936
      %v938 = vrot.slane %v904, %v937
      %v940 = vmul.f32 %v932, %v938
      %v941 = vmul.f32 %v933, %v938
      %v943 = vlaneseq
      %v944 = vshrl.u32 %v943, 7
      %v945 = vsub.s32 0, %v944
      %v946 = vrot.slane %v905, %v945
      %v948 = vadd.f32 %v940, %v946
      %v949 = vadd.f32 %v941, %v946
      %v950 = vld [vmem:[%s849] sm:$0xff]
      %v951 = vld [vmem:[%s849 + $0x8] sm:$0xff]
      %v953 = vsel %vm906, %v948, 0
      %v956 = vsel %vm906, %v949, 0
      %958 = vmatprep.subr.mxu0 0.0
      %959 = vmatpush1.msra.mxu0 %v950
      %960 = vmatprep.subr.mxu0 0.0
      %961 = vmatpush1.msra.mxu0 %v951
      %962 = vmatprep.subr.mxu0 0.0
      %963 = vmatpush1.msra.mxu0 0.0
      %964 = vmatprep.subr.mxu0 0.0
      %965 = vmatpush1.msra.mxu0 0.0
      %966 = vmatprep.subr.mxu0 0.0
      %967 = vmatpush1.msra.mxu0 0.0
      %968 = vmatprep.subr.mxu0 0.0
      %969 = vmatpush1.msra.mxu0 0.0
      %970 = vmatprep.subr.mxu0 0.0
      %971 = vmatpush1.msra.mxu0 0.0
      %972 = vmatprep.subr.mxu0 0.0
      %973 = vmatpush1.msra.mxu0 0.0
      %974 = vmatprep.subr.mxu0 0.0
      %975 = vmatpush1.msra.mxu0 0.0
      %976 = vmatprep.subr.mxu0 0.0
      %977 = vmatpush1.msra.mxu0 0.0
      %978 = vmatprep.subr.mxu0 0.0
      %979 = vmatpush1.msra.mxu0 0.0
      %980 = vmatprep.subr.mxu0 0.0
      %981 = vmatpush1.msra.mxu0 0.0
      %982 = vmatprep.subr.mxu0 0.0
      %983 = vmatpush1.msra.mxu0 0.0
      %984 = vmatprep.subr.mxu0 0.0
      %985 = vmatpush1.msra.mxu0 0.0
      %986 = vmatprep.subr.mxu0 0.0
      %987 = vmatpush1.msra.mxu0 0.0
      %988 = vmatprep.subr.mxu0 0.0
      %989 = vmatpush1.msra.mxu0 0.0
      %990 = vmatprep.subr.mxu0 0.0
      %991 = vmatpush1.msra.mxu0 0.0
      %992 = vmatprep.subr.mxu0 0.0
      %993 = vmatpush1.msra.mxu0 0.0
      %994 = vmatprep.subr.mxu0 0.0
      %995 = vmatpush1.msra.mxu0 0.0
      %996 = vmatprep.subr.mxu0 0.0
      %997 = vmatpush1.msra.mxu0 0.0
      %998 = vmatprep.subr.mxu0 0.0
      %999 = vmatpush1.msra.mxu0 0.0
      %1000 = vmatprep.subr.mxu0 0.0
      %1001 = vmatpush1.msra.mxu0 0.0
      %1002 = vmatprep.subr.mxu0 0.0
      %1003 = vmatpush1.msra.mxu0 0.0
      %1004 = vmatprep.subr.mxu0 0.0
      %1005 = vmatpush1.msra.mxu0 0.0
      %1006 = vmatprep.subr.mxu0 0.0
      %1007 = vmatpush1.msra.mxu0 0.0
      %1008 = vmatprep.subr.mxu0 0.0
      %1009 = vmatpush1.msra.mxu0 0.0
      %1010 = vmatprep.subr.mxu0 0.0
      %1011 = vmatpush1.msra.mxu0 0.0
      %1012 = vmatprep.subr.mxu0 0.0
      %1013 = vmatpush1.msra.mxu0 0.0
      %1014 = vmatprep.subr.mxu0 0.0
      %1015 = vmatpush1.msra.mxu0 0.0
      %1016 = vmatprep.subr.mxu0 0.0
      %1017 = vmatpush1.msra.mxu0 0.0
      %1018 = vmatprep.subr.mxu0 0.0
      %1019 = vmatpush1.msra.mxu0 0.0
      %1020 = vmatprep.subr.mxu0 0.0
      %1021 = vmatpush1.msra.mxu0 0.0
      %1022 = vmatprep.mubr.f32.mxu0 0.0
      %1023 = vmatmul.mubr.f32.gmra.mrb[0].mxu0 %v953
      %v1024 = vpop.f32.mrb[0].mxu0
      %v1025 = vadd.f32 0.0, %v1024
      %v1026 = vpop.f32.mrb[0].mxu0
      %1027 = vmatprep.mubr.f32.mxu0 0.0
      %1028 = vmatmul.mubr.f32.gmra.mrb[0].mxu0 %v956
      %v1029 = vpop.f32.mrb[0].mxu0
      %v1030 = vadd.f32 0.0, %v1029
      %v1031 = vpop.f32.mrb[0].mxu0
      %1032 = vdwg.mxu0
      %v1033 = vld [vmem:[%s854] sm:$0xff]
      %v1034 = vld [vmem:[%s854 + $0x8] sm:$0xff]
      %1035 = vmatprep.subr.mxu0 0.0
      %1036 = vmatpush1.msra.mxu0 %v1033
      %1037 = vmatprep.subr.mxu0 0.0
      %1038 = vmatpush1.msra.mxu0 %v1034
      %1039 = vmatprep.subr.mxu0 0.0
      %1040 = vmatpush1.msra.mxu0 0.0
      %1041 = vmatprep.subr.mxu0 0.0
      %1042 = vmatpush1.msra.mxu0 0.0
      %1043 = vmatprep.subr.mxu0 0.0
      %1044 = vmatpush1.msra.mxu0 0.0
      %1045 = vmatprep.subr.mxu0 0.0
      %1046 = vmatpush1.msra.mxu0 0.0
      %1047 = vmatprep.subr.mxu0 0.0
      %1048 = vmatpush1.msra.mxu0 0.0
      %1049 = vmatprep.subr.mxu0 0.0
      %1050 = vmatpush1.msra.mxu0 0.0
      %1051 = vmatprep.subr.mxu0 0.0
      %1052 = vmatpush1.msra.mxu0 0.0
      %1053 = vmatprep.subr.mxu0 0.0
      %1054 = vmatpush1.msra.mxu0 0.0
      %1055 = vmatprep.subr.mxu0 0.0
      %1056 = vmatpush1.msra.mxu0 0.0
      %1057 = vmatprep.subr.mxu0 0.0
      %1058 = vmatpush1.msra.mxu0 0.0
      %1059 = vmatprep.subr.mxu0 0.0
      %1060 = vmatpush1.msra.mxu0 0.0
      %1061 = vmatprep.subr.mxu0 0.0
      %1062 = vmatpush1.msra.mxu0 0.0
      %1063 = vmatprep.subr.mxu0 0.0
      %1064 = vmatpush1.msra.mxu0 0.0
      %1065 = vmatprep.subr.mxu0 0.0
      %1066 = vmatpush1.msra.mxu0 0.0
      %1067 = vmatprep.subr.mxu0 0.0
      %1068 = vmatpush1.msra.mxu0 0.0
      %1069 = vmatprep.subr.mxu0 0.0
      %1070 = vmatpush1.msra.mxu0 0.0
      %1071 = vmatprep.subr.mxu0 0.0
      %1072 = vmatpush1.msra.mxu0 0.0
      %1073 = vmatprep.subr.mxu0 0.0
      %1074 = vmatpush1.msra.mxu0 0.0
      %1075 = vmatprep.subr.mxu0 0.0
      %1076 = vmatpush1.msra.mxu0 0.0
      %1077 = vmatprep.subr.mxu0 0.0
      %1078 = vmatpush1.msra.mxu0 0.0
      %1079 = vmatprep.subr.mxu0 0.0
      %1080 = vmatpush1.msra.mxu0 0.0
      %1081 = vmatprep.subr.mxu0 0.0
      %1082 = vmatpush1.msra.mxu0 0.0
      %1083 = vmatprep.subr.mxu0 0.0
      %1084 = vmatpush1.msra.mxu0 0.0
      %1085 = vmatprep.subr.mxu0 0.0
      %1086 = vmatpush1.msra.mxu0 0.0
      %1087 = vmatprep.subr.mxu0 0.0
      %1088 = vmatpush1.msra.mxu0 0.0
      %1089 = vmatprep.subr.mxu0 0.0
      %1090 = vmatpush1.msra.mxu0 0.0
      %1091 = vmatprep.subr.mxu0 0.0
      %1092 = vmatpush1.msra.mxu0 0.0
      %1093 = vmatprep.subr.mxu0 0.0
      %1094 = vmatpush1.msra.mxu0 0.0
      %1095 = vmatprep.subr.mxu0 0.0
      %1096 = vmatpush1.msra.mxu0 0.0
      %1097 = vmatprep.subr.mxu0 0.0
      %1098 = vmatpush1.msra.mxu0 0.0
      %1099 = vmatprep.mubr.f32.mxu0 0.0
      %1100 = vmatmul.mubr.f32.gmra.mrb[0].mxu0 %v953
      %v1101 = vpop.f32.mrb[0].mxu0
      %v1102 = vadd.f32 0.0, %v1101
      %v1103 = vpop.f32.mrb[0].mxu0
      %1104 = vmatprep.mubr.f32.mxu0 0.0
      %1105 = vmatmul.mubr.f32.gmra.mrb[0].mxu0 %v956
      %v1106 = vpop.f32.mrb[0].mxu0
      %v1107 = vadd.f32 0.0, %v1106
      %v1108 = vpop.f32.mrb[0].mxu0
      %1109 = vdwg.mxu0
      %v1110 = vld [vmem:[%s833] sm:$0xff]
      %v1111 = vld [vmem:[%s833 + $0x8] sm:$0xff]
      %v1112 = vld [vmem:[%s838] sm:$0xff]
      %v1113 = vld [vmem:[%s838 + $0x8] sm:$0xff]
      %v1114 = vld [vmem:[%s841] sm:$0x1]
      %v1115 = vld [vmem:[%s844] sm:$0x1]
      %v1116 = vmul.f32 %v1114, %v1114
      %v1117 = vmul.f32 %v1115, %v1115
      %v1118 = vadd.f32 %v1116, %v1117
      %v1119 = vrcp.pop %v1118
      %v1120 = vmul.f32 1.0, %v1119
      %v1121 = vsub.f32 %v1110, 1.0
      %v1122 = vsub.f32 %v1111, 1.0
      %v1124 = vlaneseq
      %v1125 = vshrl.u32 %v1124, 7
      %v1126 = vsub.s32 0, %v1125
      %v1127 = vrot.slane %v1114, %v1126
      %v1129 = vmul.f32 %v1121, %v1127
      %v1130 = vmul.f32 %v1122, %v1127
      %v1132 = vlaneseq
      %v1133 = vshrl.u32 %v1132, 7
      %v1134 = vsub.s32 0, %v1133
      %v1135 = vrot.slane %v1115, %v1134
      %v1137 = vmul.f32 %v1112, %v1135
      %v1138 = vmul.f32 %v1113, %v1135
      %v1139 = vadd.f32 %v1129, %v1137
      %v1140 = vadd.f32 %v1130, %v1138
      %v1142 = vlaneseq
      %v1143 = vshrl.u32 %v1142, 7
      %v1144 = vsub.s32 0, %v1143
      %v1145 = vrot.slane %v1120, %v1144
      %v1147 = vmul.f32 %v1139, %v1145
      %v1148 = vmul.f32 %v1140, %v1145
      %v1149 = vmul.f32 %v1112, %v1127
      %v1150 = vmul.f32 %v1113, %v1127
      %v1151 = vmul.f32 %v1121, %v1135
      %v1152 = vmul.f32 %v1122, %v1135
      %v1153 = vsub.f32 %v1149, %v1151
      %v1154 = vsub.f32 %v1150, %v1152
      %v1155 = vmul.f32 %v1153, %v1145
      %v1156 = vmul.f32 %v1154, %v1145
      %v1157 = vmul.f32 %v1147, %v1025
      %v1158 = vmul.f32 %v1155, %v1102
      %v1159 = vsub.f32 %v1157, %v1158
      %v1160 = vmul.f32 %v1147, %v1102
      %v1161 = vmul.f32 %v1155, %v1025
      %v1162 = vadd.f32 %v1160, %v1161
      %v1163 = vmul.f32 %v1110, 0.0
      %v1164 = vmul.f32 %v1112, 0.0
      %v1165 = vsub.f32 %v1163, %v1164
      %v1166 = vadd.f32 %v1165, %v1159
      %v1167 = vadd.f32 %v1163, %v1164
      %v1168 = vadd.f32 %v1167, %v1162
      %1169 = vst [vmem:[#allocation2] sm:$0x3] %v1166
      %1170 = vst [vmem:[#allocation3] sm:$0x3] %v1168
      %v1172 = vrot.slane %v1166, 6
      %v1174 = vmul.f32 %v1110, %v1172
      %v1176 = vrot.slane %v1168, 6
      %v1178 = vmul.f32 %v1112, %v1176
      %v1179 = vsub.f32 %v1174, %v1178
      %v1180 = vadd.f32 %v1179, %v1159
      %v1181 = vmul.f32 %v1110, %v1176
      %v1182 = vmul.f32 %v1112, %v1172
      %v1183 = vadd.f32 %v1181, %v1182
      %v1184 = vadd.f32 %v1183, %v1162
      %1185 = vst [vmem:[#allocation2] sm:$0xc] %v1180
      %1186 = vst [vmem:[#allocation3] sm:$0xc] %v1184
      %v1188 = vrot.slane %v1180, 6
      %v1190 = vmul.f32 %v1110, %v1188
      %v1192 = vrot.slane %v1184, 6
      %v1194 = vmul.f32 %v1112, %v1192
      %v1195 = vsub.f32 %v1190, %v1194
      %v1196 = vadd.f32 %v1195, %v1159
      %v1197 = vmul.f32 %v1110, %v1192
      %v1198 = vmul.f32 %v1112, %v1188
      %v1199 = vadd.f32 %v1197, %v1198
      %v1200 = vadd.f32 %v1199, %v1162
      %1201 = vst [vmem:[#allocation2] sm:$0x30] %v1196
      %1202 = vst [vmem:[#allocation3] sm:$0x30] %v1200
      %v1204 = vrot.slane %v1196, 6
      %v1206 = vmul.f32 %v1110, %v1204
      %v1208 = vrot.slane %v1200, 6
      %v1210 = vmul.f32 %v1112, %v1208
      %v1211 = vsub.f32 %v1206, %v1210
      %v1212 = vadd.f32 %v1211, %v1159
      %v1213 = vmul.f32 %v1110, %v1208
      %v1214 = vmul.f32 %v1112, %v1204
      %v1215 = vadd.f32 %v1213, %v1214
      %v1216 = vadd.f32 %v1215, %v1162
      %1217 = vst [vmem:[#allocation2] sm:$0xc0] %v1212
      %1218 = vst [vmem:[#allocation3] sm:$0xc0] %v1216
      %v1219 = vmul.f32 %v1148, %v1030
      %v1220 = vmul.f32 %v1156, %v1107
      %v1221 = vsub.f32 %v1219, %v1220
      %v1222 = vmul.f32 %v1148, %v1107
      %v1223 = vmul.f32 %v1156, %v1030
      %v1224 = vadd.f32 %v1222, %v1223
      %v1226 = vrot.slane %v1212, 6
      %v1228 = vmul.f32 %v1111, %v1226
      %v1230 = vrot.slane %v1216, 6
      %v1232 = vmul.f32 %v1113, %v1230
      %v1233 = vsub.f32 %v1228, %v1232
      %v1234 = vadd.f32 %v1233, %v1221
      %v1235 = vmul.f32 %v1111, %v1230
      %v1236 = vmul.f32 %v1113, %v1226
      %v1237 = vadd.f32 %v1235, %v1236
      %v1238 = vadd.f32 %v1237, %v1224
      %1239 = vst [vmem:[#allocation2 + $0x8] sm:$0x3] %v1234
      %1240 = vst [vmem:[#allocation3 + $0x8] sm:$0x3] %v1238
      %v1242 = vrot.slane %v1234, 6
      %v1244 = vmul.f32 %v1111, %v1242
      %v1246 = vrot.slane %v1238, 6
      %v1248 = vmul.f32 %v1113, %v1246
      %v1249 = vsub.f32 %v1244, %v1248
      %v1250 = vadd.f32 %v1249, %v1221
      %v1251 = vmul.f32 %v1111, %v1246
      %v1252 = vmul.f32 %v1113, %v1242
      %v1253 = vadd.f32 %v1251, %v1252
      %v1254 = vadd.f32 %v1253, %v1224
      %1255 = vst [vmem:[#allocation2 + $0x8] sm:$0xc] %v1250
      %1256 = vst [vmem:[#allocation3 + $0x8] sm:$0xc] %v1254
      %v1258 = vrot.slane %v1250, 6
      %v1260 = vmul.f32 %v1111, %v1258
      %v1262 = vrot.slane %v1254, 6
      %v1264 = vmul.f32 %v1113, %v1262
      %v1265 = vsub.f32 %v1260, %v1264
      %v1266 = vadd.f32 %v1265, %v1221
      %v1267 = vmul.f32 %v1111, %v1262
      %v1268 = vmul.f32 %v1113, %v1258
      %v1269 = vadd.f32 %v1267, %v1268
      %v1270 = vadd.f32 %v1269, %v1224
      %1271 = vst [vmem:[#allocation2 + $0x8] sm:$0x30] %v1266
      %1272 = vst [vmem:[#allocation3 + $0x8] sm:$0x30] %v1270
      %v1274 = vrot.slane %v1266, 6
      %v1276 = vmul.f32 %v1111, %v1274
      %v1278 = vrot.slane %v1270, 6
      %v1280 = vmul.f32 %v1113, %v1278
      %v1281 = vsub.f32 %v1276, %v1280
      %v1282 = vadd.f32 %v1281, %v1221
      %v1283 = vmul.f32 %v1111, %v1278
      %v1284 = vmul.f32 %v1113, %v1274
      %v1285 = vadd.f32 %v1283, %v1284
      %v1286 = vadd.f32 %v1285, %v1224
      %1287 = vst [vmem:[#allocation2 + $0x8] sm:$0xc0] %v1282
      %1288 = vst [vmem:[#allocation3 + $0x8] sm:$0xc0] %v1286
      %1289 = vst [vmem:[%s897 - $0x6] sm:$0xc0] %v1282
      %1290 = vst [vmem:[%s901 - $0x6] sm:$0xc0] %v1286
      %v1291 = vld [vmem:[#allocation2] sm:$0xff]
      %v1292 = vld [vmem:[#allocation2 + $0x8] sm:$0xff]
      %v1293 = vld [vmem:[%s859] sm:$0xff]
      %v1294 = vld [vmem:[%s859 + $0x8] sm:$0xff]
      %v1295 = vld [vmem:[%s859 + $0x10] sm:$0xff]
      %v1296 = vld [vmem:[%s859 + $0x18] sm:$0xff]
      %v1297 = vld [vmem:[%s859 + $0x20] sm:$0xff]
      %v1298 = vld [vmem:[%s859 + $0x28] sm:$0xff]
      %v1299 = vld [vmem:[%s859 + $0x30] sm:$0xff]
      %v1300 = vld [vmem:[%s859 + $0x38] sm:$0xff]
      %v1301 = vld [vmem:[%s859 + $0x40] sm:$0xff]
      %v1302 = vld [vmem:[%s859 + $0x48] sm:$0xff]
      %v1303 = vld [vmem:[%s859 + $0x50] sm:$0xff]
      %v1304 = vld [vmem:[%s859 + $0x58] sm:$0xff]
      %v1305 = vld [vmem:[%s859 + $0x60] sm:$0xff]
      %v1306 = vld [vmem:[%s859 + $0x68] sm:$0xff]
      %v1307 = vld [vmem:[%s859 + $0x70] sm:$0xff]
      %v1308 = vld [vmem:[%s859 + $0x78] sm:$0xff]
      %1309 = vmatprep.subr.mxu0 0.0
      %1310 = vmatpush1.msra.mxu0 %v1293
      %1311 = vmatprep.subr.mxu0 0.0
      %1312 = vmatpush1.msra.mxu0 %v1294
      %1313 = vmatprep.subr.mxu0 0.0
      %1314 = vmatpush1.msra.mxu0 %v1295
      %1315 = vmatprep.subr.mxu0 0.0
      %1316 = vmatpush1.msra.mxu0 %v1296
      %1317 = vmatprep.subr.mxu0 0.0
      %1318 = vmatpush1.msra.mxu0 %v1297
      %1319 = vmatprep.subr.mxu0 0.0
      %1320 = vmatpush1.msra.mxu0 %v1298
      %1321 = vmatprep.subr.mxu0 0.0
      %1322 = vmatpush1.msra.mxu0 %v1299
      %1323 = vmatprep.subr.mxu0 0.0
      %1324 = vmatpush1.msra.mxu0 %v1300
      %1325 = vmatprep.subr.mxu0 0.0
      %1326 = vmatpush1.msra.mxu0 %v1301
      %1327 = vmatprep.subr.mxu0 0.0
      %1328 = vmatpush1.msra.mxu0 %v1302
      %1329 = vmatprep.subr.mxu0 0.0
      %1330 = vmatpush1.msra.mxu0 %v1303
      %1331 = vmatprep.subr.mxu0 0.0
      %1332 = vmatpush1.msra.mxu0 %v1304
      %1333 = vmatprep.subr.mxu0 0.0
      %1334 = vmatpush1.msra.mxu0 %v1305
      %1335 = vmatprep.subr.mxu0 0.0
      %1336 = vmatpush1.msra.mxu0 %v1306
      %1337 = vmatprep.subr.mxu0 0.0
      %1338 = vmatpush1.msra.mxu0 %v1307
      %1339 = vmatprep.subr.mxu0 0.0
      %1340 = vmatpush1.msra.mxu0 %v1308
      %1341 = vmatprep.subr.mxu0 0.0
      %1342 = vmatpush1.msra.mxu0 0.0
      %1343 = vmatprep.subr.mxu0 0.0
      %1344 = vmatpush1.msra.mxu0 0.0
      %1345 = vmatprep.subr.mxu0 0.0
      %1346 = vmatpush1.msra.mxu0 0.0
      %1347 = vmatprep.subr.mxu0 0.0
      %1348 = vmatpush1.msra.mxu0 0.0
      %1349 = vmatprep.subr.mxu0 0.0
      %1350 = vmatpush1.msra.mxu0 0.0
      %1351 = vmatprep.subr.mxu0 0.0
      %1352 = vmatpush1.msra.mxu0 0.0
      %1353 = vmatprep.subr.mxu0 0.0
      %1354 = vmatpush1.msra.mxu0 0.0
      %1355 = vmatprep.subr.mxu0 0.0
      %1356 = vmatpush1.msra.mxu0 0.0
      %1357 = vmatprep.subr.mxu0 0.0
      %1358 = vmatpush1.msra.mxu0 0.0
      %1359 = vmatprep.subr.mxu0 0.0
      %1360 = vmatpush1.msra.mxu0 0.0
      %1361 = vmatprep.subr.mxu0 0.0
      %1362 = vmatpush1.msra.mxu0 0.0
      %1363 = vmatprep.subr.mxu0 0.0
      %1364 = vmatpush1.msra.mxu0 0.0
      %1365 = vmatprep.subr.mxu0 0.0
      %1366 = vmatpush1.msra.mxu0 0.0
      %1367 = vmatprep.subr.mxu0 0.0
      %1368 = vmatpush1.msra.mxu0 0.0
      %1369 = vmatprep.subr.mxu0 0.0
      %1370 = vmatpush1.msra.mxu0 0.0
      %1371 = vmatprep.subr.mxu0 0.0
      %1372 = vmatpush1.msra.mxu0 0.0
      %1373 = vmatprep.mubr.f32.mxu0 0.0
      %1374 = vmatmul.mubr.f32.gmra.mrb[0].mxu0 %v1291
      %v1375 = vpop.f32.mrb[0].mxu0
      %v1376 = vadd.f32 0.0, %v1375
      %v1377 = vpop.f32.mrb[0].mxu0
      %1378 = vmatprep.mubr.f32.mxu0 0.0
      %1379 = vmatmul.mubr.f32.gmra.mrb[0].mxu0 %v1292
      %v1380 = vpop.f32.mrb[0].mxu0
      %v1381 = vadd.f32 0.0, %v1380
      %v1382 = vpop.f32.mrb[0].mxu0
      %1383 = vdwg.mxu0
      %v1384 = vld [vmem:[#allocation3] sm:$0xff]
      %v1385 = vld [vmem:[#allocation3 + $0x8] sm:$0xff]
      %v1386 = vld [vmem:[%s864] sm:$0xff]
      %v1387 = vld [vmem:[%s864 + $0x8] sm:$0xff]
      %v1388 = vld [vmem:[%s864 + $0x10] sm:$0xff]
      %v1389 = vld [vmem:[%s864 + $0x18] sm:$0xff]
      %v1390 = vld [vmem:[%s864 + $0x20] sm:$0xff]
      %v1391 = vld [vmem:[%s864 + $0x28] sm:$0xff]
      %v1392 = vld [vmem:[%s864 + $0x30] sm:$0xff]
      %v1393 = vld [vmem:[%s864 + $0x38] sm:$0xff]
      %v1394 = vld [vmem:[%s864 + $0x40] sm:$0xff]
      %v1395 = vld [vmem:[%s864 + $0x48] sm:$0xff]
      %v1396 = vld [vmem:[%s864 + $0x50] sm:$0xff]
      %v1397 = vld [vmem:[%s864 + $0x58] sm:$0xff]
      %v1398 = vld [vmem:[%s864 + $0x60] sm:$0xff]
      %v1399 = vld [vmem:[%s864 + $0x68] sm:$0xff]
      %v1400 = vld [vmem:[%s864 + $0x70] sm:$0xff]
      %v1401 = vld [vmem:[%s864 + $0x78] sm:$0xff]
      %1402 = vmatprep.subr.mxu0 0.0
      %1403 = vmatpush1.msra.mxu0 %v1386
      %1404 = vmatprep.subr.mxu0 0.0
      %1405 = vmatpush1.msra.mxu0 %v1387
      %1406 = vmatprep.subr.mxu0 0.0
      %1407 = vmatpush1.msra.mxu0 %v1388
      %1408 = vmatprep.subr.mxu0 0.0
      %1409 = vmatpush1.msra.mxu0 %v1389
      %1410 = vmatprep.subr.mxu0 0.0
      %1411 = vmatpush1.msra.mxu0 %v1390
      %1412 = vmatprep.subr.mxu0 0.0
      %1413 = vmatpush1.msra.mxu0 %v1391
      %1414 = vmatprep.subr.mxu0 0.0
      %1415 = vmatpush1.msra.mxu0 %v1392
      %1416 = vmatprep.subr.mxu0 0.0
      %1417 = vmatpush1.msra.mxu0 %v1393
      %1418 = vmatprep.subr.mxu0 0.0
      %1419 = vmatpush1.msra.mxu0 %v1394
      %1420 = vmatprep.subr.mxu0 0.0
      %1421 = vmatpush1.msra.mxu0 %v1395
      %1422 = vmatprep.subr.mxu0 0.0
      %1423 = vmatpush1.msra.mxu0 %v1396
      %1424 = vmatprep.subr.mxu0 0.0
      %1425 = vmatpush1.msra.mxu0 %v1397
      %1426 = vmatprep.subr.mxu0 0.0
      %1427 = vmatpush1.msra.mxu0 %v1398
      %1428 = vmatprep.subr.mxu0 0.0
      %1429 = vmatpush1.msra.mxu0 %v1399
      %1430 = vmatprep.subr.mxu0 0.0
      %1431 = vmatpush1.msra.mxu0 %v1400
      %1432 = vmatprep.subr.mxu0 0.0
      %1433 = vmatpush1.msra.mxu0 %v1401
      %1434 = vmatprep.subr.mxu0 0.0
      %1435 = vmatpush1.msra.mxu0 0.0
      %1436 = vmatprep.subr.mxu0 0.0
      %1437 = vmatpush1.msra.mxu0 0.0
      %1438 = vmatprep.subr.mxu0 0.0
      %1439 = vmatpush1.msra.mxu0 0.0
      %1440 = vmatprep.subr.mxu0 0.0
      %1441 = vmatpush1.msra.mxu0 0.0
      %1442 = vmatprep.subr.mxu0 0.0
      %1443 = vmatpush1.msra.mxu0 0.0
      %1444 = vmatprep.subr.mxu0 0.0
      %1445 = vmatpush1.msra.mxu0 0.0
      %1446 = vmatprep.subr.mxu0 0.0
      %1447 = vmatpush1.msra.mxu0 0.0
      %1448 = vmatprep.subr.mxu0 0.0
      %1449 = vmatpush1.msra.mxu0 0.0
      %1450 = vmatprep.subr.mxu0 0.0
      %1451 = vmatpush1.msra.mxu0 0.0
      %1452 = vmatprep.subr.mxu0 0.0
      %1453 = vmatpush1.msra.mxu0 0.0
      %1454 = vmatprep.subr.mxu0 0.0
      %1455 = vmatpush1.msra.mxu0 0.0
      %1456 = vmatprep.subr.mxu0 0.0
      %1457 = vmatpush1.msra.mxu0 0.0
      %1458 = vmatprep.subr.mxu0 0.0
      %1459 = vmatpush1.msra.mxu0 0.0
      %1460 = vmatprep.subr.mxu0 0.0
      %1461 = vmatpush1.msra.mxu0 0.0
      %1462 = vmatprep.subr.mxu0 0.0
      %1463 = vmatpush1.msra.mxu0 0.0
      %1464 = vmatprep.subr.mxu0 0.0
      %1465 = vmatpush1.msra.mxu0 0.0
      %1466 = vmatprep.mubr.f32.mxu0 0.0
      %1467 = vmatmul.mubr.f32.gmra.mrb[0].mxu0 %v1384
      %v1468 = vpop.f32.mrb[0].mxu0
      %v1469 = vadd.f32 0.0, %v1468
      %v1470 = vpop.f32.mrb[0].mxu0
      %1471 = vmatprep.mubr.f32.mxu0 0.0
      %1472 = vmatmul.mubr.f32.gmra.mrb[0].mxu0 %v1385
      %v1473 = vpop.f32.mrb[0].mxu0
      %v1474 = vadd.f32 0.0, %v1473
      %v1475 = vpop.f32.mrb[0].mxu0
      %1476 = vdwg.mxu0
      %v1477 = vsub.f32 %v1376, %v1469
      %v1478 = vsub.f32 %v1381, %v1474
      %v1479 = vmul.f32 %v1477, 2.0
      %v1480 = vmul.f32 %v1478, 2.0
      %v1481 = vld [vmem:[%s867] sm:$0x1]
      %v1483 = vlaneseq
      %v1484 = vshrl.u32 %v1483, 7
      %v1485 = vsub.s32 0, %v1484
      %v1486 = vrot.slane %v1481, %v1485
      %v1488 = vmul.f32 %v948, %v1486
      %v1489 = vmul.f32 %v949, %v1486
      %v1490 = vadd.f32 %v1479, %v1488
      %v1491 = vadd.f32 %v1480, %v1489
      %v1492 = vmul.f32 %v1490, 0.5
      %v1493 = vmul.f32 %v1491, 0.5
      %v1494 = vmul.f32 %v1490, 0.70710677
      %v1495 = vmul.f32 %v1491, 0.70710677
      %vm1496 = vcmp.ge.f32.partialorder %v1494, 0.0
      %vm1497 = vcmp.ge.f32.partialorder %v1495, 0.0
      %v1498 = vsel %vm1496, 1.0, -1.0
      %v1499 = vsel %vm1497, 1.0, -1.0
      %v1500 = vand.u32 2147483647, %v1494
      %v1501 = vand.u32 2147483647, %v1495
      %v1502 = vmul.f32 %v1500, 0.3275911
      %v1503 = vmul.f32 %v1501, 0.3275911
      %v1504 = vadd.f32 %v1502, 1.0
      %v1505 = vadd.f32 %v1503, 1.0
      %v1506 = vrcp.pop %v1504
      %v1507 = vmul.f32 1.0, %v1506
      %v1508 = vrcp.pop %v1505
      %v1509 = vmul.f32 1.0, %v1508
      %v1510 = vmul.f32 %v1507, 1.0614054
      %v1511 = vmul.f32 %v1509, 1.0614054
      %v1512 = vadd.f32 %v1510, -1.4531521
      %v1513 = vadd.f32 %v1511, -1.4531521
      %v1514 = vmul.f32 %v1512, %v1507
      %v1515 = vmul.f32 %v1513, %v1509
      %v1516 = vadd.f32 %v1514, 1.4214138
      %v1517 = vadd.f32 %v1515, 1.4214138
      %v1518 = vmul.f32 %v1516, %v1507
      %v1519 = vmul.f32 %v1517, %v1509
      %v1520 = vadd.f32 %v1518, -0.28449672
      %v1521 = vadd.f32 %v1519, -0.28449672
      %v1522 = vmul.f32 %v1520, %v1507
      %v1523 = vmul.f32 %v1521, %v1509
      %v1524 = vadd.f32 %v1522, 0.2548296
      %v1525 = vadd.f32 %v1523, 0.2548296
      %v1526 = vmul.f32 %v1524, %v1507
      %v1527 = vmul.f32 %v1525, %v1509
      %v1528 = vsub.f32 0.0, %v1500
      %v1529 = vsub.f32 0.0, %v1501
      %v1530 = vmul.f32 %v1528, %v1500
      %v1531 = vmul.f32 %v1529, %v1501
      %v1532 = vmul.f32 %v1530, 1.442695
      %v1533 = vpow.pop %v1532
      %v1534 = vmul.f32 %v1531, 1.442695
      %v1535 = vpow.pop %v1534
      %v1536 = vmul.f32 %v1526, %v1533
      %v1537 = vmul.f32 %v1527, %v1535
      %v1538 = vsub.f32 1.0, %v1536
      %v1539 = vsub.f32 1.0, %v1537
      %v1540 = vmul.f32 %v1498, %v1538
      %v1541 = vmul.f32 %v1499, %v1539
      %v1542 = vadd.f32 %v1540, 1.0
      %v1543 = vadd.f32 %v1541, 1.0
      %v1544 = vmul.f32 %v1492, %v1542
      %v1545 = vmul.f32 %v1493, %v1543
      %v1546 = vadd.f32 %v1544, %v948
      %v1547 = vadd.f32 %v1545, %v949
      %v1548 = vld [vmem:[%s870] sm:$0x1]
      %v1549 = vld [vmem:[%s873] sm:$0x1]
      %v1550 = vsel %vm906, %v1546, 0.0
      %1551 = vadd.xlane.f32.xlu0 %v1550
      %v1552 = vpop.xlane.xlu0 %1551
      %v1553 = vsel %vm906, %v1547, 0.0
      %1554 = vadd.xlane.f32.xlu0 %v1553
      %v1555 = vpop.xlane.xlu0 %1554
      %v1556 = vmul.f32 %v1552, %v913
      %v1557 = vmul.f32 %v1555, %v913
      %v1558 = vsub.f32 %v1546, %v1556
      %v1559 = vsub.f32 %v1547, %v1557
      %v1560 = vmul.f32 %v1558, %v1558
      %v1561 = vmul.f32 %v1559, %v1559
      %v1562 = vsel %vm906, %v1560, 0.0
      %1563 = vadd.xlane.f32.xlu0 %v1562
      %v1564 = vpop.xlane.xlu0 %1563
      %v1565 = vsel %vm906, %v1561, 0.0
      %1566 = vadd.xlane.f32.xlu0 %v1565
      %v1567 = vpop.xlane.xlu0 %1566
      %v1568 = vmul.f32 %v1564, %v913
      %v1569 = vmul.f32 %v1567, %v913
      %v1570 = vadd.f32 %v1568, 1e-05
      %v1571 = vadd.f32 %v1569, 1e-05
      %v1572 = vrsqrt.pop %v1570
      %v1573 = vrsqrt.pop %v1571
      %v1574 = vmul.f32 %v1558, %v1572
      %v1575 = vmul.f32 %v1559, %v1573
      %v1577 = vlaneseq
      %v1578 = vshrl.u32 %v1577, 7
      %v1579 = vsub.s32 0, %v1578
      %v1580 = vrot.slane %v1548, %v1579
      %v1582 = vmul.f32 %v1574, %v1580
      %v1583 = vmul.f32 %v1575, %v1580
      %v1585 = vlaneseq
      %v1586 = vshrl.u32 %v1585, 7
      %v1587 = vsub.s32 0, %v1586
      %v1588 = vrot.slane %v1549, %v1587
      %v1590 = vadd.f32 %v1582, %v1588
      %v1591 = vadd.f32 %v1583, %v1588
      %v1592 = vld [vmem:[%s878] sm:$0xff]
      %v1593 = vld [vmem:[%s878 + $0x8] sm:$0xff]
      %v1595 = vsel %vm906, %v1590, 0
      %v1598 = vsel %vm906, %v1591, 0
      %1600 = vmatprep.subr.mxu0 0.0
      %1601 = vmatpush1.msra.mxu0 %v1592
      %1602 = vmatprep.subr.mxu0 0.0
      %1603 = vmatpush1.msra.mxu0 %v1593
      %1604 = vmatprep.subr.mxu0 0.0
      %1605 = vmatpush1.msra.mxu0 0.0
      %1606 = vmatprep.subr.mxu0 0.0
      %1607 = vmatpush1.msra.mxu0 0.0
      %1608 = vmatprep.subr.mxu0 0.0
      %1609 = vmatpush1.msra.mxu0 0.0
      %1610 = vmatprep.subr.mxu0 0.0
      %1611 = vmatpush1.msra.mxu0 0.0
      %1612 = vmatprep.subr.mxu0 0.0
      %1613 = vmatpush1.msra.mxu0 0.0
      %1614 = vmatprep.subr.mxu0 0.0
      %1615 = vmatpush1.msra.mxu0 0.0
      %1616 = vmatprep.subr.mxu0 0.0
      %1617 = vmatpush1.msra.mxu0 0.0
      %1618 = vmatprep.subr.mxu0 0.0
      %1619 = vmatpush1.msra.mxu0 0.0
      %1620 = vmatprep.subr.mxu0 0.0
      %1621 = vmatpush1.msra.mxu0 0.0
      %1622 = vmatprep.subr.mxu0 0.0
      %1623 = vmatpush1.msra.mxu0 0.0
      %1624 = vmatprep.subr.mxu0 0.0
      %1625 = vmatpush1.msra.mxu0 0.0
      %1626 = vmatprep.subr.mxu0 0.0
      %1627 = vmatpush1.msra.mxu0 0.0
      %1628 = vmatprep.subr.mxu0 0.0
      %1629 = vmatpush1.msra.mxu0 0.0
      %1630 = vmatprep.subr.mxu0 0.0
      %1631 = vmatpush1.msra.mxu0 0.0
      %1632 = vmatprep.subr.mxu0 0.0
      %1633 = vmatpush1.msra.mxu0 0.0
      %1634 = vmatprep.subr.mxu0 0.0
      %1635 = vmatpush1.msra.mxu0 0.0
      %1636 = vmatprep.subr.mxu0 0.0
      %1637 = vmatpush1.msra.mxu0 0.0
      %1638 = vmatprep.subr.mxu0 0.0
      %1639 = vmatpush1.msra.mxu0 0.0
      %1640 = vmatprep.subr.mxu0 0.0
      %1641 = vmatpush1.msra.mxu0 0.0
      %1642 = vmatprep.subr.mxu0 0.0
      %1643 = vmatpush1.msra.mxu0 0.0
      %1644 = vmatprep.subr.mxu0 0.0
      %1645 = vmatpush1.msra.mxu0 0.0
      %1646 = vmatprep.subr.mxu0 0.0
      %1647 = vmatpush1.msra.mxu0 0.0
      %1648 = vmatprep.subr.mxu0 0.0
      %1649 = vmatpush1.msra.mxu0 0.0
      %1650 = vmatprep.subr.mxu0 0.0
      %1651 = vmatpush1.msra.mxu0 0.0
      %1652 = vmatprep.subr.mxu0 0.0
      %1653 = vmatpush1.msra.mxu0 0.0
      %1654 = vmatprep.subr.mxu0 0.0
      %1655 = vmatpush1.msra.mxu0 0.0
      %1656 = vmatprep.subr.mxu0 0.0
      %1657 = vmatpush1.msra.mxu0 0.0
      %1658 = vmatprep.subr.mxu0 0.0
      %1659 = vmatpush1.msra.mxu0 0.0
      %1660 = vmatprep.subr.mxu0 0.0
      %1661 = vmatpush1.msra.mxu0 0.0
      %1662 = vmatprep.subr.mxu0 0.0
      %1663 = vmatpush1.msra.mxu0 0.0
      %1664 = vmatprep.mubr.f32.mxu0 0.0
      %1665 = vmatmul.mubr.f32.gmra.mrb[0].mxu0 %v1595
      %v1666 = vpop.f32.mrb[0].mxu0
      %v1667 = vadd.f32 0.0, %v1666
      %v1668 = vpop.f32.mrb[0].mxu0
      %1669 = vmatprep.mubr.f32.mxu0 0.0
      %1670 = vmatmul.mubr.f32.gmra.mrb[0].mxu0 %v1598
      %v1671 = vpop.f32.mrb[0].mxu0
      %v1672 = vadd.f32 0.0, %v1671
      %v1673 = vpop.f32.mrb[0].mxu0
      %1674 = vdwg.mxu0
      %v1675 = vld [vmem:[%s883] sm:$0xff]
      %v1676 = vld [vmem:[%s883 + $0x8] sm:$0xff]
      %1677 = vmatprep.subr.mxu0 0.0
      %1678 = vmatpush1.msra.mxu0 %v1675
      %1679 = vmatprep.subr.mxu0 0.0
      %1680 = vmatpush1.msra.mxu0 %v1676
      %1681 = vmatprep.subr.mxu0 0.0
      %1682 = vmatpush1.msra.mxu0 0.0
      %1683 = vmatprep.subr.mxu0 0.0
      %1684 = vmatpush1.msra.mxu0 0.0
      %1685 = vmatprep.subr.mxu0 0.0
      %1686 = vmatpush1.msra.mxu0 0.0
      %1687 = vmatprep.subr.mxu0 0.0
      %1688 = vmatpush1.msra.mxu0 0.0
      %1689 = vmatprep.subr.mxu0 0.0
      %1690 = vmatpush1.msra.mxu0 0.0
      %1691 = vmatprep.subr.mxu0 0.0
      %1692 = vmatpush1.msra.mxu0 0.0
      %1693 = vmatprep.subr.mxu0 0.0
      %1694 = vmatpush1.msra.mxu0 0.0
      %1695 = vmatprep.subr.mxu0 0.0
      %1696 = vmatpush1.msra.mxu0 0.0
      %1697 = vmatprep.subr.mxu0 0.0
      %1698 = vmatpush1.msra.mxu0 0.0
      %1699 = vmatprep.subr.mxu0 0.0
      %1700 = vmatpush1.msra.mxu0 0.0
      %1701 = vmatprep.subr.mxu0 0.0
      %1702 = vmatpush1.msra.mxu0 0.0
      %1703 = vmatprep.subr.mxu0 0.0
      %1704 = vmatpush1.msra.mxu0 0.0
      %1705 = vmatprep.subr.mxu0 0.0
      %1706 = vmatpush1.msra.mxu0 0.0
      %1707 = vmatprep.subr.mxu0 0.0
      %1708 = vmatpush1.msra.mxu0 0.0
      %1709 = vmatprep.subr.mxu0 0.0
      %1710 = vmatpush1.msra.mxu0 0.0
      %1711 = vmatprep.subr.mxu0 0.0
      %1712 = vmatpush1.msra.mxu0 0.0
      %1713 = vmatprep.subr.mxu0 0.0
      %1714 = vmatpush1.msra.mxu0 0.0
      %1715 = vmatprep.subr.mxu0 0.0
      %1716 = vmatpush1.msra.mxu0 0.0
      %1717 = vmatprep.subr.mxu0 0.0
      %1718 = vmatpush1.msra.mxu0 0.0
      %1719 = vmatprep.subr.mxu0 0.0
      %1720 = vmatpush1.msra.mxu0 0.0
      %1721 = vmatprep.subr.mxu0 0.0
      %1722 = vmatpush1.msra.mxu0 0.0
      %1723 = vmatprep.subr.mxu0 0.0
      %1724 = vmatpush1.msra.mxu0 0.0
      %1725 = vmatprep.subr.mxu0 0.0
      %1726 = vmatpush1.msra.mxu0 0.0
      %1727 = vmatprep.subr.mxu0 0.0
      %1728 = vmatpush1.msra.mxu0 0.0
      %1729 = vmatprep.subr.mxu0 0.0
      %1730 = vmatpush1.msra.mxu0 0.0
      %1731 = vmatprep.subr.mxu0 0.0
      %1732 = vmatpush1.msra.mxu0 0.0
      %1733 = vmatprep.subr.mxu0 0.0
      %1734 = vmatpush1.msra.mxu0 0.0
      %1735 = vmatprep.subr.mxu0 0.0
      %1736 = vmatpush1.msra.mxu0 0.0
      %1737 = vmatprep.subr.mxu0 0.0
      %1738 = vmatpush1.msra.mxu0 0.0
      %1739 = vmatprep.subr.mxu0 0.0
      %1740 = vmatpush1.msra.mxu0 0.0
      %1741 = vmatprep.mubr.f32.mxu0 0.0
      %1742 = vmatmul.mubr.f32.gmra.mrb[0].mxu0 %v1595
      %v1743 = vpop.f32.mrb[0].mxu0
      %v1744 = vadd.f32 0.0, %v1743
      %v1745 = vpop.f32.mrb[0].mxu0
      %1746 = vmatprep.mubr.f32.mxu0 0.0
      %1747 = vmatmul.mubr.f32.gmra.mrb[0].mxu0 %v1598
      %v1748 = vpop.f32.mrb[0].mxu0
      %v1749 = vadd.f32 0.0, %v1748
      %v1750 = vpop.f32.mrb[0].mxu0
      %1751 = vdwg.mxu0
      %v1752 = vmul.f32 %v1744, 0.5
      %v1753 = vmul.f32 %v1749, 0.5
      %v1754 = vmul.f32 %v1744, 0.70710677
      %v1755 = vmul.f32 %v1749, 0.70710677
      %vm1756 = vcmp.ge.f32.partialorder %v1754, 0.0
      %vm1757 = vcmp.ge.f32.partialorder %v1755, 0.0
      %v1758 = vsel %vm1756, 1.0, -1.0
      %v1759 = vsel %vm1757, 1.0, -1.0
      %v1760 = vand.u32 2147483647, %v1754
      %v1761 = vand.u32 2147483647, %v1755
      %v1762 = vmul.f32 %v1760, 0.3275911
      %v1763 = vmul.f32 %v1761, 0.3275911
      %v1764 = vadd.f32 %v1762, 1.0
      %v1765 = vadd.f32 %v1763, 1.0
      %v1766 = vrcp.pop %v1764
      %v1767 = vmul.f32 1.0, %v1766
      %v1768 = vrcp.pop %v1765
      %v1769 = vmul.f32 1.0, %v1768
      %v1770 = vmul.f32 %v1767, 1.0614054
      %v1771 = vmul.f32 %v1769, 1.0614054
      %v1772 = vadd.f32 %v1770, -1.4531521
      %v1773 = vadd.f32 %v1771, -1.4531521
      %v1774 = vmul.f32 %v1772, %v1767
      %v1775 = vmul.f32 %v1773, %v1769
      %v1776 = vadd.f32 %v1774, 1.4214138
      %v1777 = vadd.f32 %v1775, 1.4214138
      %v1778 = vmul.f32 %v1776, %v1767
      %v1779 = vmul.f32 %v1777, %v1769
      %v1780 = vadd.f32 %v1778, -0.28449672
      %v1781 = vadd.f32 %v1779, -0.28449672
      %v1782 = vmul.f32 %v1780, %v1767
      %v1783 = vmul.f32 %v1781, %v1769
      %v1784 = vadd.f32 %v1782, 0.2548296
      %v1785 = vadd.f32 %v1783, 0.2548296
      %v1786 = vmul.f32 %v1784, %v1767
      %v1787 = vmul.f32 %v1785, %v1769
      %v1788 = vsub.f32 0.0, %v1760
      %v1789 = vsub.f32 0.0, %v1761
      %v1790 = vmul.f32 %v1788, %v1760
      %v1791 = vmul.f32 %v1789, %v1761
      %v1792 = vmul.f32 %v1790, 1.442695
      %v1793 = vpow.pop %v1792
      %v1794 = vmul.f32 %v1791, 1.442695
      %v1795 = vpow.pop %v1794
      %v1796 = vmul.f32 %v1786, %v1793
      %v1797 = vmul.f32 %v1787, %v1795
      %v1798 = vsub.f32 1.0, %v1796
      %v1799 = vsub.f32 1.0, %v1797
      %v1800 = vmul.f32 %v1758, %v1798
      %v1801 = vmul.f32 %v1759, %v1799
      %v1802 = vadd.f32 %v1800, 1.0
      %v1803 = vadd.f32 %v1801, 1.0
      %v1804 = vmul.f32 %v1752, %v1802
      %v1805 = vmul.f32 %v1753, %v1803
      %v1806 = vmul.f32 %v1667, %v1804
      %v1807 = vmul.f32 %v1672, %v1805
      %v1808 = vld [vmem:[%s888] sm:$0xff]
      %v1809 = vld [vmem:[%s888 + $0x8] sm:$0xff]
      %v1811 = vsel %vm906, %v1806, 0
      %v1814 = vsel %vm906, %v1807, 0
      %1816 = vmatprep.subr.mxu0 0.0
      %1817 = vmatpush1.msra.mxu0 %v1808
      %1818 = vmatprep.subr.mxu0 0.0
      %1819 = vmatpush1.msra.mxu0 %v1809
      %1820 = vmatprep.subr.mxu0 0.0
      %1821 = vmatpush1.msra.mxu0 0.0
      %1822 = vmatprep.subr.mxu0 0.0
      %1823 = vmatpush1.msra.mxu0 0.0
      %1824 = vmatprep.subr.mxu0 0.0
      %1825 = vmatpush1.msra.mxu0 0.0
      %1826 = vmatprep.subr.mxu0 0.0
      %1827 = vmatpush1.msra.mxu0 0.0
      %1828 = vmatprep.subr.mxu0 0.0
      %1829 = vmatpush1.msra.mxu0 0.0
      %1830 = vmatprep.subr.mxu0 0.0
      %1831 = vmatpush1.msra.mxu0 0.0
      %1832 = vmatprep.subr.mxu0 0.0
      %1833 = vmatpush1.msra.mxu0 0.0
      %1834 = vmatprep.subr.mxu0 0.0
      %1835 = vmatpush1.msra.mxu0 0.0
      %1836 = vmatprep.subr.mxu0 0.0
      %1837 = vmatpush1.msra.mxu0 0.0
      %1838 = vmatprep.subr.mxu0 0.0
      %1839 = vmatpush1.msra.mxu0 0.0
      %1840 = vmatprep.subr.mxu0 0.0
      %1841 = vmatpush1.msra.mxu0 0.0
      %1842 = vmatprep.subr.mxu0 0.0
      %1843 = vmatpush1.msra.mxu0 0.0
      %1844 = vmatprep.subr.mxu0 0.0
      %1845 = vmatpush1.msra.mxu0 0.0
      %1846 = vmatprep.subr.mxu0 0.0
      %1847 = vmatpush1.msra.mxu0 0.0
      %1848 = vmatprep.subr.mxu0 0.0
      %1849 = vmatpush1.msra.mxu0 0.0
      %1850 = vmatprep.subr.mxu0 0.0
      %1851 = vmatpush1.msra.mxu0 0.0
      %1852 = vmatprep.subr.mxu0 0.0
      %1853 = vmatpush1.msra.mxu0 0.0
      %1854 = vmatprep.subr.mxu0 0.0
      %1855 = vmatpush1.msra.mxu0 0.0
      %1856 = vmatprep.subr.mxu0 0.0
      %1857 = vmatpush1.msra.mxu0 0.0
      %1858 = vmatprep.subr.mxu0 0.0
      %1859 = vmatpush1.msra.mxu0 0.0
      %1860 = vmatprep.subr.mxu0 0.0
      %1861 = vmatpush1.msra.mxu0 0.0
      %1862 = vmatprep.subr.mxu0 0.0
      %1863 = vmatpush1.msra.mxu0 0.0
      %1864 = vmatprep.subr.mxu0 0.0
      %1865 = vmatpush1.msra.mxu0 0.0
      %1866 = vmatprep.subr.mxu0 0.0
      %1867 = vmatpush1.msra.mxu0 0.0
      %1868 = vmatprep.subr.mxu0 0.0
      %1869 = vmatpush1.msra.mxu0 0.0
      %1870 = vmatprep.subr.mxu0 0.0
      %1871 = vmatpush1.msra.mxu0 0.0
      %1872 = vmatprep.subr.mxu0 0.0
      %1873 = vmatpush1.msra.mxu0 0.0
      %1874 = vmatprep.subr.mxu0 0.0
      %1875 = vmatpush1.msra.mxu0 0.0
      %1876 = vmatprep.subr.mxu0 0.0
      %1877 = vmatpush1.msra.mxu0 0.0
      %1878 = vmatprep.subr.mxu0 0.0
      %1879 = vmatpush1.msra.mxu0 0.0
      %1880 = vmatprep.mubr.f32.mxu0 0.0
      %1881 = vmatmul.mubr.f32.gmra.mrb[0].mxu0 %v1811
      %v1882 = vpop.f32.mrb[0].mxu0
      %v1883 = vadd.f32 %v1590, %v1882
      %v1884 = vpop.f32.mrb[0].mxu0
      %1885 = vmatprep.mubr.f32.mxu0 0.0
      %1886 = vmatmul.mubr.f32.gmra.mrb[0].mxu0 %v1814
      %v1887 = vpop.f32.mrb[0].mxu0
      %v1888 = vadd.f32 %v1591, %v1887
      %v1889 = vpop.f32.mrb[0].mxu0
      %1890 = vdwg.mxu0
      %1891 = vst.msk [vmem:[%s893] sm:$0xff] %vm906, %v1883
      %1892 = vst.msk [vmem:[%s893 + $0x8] sm:$0xff] %vm906, %v1888
      %p1893 = scmp.lt.s32.totalorder %s31, 1
      %s1894 = scalar_select %p1893, %s31, 1
      %s1895 = smul.addr %s1894, 2
      %s1896 = smul.addr %s1895, 8
      %s1897 = scalar_lea.vmem %s17, %s1896
      %p1898 = scmp.lt.s32.totalorder %s31, 1
      %s1899 = scalar_select %p1898, %s31, 1
      %s1900 = smul.addr %s1899, 2
      %s1901 = scalar_lea.vmem %s18, %s1900
      %p1902 = scmp.lt.s32.totalorder %s31, 1
      %s1903 = scalar_select %p1902, %s31, 1
      %s1904 = smul.addr %s1903, 2
      %s1905 = scalar_lea.vmem %s19, %s1904
      // Predicated region
      $region89: #{physics_constraint_ssm_forward.3} parent=87 // pred_check
        %p1906 = pneg %p491
      $region90: #{physics_constraint_ssm_forward.3} parent=87 // pred_check_branch
        %1908 = sbr.rel (%p1906) target = $region92
      $region91: #{physics_constraint_ssm_forward.3} parent=87 // pred_region
        _
      $region92: #{physics_constraint_ssm_forward.3} parent=87 // pred_fallthru
        _
      // Predicated region
      $region93: #{physics_constraint_ssm_forward.3} parent=87 // pred_check
        %p1909 = pneg %p517
      $region94: #{physics_constraint_ssm_forward.3} parent=87 // pred_check_branch
        %1911 = sbr.rel (%p1909) target = $region96
      $region95: #{physics_constraint_ssm_forward.3} parent=87 // pred_region
        _
      $region96: #{physics_constraint_ssm_forward.3} parent=87 // pred_fallthru
        _
      // Predicated region
      $region97: #{physics_constraint_ssm_forward.3} parent=87 // pred_check
        %p1912 = pneg %p543
      $region98: #{physics_constraint_ssm_forward.3} parent=87 // pred_check_branch
        %1914 = sbr.rel (%p1912) target = $region100
      $region99: #{physics_constraint_ssm_forward.3} parent=87 // pred_region
        _
      $region100: #{physics_constraint_ssm_forward.3} parent=87 // pred_fallthru
        _
    $region88: #{physics_constraint_ssm_forward.3} parent=5 // pred_fallthru
      _
    %p1915 = scmp.le.s32.totalorder 2, %s26
    // Predicated region
    $region101: #{physics_constraint_ssm_forward.3} parent=5 // pred_check
      %p1916 = pneg %p1915
    $region102: #{physics_constraint_ssm_forward.3} parent=5 // pred_check_branch
      %1918 = sbr.rel (%p1916) target = $region104
    $region103: #{physics_constraint_ssm_forward.3} parent=5 // pred_region
      %s1919 = ssub.s32 %s26, 2
      // Predicated region
      $region105: #{physics_constraint_ssm_forward.3} parent=103 // pred_check
        %p1920 = pneg %p497
      $region106: #{physics_constraint_ssm_forward.3} parent=103 // pred_check_branch
        %1922 = sbr.rel (%p1920) target = $region108
      $region107: #{physics_constraint_ssm_forward.3} parent=103 // pred_region
        %p1923 = scmp.lt.s32.totalorder %s32, 1
        %s1924 = scalar_select %p1923, %s32, 1
        %s1925 = smul.addr %s1924, 2
        %s1926 = smul.addr %s1925, 8
        %s1927 = scalar_lea.vmem %s17, %s1926
      $region108: #{physics_constraint_ssm_forward.3} parent=103 // pred_fallthru
        _
      // Predicated region
      $region109: #{physics_constraint_ssm_forward.3} parent=103 // pred_check
        %p1928 = pneg %p523
      $region110: #{physics_constraint_ssm_forward.3} parent=103 // pred_check_branch
        %1930 = sbr.rel (%p1928) target = $region112
      $region111: #{physics_constraint_ssm_forward.3} parent=103 // pred_region
        %p1931 = scmp.lt.s32.totalorder %s32, 1
        %s1932 = scalar_select %p1931, %s32, 1
        %s1933 = smul.addr %s1932, 2
        %s1934 = scalar_lea.vmem %s18, %s1933
      $region112: #{physics_constraint_ssm_forward.3} parent=103 // pred_fallthru
        _
      // Predicated region
      $region113: #{physics_constraint_ssm_forward.3} parent=103 // pred_check
        %p1935 = pneg %p549
      $region114: #{physics_constraint_ssm_forward.3} parent=103 // pred_check_branch
        %1937 = sbr.rel (%p1935) target = $region116
      $region115: #{physics_constraint_ssm_forward.3} parent=103 // pred_region
        %p1938 = scmp.lt.s32.totalorder %s32, 1
        %s1939 = scalar_select %p1938, %s32, 1
        %s1940 = smul.addr %s1939, 2
        %s1941 = scalar_lea.vmem %s19, %s1940
      $region116: #{physics_constraint_ssm_forward.3} parent=103 // pred_fallthru
        _
    $region104: #{physics_constraint_ssm_forward.3} parent=5 // pred_fallthru
      _
  $region6: #{physics_constraint_ssm_forward.3} parent=0 // loop_footer
    %s30 = sadd.s32 1, %s26
  $region7: #{physics_constraint_ssm_forward.3} parent=0 // loop_footer_branch
    %25 = sbr.rel target = $region3
  $region8: #{physics_constraint_ssm_forward.3} parent=0 // loop_exit
    _

</llo_original>
